<compile_context>
chip_gen: v7x
topology: tpu7x:2x2x1
jax: 0.10.0
libtpu: 0.0.40
codegen_flags: <defaults>
</compile_context>

<pallas_src>
import functools

import jax
import jax.numpy as jnp
from jax.experimental import pallas as pl
from jax.experimental.pallas import tpu as pltpu


def _round_up(x, m):
    return (x + m - 1) // m * m


# ------------------------------ fused kernel --------------------------------

def _make_kernel(meta):
    NA = meta["num_agents"]
    NPOLY = meta["num_polylines"]
    T = meta["num_trajs"]
    w_off = meta["w_off"]
    c_off = meta["c_off"]

    def kernel(sdc_ref, agent_ref, map_ref, w_ref, c_ref, out_ref):
        def W(name):                      # static slice of bf16 weight slab
            r, k, n = w_off[name]
            return w_ref[r:r + k, :n]

        def C(name):                      # static slice of f32 const slab
            r, k, n = c_off[name]
            return c_ref[r:r + k, :n]

        def mm(x_bf16, w):                # bf16 MXU matmul, f32 accumulation
            return jnp.dot(x_bf16, w, preferred_element_type=jnp.float32)

        def mlp(x_f32, name):             # Linear -> ReLU -> Linear
            h = jnp.maximum(
                mm(x_f32.astype(jnp.bfloat16), W(name + "_w1")) + C(name + "_b1"), 0.0)
            return mm(h.astype(jnp.bfloat16), W(name + "_w2")) + C(name + "_b2")

        # --- SDC history encoder --------------------------------------------
        sdc_emb = mlp(sdc_ref[...], "se")                       # [BB, 32] f32
        sdc_bf = sdc_emb.astype(jnp.bfloat16)                   # hoisted cast (reused)

        # --- merged CG context MLPs (shared 32->128, block-diag 128->128) ----
        ctx_h = jnp.maximum(mm(sdc_bf, W("cx_w1")) + C("cx_b1"), 0.0)   # [BB, 128]
        ctx = mm(ctx_h.astype(jnp.bfloat16), W("cx_w2")) + C("cx_b2")   # [BB, 128]
        a_ctx = ctx[:, :64]                                             # agent ctx
        m_ctx = ctx[:, 64:128]                                          # map ctx

        # --- agent path: per-agent slab MLPs + gated running max -------------
        # TODO(synk): CgNet pooling assumed to be an unmasked max over elements.
        a_pool = None
        for k in range(NA):
            emb = mlp(agent_ref[k], "ap")                       # [BB, 32]
            elem = mlp(emb, "ae")                               # [BB, 64]
            g = elem * a_ctx
            a_pool = g if a_pool is None else jnp.maximum(a_pool, g)

        # --- map path ---------------------------------------------------------
        m_pool = None
        for k in range(NPOLY):
            elem = mlp(map_ref[k], "me")                        # [BB, 64]
            g = elem * m_ctx
            m_pool = g if m_pool is None else jnp.maximum(m_pool, g)

        # --- learnable-query decoder (query-side matmul precomputed) ----------
        ch = (mm(sdc_bf, W("qd_w1s"))
              + mm(a_pool.astype(jnp.bfloat16), W("qd_w1a"))
              + mm(m_pool.astype(jnp.bfloat16), W("qd_w1m")))   # [BB, 64]
        qh = C("qh")                                            # [T, 64] (bias folded in)

        # --- per-trajectory decode + merged traj/logit head (dense stores) ----
        for t in range(T):
            h_t = jnp.maximum(ch + qh[t:t + 1, :], 0.0)                          # [BB, 64]
            dec = mm(h_t.astype(jnp.bfloat16), W("qd_w2")) + C("qd_b2")          # [BB, 128]
            hh = jnp.maximum(mm(dec.astype(jnp.bfloat16), W("hd_w1")) + C("hd_b1"), 0.0)
            out_ref[t] = (mm(hh.astype(jnp.bfloat16), W("hd_w2"))
                          + C("hd_b2")).astype(out_ref.dtype)                    # [BB, 128]

    return kernel


# ------------------------------ parameters -----------------------------------

def _init_linear(key, din, dout):
    kw, kb = jax.random.split(key)
    lim = 1.0 / jnp.sqrt(jnp.float32(din))
    w = jax.random.uniform(kw, (din, dout), jnp.float32, -lim, lim)
    b = jax.random.uniform(kb, (dout,), jnp.float32, -lim, lim)
    return w, b


def _init_mlp(key, din, dout, hidden=64):
    k1, k2 = jax.random.split(key)
    w1, b1 = _init_linear(k1, din, hidden)
    w2, b2 = _init_linear(k2, hidden, dout)
    return (w1, b1, w2, b2)


def init_params(key, *, num_future_states, num_trajs, history_timestamps,
                sdc_attribution_dim, agent_attribution_dim, map_attribution_dim):
    ks = jax.random.split(key, 10)
    ctx_dim = 32 + 64 + 64
    return {
        "sdc_enc": _init_mlp(ks[0], history_timestamps * sdc_attribution_dim, 32),
        "agent_pre": _init_mlp(ks[1], history_timestamps * agent_attribution_dim, 32),
        "agent_cg_elem": _init_mlp(ks[2], 32, 64),
        "agent_cg_ctx": _init_mlp(ks[3], 32, 64),
        "map_cg_elem": _init_mlp(ks[4], map_attribution_dim, 64),
        "map_cg_ctx": _init_mlp(ks[5], 32, 64),
        "queries": jax.random.normal(ks[6], (num_trajs, 32), jnp.float32) * 0.02,
        "query_mlp": _init_mlp(ks[7], 32 + ctx_dim, 128),
        "traj_dec": _init_mlp(ks[8], 128, num_future_states * 2),
        "logit": _init_mlp(ks[9], 128, 1),
    }


def _pack_slab(items, *, align, width, dtype):
    """Stack (name, array) pairs into one [R, width] slab; segment starts are
    aligned to `align` rows so static in-kernel slices stay tile-aligned."""
    offsets = {}
    blocks = []
    r = 0
    for name, a in items:
        a = jnp.asarray(a, jnp.float32)
        if a.ndim == 1:
            a = a.reshape(1, -1)
        k, n = a.shape
        assert n <= width, (name, n, width)
        kp = _round_up(k, align)
        blk = jnp.zeros((kp, width), jnp.float32).at[:k, :n].set(a)
        blocks.append(blk)
        offsets[name] = (r, k, n)      # Python ints -> static slices in-kernel
        r += kp
    slab = jnp.concatenate(blocks, axis=0).astype(dtype)
    return slab, offsets


def prepare_params(p, *, num_future_states):
    """One-time weight merging / splitting / precompute / slab packing."""
    F = num_future_states
    T = p["queries"].shape[0]
    head_out = _round_up(2 * F + 1, 128)
    width = max(128, head_out)

    # Merged CG context MLPs (both consume sdc_emb): shared 32->128 first layer,
    # block-diagonal 128->128 second layer (agent ctx lanes 0:64, map ctx 64:128).
    aw1, ab1, aw2, ab2 = p["agent_cg_ctx"]
    mw1, mb1, mw2, mb2 = p["map_cg_ctx"]
    cx_w1 = jnp.concatenate([aw1, mw1], axis=1)                     # [32, 128]
    cx_b1 = jnp.concatenate([ab1, mb1])                             # [128]
    cx_w2 = jnp.zeros((128, 128), jnp.float32)
    cx_w2 = cx_w2.at[:64, :64].set(aw2).at[64:, 64:].set(mw2)       # [128, 128]
    cx_b2 = jnp.concatenate([ab2, mb2])                             # [128]

    # LearnableQuery first layer split; the query-side matmul (+ bias) is
    # batch-independent, so precompute it once -> [T, 64] constant.
    qw1, qb1, qw2, qb2 = p["query_mlp"]                             # [192,64],[64],[64,128],[128]
    qh = (jnp.dot(p["queries"].astype(jnp.bfloat16), qw1[:32].astype(jnp.bfloat16),
                  preferred_element_type=jnp.float32) + qb1)        # [T, 64]

    # Merged traj-regression + logit heads, lane-dense 128-wide output.
    tw1, tb1, tw2, tb2 = p["traj_dec"]                              # [128,64],[64],[64,2F],[2F]
    lw1, lb1, lw2, lb2 = p["logit"]                                 # [128,64],[64],[64,1],[1]
    hd_w1 = jnp.concatenate([tw1, lw1], axis=1)                     # [128, 128]
    hd_b1 = jnp.concatenate([tb1, lb1])                             # [128]
    hd_w2 = jnp.zeros((128, head_out), jnp.float32)
    hd_w2 = hd_w2.at[:64, :2 * F].set(tw2)
    hd_w2 = hd_w2.at[64:, 2 * F:2 * F + 1].set(lw2)
    hd_b2 = jnp.zeros((head_out,), jnp.float32)
    hd_b2 = hd_b2.at[:2 * F].set(tb2).at[2 * F].set(lb2[0])

    weight_items = [
        ("se_w1", p["sdc_enc"][0]), ("se_w2", p["sdc_enc"][2]),
        ("ap_w1", p["agent_pre"][0]), ("ap_w2", p["agent_pre"][2]),
        ("ae_w1", p["agent_cg_elem"][0]), ("ae_w2", p["agent_cg_elem"][2]),
        ("me_w1", p["map_cg_elem"][0]), ("me_w2", p["map_cg_elem"][2]),
        ("cx_w1", cx_w1), ("cx_w2", cx_w2),
        ("qd_w1s", qw1[32:64]), ("qd_w1a", qw1[64:128]), ("qd_w1m", qw1[128:192]),
        ("qd_w2", qw2),
        ("hd_w1", hd_w1), ("hd_w2", hd_w2),
    ]
    const_items = [
        ("se_b1", p["sdc_enc"][1]), ("se_b2", p["sdc_enc"][3]),
        ("ap_b1", p["agent_pre"][1]), ("ap_b2", p["agent_pre"][3]),
        ("ae_b1", p["agent_cg_elem"][1]), ("ae_b2", p["agent_cg_elem"][3]),
        ("me_b1", p["map_cg_elem"][1]), ("me_b2", p["map_cg_elem"][3]),
        ("cx_b1", cx_b1), ("cx_b2", cx_b2),
        ("qd_b2", qb2),
        ("hd_b1", hd_b1), ("hd_b2", hd_b2),
        ("qh", qh),
    ]

    w_slab, w_off = _pack_slab(weight_items, align=16, width=width, dtype=jnp.bfloat16)
    c_slab, c_off = _pack_slab(const_items, align=8, width=width, dtype=jnp.float32)

    meta = {
        "num_trajs": T,
        "num_future_states": F,
        "head_out": head_out,
        "w_off": w_off,
        "c_off": c_off,
    }
    return {"w_slab": w_slab, "c_slab": c_slab}, meta


# -------------------------------- forward ------------------------------------

def _pick_block_b(B):
    """Batch rows per grid step: full batch for tiny B, else a multiple of 8
    up to 256 that keeps the grid length >= 2 (megacore sharding)."""
    if B <= 8:
        return B
    bb = (min(256, pl.cdiv(B, 2)) // 8) * 8
    return max(8, bb)


def forward(params, sdc_history, agent_history, map_feat, *, meta):
    B = sdc_history.shape[0]
    NA = agent_history.shape[1]
    NPOLY = map_feat.shape[1]
    T = meta["num_trajs"]
    F = meta["num_future_states"]
    head_out = meta["head_out"]

    BB = _pick_block_b(B)
    n_blocks = pl.cdiv(B, BB)
    B_pad = n_blocks * BB

    sdc_x = sdc_history.reshape(B, -1).astype(jnp.float32)            # [B, Th*As]
    agent_x = agent_history.reshape(B, NA, -1).astype(jnp.float32)    # [B, NA, Th*Aa]
    map_x = map_feat.astype(jnp.float32)                              # [B, NP, Am]

    if B_pad != B:
        pad = B_pad - B
        sdc_x = jnp.pad(sdc_x, ((0, pad), (0, 0)))
        agent_x = jnp.pad(agent_x, ((0, pad), (0, 0), (0, 0)))
        map_x = jnp.pad(map_x, ((0, pad), (0, 0), (0, 0)))

    # Element-major layout: each grid step sees contiguous [BB, d] slabs per
    # agent / polyline -> no strided gathers or reshapes inside the kernel.
    agent_x = jnp.transpose(agent_x, (1, 0, 2))                       # [NA, B_pad, da]
    map_x = jnp.transpose(map_x, (1, 0, 2))                           # [NP, B_pad, dm]

    ds = sdc_x.shape[1]
    da = agent_x.shape[2]
    dm = map_x.shape[2]

    kmeta = dict(meta)
    kmeta["num_agents"] = NA
    kmeta["num_polylines"] = NPOLY
    kernel = _make_kernel(kmeta)

    w_slab = params["w_slab"]
    c_slab = params["c_slab"]

    out = pl.pallas_call(
        kernel,
        out_shape=jax.ShapeDtypeStruct((T, B_pad, head_out), jnp.bfloat16),
        grid=(n_blocks,),
        in_specs=[
            pl.BlockSpec((BB, ds), lambda i: (i, 0)),
            pl.BlockSpec((NA, BB, da), lambda i: (0, i, 0)),
            pl.BlockSpec((NPOLY, BB, dm), lambda i: (0, i, 0)),
            pl.BlockSpec(w_slab.shape, lambda i: (0, 0)),   # resident weight slab
            pl.BlockSpec(c_slab.shape, lambda i: (0, 0)),   # resident const slab
        ],
        out_specs=pl.BlockSpec((T, BB, head_out), lambda i: (0, i, 0)),
        compiler_params=pltpu.CompilerParams(
            dimension_semantics=("parallel",)),
    )(sdc_x, agent_x, map_x, w_slab, c_slab)

    out = jnp.transpose(out.astype(jnp.float32), (1, 0, 2))[:B]       # [B, T, head_out]
    traj = out[:, :, :2 * F].reshape(B, T, F, 2)
    logit = out[:, :, 2 * F]
    return traj, logit


# ---------------------------------- main --------------------------------------

if __name__ == "__main__":
    B = 2
    NUM_AGENTS = 3
    NUM_POLYLINES = 7
    HISTORY_T = 4
    SDC_ATTR = 5
    AGENT_ATTR = 6
    MAP_ATTR = 8
    NUM_TRAJS = 4
    NUM_FUTURE = 6

    key = jax.random.PRNGKey(0)
    k_params, k_sdc, k_agent, k_map = jax.random.split(key, 4)

    base = init_params(
        k_params,
        num_future_states=NUM_FUTURE,
        num_trajs=NUM_TRAJS,
        history_timestamps=HISTORY_T,
        sdc_attribution_dim=SDC_ATTR,
        agent_attribution_dim=AGENT_ATTR,
        map_attribution_dim=MAP_ATTR,
    )
    params, meta = prepare_params(base, num_future_states=NUM_FUTURE)

    sdc_history = jax.random.normal(k_sdc, (B, HISTORY_T, SDC_ATTR), jnp.float32)
    agent_history = jax.random.normal(
        k_agent, (B, NUM_AGENTS, HISTORY_T, AGENT_ATTR), jnp.float32)
    map_feat = jax.random.normal(k_map, (B, NUM_POLYLINES, MAP_ATTR), jnp.float32)

    fwd = jax.jit(functools.partial(forward, meta=meta))
    traj, logit = fwd(params, sdc_history, agent_history, map_feat)
    jax.block_until_ready((traj, logit))

    assert traj.shape == (B, NUM_TRAJS, NUM_FUTURE, 2), traj.shape
    assert logit.shape == (B, NUM_TRAJS), logit.shape
    assert bool(jnp.isfinite(traj).all()) and bool(jnp.isfinite(logit).all())
    print("KERNEL_OK")
</pallas_src>

<mosaic_0001>
module attributes {stable_mosaic.version = 11 : i64} {
  func.func @kernel(%arg0: i32, %arg1: memref<2x20xf32, #tpu.memory_space<vmem>>, %arg2: memref<3x2x24xf32, #tpu.memory_space<vmem>>, %arg3: memref<7x2x8xf32, #tpu.memory_space<vmem>>, %arg4: memref<1008x128xbf16, #tpu.memory_space<vmem>>, %arg5: memref<112x128xf32, #tpu.memory_space<vmem>>, %arg6: memref<4x2x128xbf16, #tpu.memory_space<vmem>>) attributes {dimension_semantics = [#tpu.dimension_semantics<parallel>], iteration_bounds = array<i64: 1>, scalar_prefetch = 0 : i64, scratch_operands = 0 : i64, tpu.core_type = #tpu.core_type<tc>, window_params = [{transform_indices = @transform_0, window_bounds = array<i64: 2, 20>}, {transform_indices = @transform_1, window_bounds = array<i64: 3, 2, 24>}, {transform_indices = @transform_2, window_bounds = array<i64: 7, 2, 8>}, {pipeline_mode = #tpu.pipeline_mode<synchronous>, transform_indices = @transform_3, window_bounds = array<i64: 1008, 128>}, {pipeline_mode = #tpu.pipeline_mode<synchronous>, transform_indices = @transform_4, window_bounds = array<i64: 112, 128>}, {transform_indices = @transform_5, window_bounds = array<i64: 4, 2, 128>}]} {
    %c0 = arith.constant 0 : index
    %c0_0 = arith.constant 0 : index
    %0 = vector.load %arg1[%c0, %c0_0] : memref<2x20xf32, #tpu.memory_space<vmem>>, vector<2x20xf32>
    %1 = arith.truncf %0 : vector<2x20xf32> to vector<2x20xbf16>
    %c0_1 = arith.constant 0 : index
    %c0_2 = arith.constant 0 : index
    %2 = vector.load %arg4[%c0_1, %c0_2] : memref<1008x128xbf16, #tpu.memory_space<vmem>>, vector<20x64xbf16>
    %cst = arith.constant dense<0.000000e+00> : vector<2x64xf32>
    %3 = tpu.matmul %1, %2, %cst {dimension_numbers = #tpu.dot_dimension_numbers<[1], [0], [0], [1], [0, 0, 1, 1], [], []>} : vector<2x20xbf16>, vector<20x64xbf16>, vector<2x64xf32> -> vector<2x64xf32>
    %c0_3 = arith.constant 0 : index
    %c0_4 = arith.constant 0 : index
    %4 = vector.load %arg5[%c0_3, %c0_4] : memref<112x128xf32, #tpu.memory_space<vmem>>, vector<1x64xf32>
    %5 = vector.broadcast %4 : vector<1x64xf32> to vector<2x64xf32>
    %6 = arith.addf %3, %5 : vector<2x64xf32>
    %cst_5 = arith.constant 0.000000e+00 : f32
    %7 = vector.broadcast %cst_5 : f32 to vector<2x64xf32>
    %8 = arith.maximumf %6, %7 : vector<2x64xf32>
    %9 = arith.truncf %8 : vector<2x64xf32> to vector<2x64xbf16>
    %c32 = arith.constant 32 : index
    %c0_6 = arith.constant 0 : index
    %10 = vector.load %arg4[%c32, %c0_6] : memref<1008x128xbf16, #tpu.memory_space<vmem>>, vector<64x32xbf16>
    %cst_7 = arith.constant dense<0.000000e+00> : vector<2x32xf32>
    %11 = tpu.matmul %9, %10, %cst_7 {dimension_numbers = #tpu.dot_dimension_numbers<[1], [0], [0], [1], [0, 0, 1, 1], [], []>} : vector<2x64xbf16>, vector<64x32xbf16>, vector<2x32xf32> -> vector<2x32xf32>
    %c8 = arith.constant 8 : index
    %c0_8 = arith.constant 0 : index
    %12 = vector.load %arg5[%c8, %c0_8] : memref<112x128xf32, #tpu.memory_space<vmem>>, vector<1x32xf32>
    %13 = vector.broadcast %12 : vector<1x32xf32> to vector<2x32xf32>
    %14 = arith.addf %11, %13 : vector<2x32xf32>
    %15 = arith.truncf %14 : vector<2x32xf32> to vector<2x32xbf16>
    %c368 = arith.constant 368 : index
    %c0_9 = arith.constant 0 : index
    %16 = vector.load %arg4[%c368, %c0_9] : memref<1008x128xbf16, #tpu.memory_space<vmem>>, vector<32x128xbf16>
    %cst_10 = arith.constant dense<0.000000e+00> : vector<2x128xf32>
    %17 = tpu.matmul %15, %16, %cst_10 {dimension_numbers = #tpu.dot_dimension_numbers<[1], [0], [0], [1], [0, 0, 1, 1], [], []>} : vector<2x32xbf16>, vector<32x128xbf16>, vector<2x128xf32> -> vector<2x128xf32>
    %c64 = arith.constant 64 : index
    %c0_11 = arith.constant 0 : index
    %18 = vector.load %arg5[%c64, %c0_11] : memref<112x128xf32, #tpu.memory_space<vmem>>, vector<1x128xf32>
    %19 = vector.broadcast %18 : vector<1x128xf32> to vector<2x128xf32>
    %20 = arith.addf %17, %19 : vector<2x128xf32>
    %cst_12 = arith.constant 0.000000e+00 : f32
    %21 = vector.broadcast %cst_12 : f32 to vector<2x128xf32>
    %22 = arith.maximumf %20, %21 : vector<2x128xf32>
    %23 = arith.truncf %22 : vector<2x128xf32> to vector<2x128xbf16>
    %c400 = arith.constant 400 : index
    %c0_13 = arith.constant 0 : index
    %24 = vector.load %arg4[%c400, %c0_13] : memref<1008x128xbf16, #tpu.memory_space<vmem>>, vector<128x128xbf16>
    %cst_14 = arith.constant dense<0.000000e+00> : vector<2x128xf32>
    %25 = tpu.matmul %23, %24, %cst_14 {dimension_numbers = #tpu.dot_dimension_numbers<[1], [0], [0], [1], [0, 0, 1, 1], [], []>} : vector<2x128xbf16>, vector<128x128xbf16>, vector<2x128xf32> -> vector<2x128xf32>
    %c72 = arith.constant 72 : index
    %c0_15 = arith.constant 0 : index
    %26 = vector.load %arg5[%c72, %c0_15] : memref<112x128xf32, #tpu.memory_space<vmem>>, vector<1x128xf32>
    %27 = vector.broadcast %26 : vector<1x128xf32> to vector<2x128xf32>
    %28 = arith.addf %25, %27 : vector<2x128xf32>
    %29 = vector.extract_strided_slice %28 {offsets = [0, 0], sizes = [2, 64], strides = [1, 1]} : vector<2x128xf32> to vector<2x64xf32>
    %30 = vector.extract_strided_slice %28 {offsets = [0, 64], sizes = [2, 64], strides = [1, 1]} : vector<2x128xf32> to vector<2x64xf32>
    %c0_16 = arith.constant 0 : index
    %c0_17 = arith.constant 0 : index
    %c0_18 = arith.constant 0 : index
    %31 = vector.load %arg2[%c0_16, %c0_17, %c0_18] : memref<3x2x24xf32, #tpu.memory_space<vmem>>, vector<1x2x24xf32>
    %32 = vector.shape_cast %31 : vector<1x2x24xf32> to vector<2x24xf32>
    %33 = arith.truncf %32 : vector<2x24xf32> to vector<2x24xbf16>
    %c96 = arith.constant 96 : index
    %c0_19 = arith.constant 0 : index
    %34 = vector.load %arg4[%c96, %c0_19] : memref<1008x128xbf16, #tpu.memory_space<vmem>>, vector<24x64xbf16>
    %cst_20 = arith.constant dense<0.000000e+00> : vector<2x64xf32>
    %35 = tpu.matmul %33, %34, %cst_20 {dimension_numbers = #tpu.dot_dimension_numbers<[1], [0], [0], [1], [0, 0, 1, 1], [], []>} : vector<2x24xbf16>, vector<24x64xbf16>, vector<2x64xf32> -> vector<2x64xf32>
    %c16 = arith.constant 16 : index
    %c0_21 = arith.constant 0 : index
    %36 = vector.load %arg5[%c16, %c0_21] : memref<112x128xf32, #tpu.memory_space<vmem>>, vector<1x64xf32>
    %37 = vector.broadcast %36 : vector<1x64xf32> to vector<2x64xf32>
    %38 = arith.addf %35, %37 : vector<2x64xf32>
    %cst_22 = arith.constant 0.000000e+00 : f32
    %39 = vector.broadcast %cst_22 : f32 to vector<2x64xf32>
    %40 = arith.maximumf %38, %39 : vector<2x64xf32>
    %41 = arith.truncf %40 : vector<2x64xf32> to vector<2x64xbf16>
    %c128 = arith.constant 128 : index
    %c0_23 = arith.constant 0 : index
    %42 = vector.load %arg4[%c128, %c0_23] : memref<1008x128xbf16, #tpu.memory_space<vmem>>, vector<64x32xbf16>
    %cst_24 = arith.constant dense<0.000000e+00> : vector<2x32xf32>
    %43 = tpu.matmul %41, %42, %cst_24 {dimension_numbers = #tpu.dot_dimension_numbers<[1], [0], [0], [1], [0, 0, 1, 1], [], []>} : vector<2x64xbf16>, vector<64x32xbf16>, vector<2x32xf32> -> vector<2x32xf32>
    %c24 = arith.constant 24 : index
    %c0_25 = arith.constant 0 : index
    %44 = vector.load %arg5[%c24, %c0_25] : memref<112x128xf32, #tpu.memory_space<vmem>>, vector<1x32xf32>
    %45 = vector.broadcast %44 : vector<1x32xf32> to vector<2x32xf32>
    %46 = arith.addf %43, %45 : vector<2x32xf32>
    %47 = arith.truncf %46 : vector<2x32xf32> to vector<2x32xbf16>
    %c192 = arith.constant 192 : index
    %c0_26 = arith.constant 0 : index
    %48 = vector.load %arg4[%c192, %c0_26] : memref<1008x128xbf16, #tpu.memory_space<vmem>>, vector<32x64xbf16>
    %cst_27 = arith.constant dense<0.000000e+00> : vector<2x64xf32>
    %49 = tpu.matmul %47, %48, %cst_27 {dimension_numbers = #tpu.dot_dimension_numbers<[1], [0], [0], [1], [0, 0, 1, 1], [], []>} : vector<2x32xbf16>, vector<32x64xbf16>, vector<2x64xf32> -> vector<2x64xf32>
    %c32_28 = arith.constant 32 : index
    %c0_29 = arith.constant 0 : index
    %50 = vector.load %arg5[%c32_28, %c0_29] : memref<112x128xf32, #tpu.memory_space<vmem>>, vector<1x64xf32>
    %51 = vector.broadcast %50 : vector<1x64xf32> to vector<2x64xf32>
    %52 = arith.addf %49, %51 : vector<2x64xf32>
    %cst_30 = arith.constant 0.000000e+00 : f32
    %53 = vector.broadcast %cst_30 : f32 to vector<2x64xf32>
    %54 = arith.maximumf %52, %53 : vector<2x64xf32>
    %55 = arith.truncf %54 : vector<2x64xf32> to vector<2x64xbf16>
    %c224 = arith.constant 224 : index
    %c0_31 = arith.constant 0 : index
    %56 = vector.load %arg4[%c224, %c0_31] : memref<1008x128xbf16, #tpu.memory_space<vmem>>, vector<64x64xbf16>
    %cst_32 = arith.constant dense<0.000000e+00> : vector<2x64xf32>
    %57 = tpu.matmul %55, %56, %cst_32 {dimension_numbers = #tpu.dot_dimension_numbers<[1], [0], [0], [1], [0, 0, 1, 1], [], []>} : vector<2x64xbf16>, vector<64x64xbf16>, vector<2x64xf32> -> vector<2x64xf32>
    %c40 = arith.constant 40 : index
    %c0_33 = arith.constant 0 : index
    %58 = vector.load %arg5[%c40, %c0_33] : memref<112x128xf32, #tpu.memory_space<vmem>>, vector<1x64xf32>
    %59 = vector.broadcast %58 : vector<1x64xf32> to vector<2x64xf32>
    %60 = arith.addf %57, %59 : vector<2x64xf32>
    %61 = arith.mulf %60, %29 : vector<2x64xf32>
    %c1 = arith.constant 1 : index
    %c0_34 = arith.constant 0 : index
    %c0_35 = arith.constant 0 : index
    %62 = vector.load %arg2[%c1, %c0_34, %c0_35] : memref<3x2x24xf32, #tpu.memory_space<vmem>>, vector<1x2x24xf32>
    %63 = vector.shape_cast %62 : vector<1x2x24xf32> to vector<2x24xf32>
    %64 = arith.truncf %63 : vector<2x24xf32> to vector<2x24xbf16>
    %c96_36 = arith.constant 96 : index
    %c0_37 = arith.constant 0 : index
    %65 = vector.load %arg4[%c96_36, %c0_37] : memref<1008x128xbf16, #tpu.memory_space<vmem>>, vector<24x64xbf16>
    %cst_38 = arith.constant dense<0.000000e+00> : vector<2x64xf32>
    %66 = tpu.matmul %64, %65, %cst_38 {dimension_numbers = #tpu.dot_dimension_numbers<[1], [0], [0], [1], [0, 0, 1, 1], [], []>} : vector<2x24xbf16>, vector<24x64xbf16>, vector<2x64xf32> -> vector<2x64xf32>
    %c16_39 = arith.constant 16 : index
    %c0_40 = arith.constant 0 : index
    %67 = vector.load %arg5[%c16_39, %c0_40] : memref<112x128xf32, #tpu.memory_space<vmem>>, vector<1x64xf32>
    %68 = vector.broadcast %67 : vector<1x64xf32> to vector<2x64xf32>
    %69 = arith.addf %66, %68 : vector<2x64xf32>
    %cst_41 = arith.constant 0.000000e+00 : f32
    %70 = vector.broadcast %cst_41 : f32 to vector<2x64xf32>
    %71 = arith.maximumf %69, %70 : vector<2x64xf32>
    %72 = arith.truncf %71 : vector<2x64xf32> to vector<2x64xbf16>
    %c128_42 = arith.constant 128 : index
    %c0_43 = arith.constant 0 : index
    %73 = vector.load %arg4[%c128_42, %c0_43] : memref<1008x128xbf16, #tpu.memory_space<vmem>>, vector<64x32xbf16>
    %cst_44 = arith.constant dense<0.000000e+00> : vector<2x32xf32>
    %74 = tpu.matmul %72, %73, %cst_44 {dimension_numbers = #tpu.dot_dimension_numbers<[1], [0], [0], [1], [0, 0, 1, 1], [], []>} : vector<2x64xbf16>, vector<64x32xbf16>, vector<2x32xf32> -> vector<2x32xf32>
    %c24_45 = arith.constant 24 : index
    %c0_46 = arith.constant 0 : index
    %75 = vector.load %arg5[%c24_45, %c0_46] : memref<112x128xf32, #tpu.memory_space<vmem>>, vector<1x32xf32>
    %76 = vector.broadcast %75 : vector<1x32xf32> to vector<2x32xf32>
    %77 = arith.addf %74, %76 : vector<2x32xf32>
    %78 = arith.truncf %77 : vector<2x32xf32> to vector<2x32xbf16>
    %c192_47 = arith.constant 192 : index
    %c0_48 = arith.constant 0 : index
    %79 = vector.load %arg4[%c192_47, %c0_48] : memref<1008x128xbf16, #tpu.memory_space<vmem>>, vector<32x64xbf16>
    %cst_49 = arith.constant dense<0.000000e+00> : vector<2x64xf32>
    %80 = tpu.matmul %78, %79, %cst_49 {dimension_numbers = #tpu.dot_dimension_numbers<[1], [0], [0], [1], [0, 0, 1, 1], [], []>} : vector<2x32xbf16>, vector<32x64xbf16>, vector<2x64xf32> -> vector<2x64xf32>
    %c32_50 = arith.constant 32 : index
    %c0_51 = arith.constant 0 : index
    %81 = vector.load %arg5[%c32_50, %c0_51] : memref<112x128xf32, #tpu.memory_space<vmem>>, vector<1x64xf32>
    %82 = vector.broadcast %81 : vector<1x64xf32> to vector<2x64xf32>
    %83 = arith.addf %80, %82 : vector<2x64xf32>
    %cst_52 = arith.constant 0.000000e+00 : f32
    %84 = vector.broadcast %cst_52 : f32 to vector<2x64xf32>
    %85 = arith.maximumf %83, %84 : vector<2x64xf32>
    %86 = arith.truncf %85 : vector<2x64xf32> to vector<2x64xbf16>
    %c224_53 = arith.constant 224 : index
    %c0_54 = arith.constant 0 : index
    %87 = vector.load %arg4[%c224_53, %c0_54] : memref<1008x128xbf16, #tpu.memory_space<vmem>>, vector<64x64xbf16>
    %cst_55 = arith.constant dense<0.000000e+00> : vector<2x64xf32>
    %88 = tpu.matmul %86, %87, %cst_55 {dimension_numbers = #tpu.dot_dimension_numbers<[1], [0], [0], [1], [0, 0, 1, 1], [], []>} : vector<2x64xbf16>, vector<64x64xbf16>, vector<2x64xf32> -> vector<2x64xf32>
    %c40_56 = arith.constant 40 : index
    %c0_57 = arith.constant 0 : index
    %89 = vector.load %arg5[%c40_56, %c0_57] : memref<112x128xf32, #tpu.memory_space<vmem>>, vector<1x64xf32>
    %90 = vector.broadcast %89 : vector<1x64xf32> to vector<2x64xf32>
    %91 = arith.addf %88, %90 : vector<2x64xf32>
    %92 = arith.mulf %91, %29 : vector<2x64xf32>
    %93 = arith.maximumf %61, %92 : vector<2x64xf32>
    %c2 = arith.constant 2 : index
    %c0_58 = arith.constant 0 : index
    %c0_59 = arith.constant 0 : index
    %94 = vector.load %arg2[%c2, %c0_58, %c0_59] : memref<3x2x24xf32, #tpu.memory_space<vmem>>, vector<1x2x24xf32>
    %95 = vector.shape_cast %94 : vector<1x2x24xf32> to vector<2x24xf32>
    %96 = arith.truncf %95 : vector<2x24xf32> to vector<2x24xbf16>
    %c96_60 = arith.constant 96 : index
    %c0_61 = arith.constant 0 : index
    %97 = vector.load %arg4[%c96_60, %c0_61] : memref<1008x128xbf16, #tpu.memory_space<vmem>>, vector<24x64xbf16>
    %cst_62 = arith.constant dense<0.000000e+00> : vector<2x64xf32>
    %98 = tpu.matmul %96, %97, %cst_62 {dimension_numbers = #tpu.dot_dimension_numbers<[1], [0], [0], [1], [0, 0, 1, 1], [], []>} : vector<2x24xbf16>, vector<24x64xbf16>, vector<2x64xf32> -> vector<2x64xf32>
    %c16_63 = arith.constant 16 : index
    %c0_64 = arith.constant 0 : index
    %99 = vector.load %arg5[%c16_63, %c0_64] : memref<112x128xf32, #tpu.memory_space<vmem>>, vector<1x64xf32>
    %100 = vector.broadcast %99 : vector<1x64xf32> to vector<2x64xf32>
    %101 = arith.addf %98, %100 : vector<2x64xf32>
    %cst_65 = arith.constant 0.000000e+00 : f32
    %102 = vector.broadcast %cst_65 : f32 to vector<2x64xf32>
    %103 = arith.maximumf %101, %102 : vector<2x64xf32>
    %104 = arith.truncf %103 : vector<2x64xf32> to vector<2x64xbf16>
    %c128_66 = arith.constant 128 : index
    %c0_67 = arith.constant 0 : index
    %105 = vector.load %arg4[%c128_66, %c0_67] : memref<1008x128xbf16, #tpu.memory_space<vmem>>, vector<64x32xbf16>
    %cst_68 = arith.constant dense<0.000000e+00> : vector<2x32xf32>
    %106 = tpu.matmul %104, %105, %cst_68 {dimension_numbers = #tpu.dot_dimension_numbers<[1], [0], [0], [1], [0, 0, 1, 1], [], []>} : vector<2x64xbf16>, vector<64x32xbf16>, vector<2x32xf32> -> vector<2x32xf32>
    %c24_69 = arith.constant 24 : index
    %c0_70 = arith.constant 0 : index
    %107 = vector.load %arg5[%c24_69, %c0_70] : memref<112x128xf32, #tpu.memory_space<vmem>>, vector<1x32xf32>
    %108 = vector.broadcast %107 : vector<1x32xf32> to vector<2x32xf32>
    %109 = arith.addf %106, %108 : vector<2x32xf32>
    %110 = arith.truncf %109 : vector<2x32xf32> to vector<2x32xbf16>
    %c192_71 = arith.constant 192 : index
    %c0_72 = arith.constant 0 : index
    %111 = vector.load %arg4[%c192_71, %c0_72] : memref<1008x128xbf16, #tpu.memory_space<vmem>>, vector<32x64xbf16>
    %cst_73 = arith.constant dense<0.000000e+00> : vector<2x64xf32>
    %112 = tpu.matmul %110, %111, %cst_73 {dimension_numbers = #tpu.dot_dimension_numbers<[1], [0], [0], [1], [0, 0, 1, 1], [], []>} : vector<2x32xbf16>, vector<32x64xbf16>, vector<2x64xf32> -> vector<2x64xf32>
    %c32_74 = arith.constant 32 : index
    %c0_75 = arith.constant 0 : index
    %113 = vector.load %arg5[%c32_74, %c0_75] : memref<112x128xf32, #tpu.memory_space<vmem>>, vector<1x64xf32>
    %114 = vector.broadcast %113 : vector<1x64xf32> to vector<2x64xf32>
    %115 = arith.addf %112, %114 : vector<2x64xf32>
    %cst_76 = arith.constant 0.000000e+00 : f32
    %116 = vector.broadcast %cst_76 : f32 to vector<2x64xf32>
    %117 = arith.maximumf %115, %116 : vector<2x64xf32>
    %118 = arith.truncf %117 : vector<2x64xf32> to vector<2x64xbf16>
    %c224_77 = arith.constant 224 : index
    %c0_78 = arith.constant 0 : index
    %119 = vector.load %arg4[%c224_77, %c0_78] : memref<1008x128xbf16, #tpu.memory_space<vmem>>, vector<64x64xbf16>
    %cst_79 = arith.constant dense<0.000000e+00> : vector<2x64xf32>
    %120 = tpu.matmul %118, %119, %cst_79 {dimension_numbers = #tpu.dot_dimension_numbers<[1], [0], [0], [1], [0, 0, 1, 1], [], []>} : vector<2x64xbf16>, vector<64x64xbf16>, vector<2x64xf32> -> vector<2x64xf32>
    %c40_80 = arith.constant 40 : index
    %c0_81 = arith.constant 0 : index
    %121 = vector.load %arg5[%c40_80, %c0_81] : memref<112x128xf32, #tpu.memory_space<vmem>>, vector<1x64xf32>
    %122 = vector.broadcast %121 : vector<1x64xf32> to vector<2x64xf32>
    %123 = arith.addf %120, %122 : vector<2x64xf32>
    %124 = arith.mulf %123, %29 : vector<2x64xf32>
    %125 = arith.maximumf %93, %124 : vector<2x64xf32>
    %c0_82 = arith.constant 0 : index
    %c0_83 = arith.constant 0 : index
    %c0_84 = arith.constant 0 : index
    %126 = vector.load %arg3[%c0_82, %c0_83, %c0_84] : memref<7x2x8xf32, #tpu.memory_space<vmem>>, vector<1x2x8xf32>
    %127 = vector.shape_cast %126 : vector<1x2x8xf32> to vector<2x8xf32>
    %128 = arith.truncf %127 : vector<2x8xf32> to vector<2x8xbf16>
    %c288 = arith.constant 288 : index
    %c0_85 = arith.constant 0 : index
    %129 = vector.load %arg4[%c288, %c0_85] : memref<1008x128xbf16, #tpu.memory_space<vmem>>, vector<8x64xbf16>
    %cst_86 = arith.constant dense<0.000000e+00> : vector<2x64xf32>
    %130 = tpu.matmul %128, %129, %cst_86 {dimension_numbers = #tpu.dot_dimension_numbers<[1], [0], [0], [1], [0, 0, 1, 1], [], []>} : vector<2x8xbf16>, vector<8x64xbf16>, vector<2x64xf32> -> vector<2x64xf32>
    %c48 = arith.constant 48 : index
    %c0_87 = arith.constant 0 : index
    %131 = vector.load %arg5[%c48, %c0_87] : memref<112x128xf32, #tpu.memory_space<vmem>>, vector<1x64xf32>
    %132 = vector.broadcast %131 : vector<1x64xf32> to vector<2x64xf32>
    %133 = arith.addf %130, %132 : vector<2x64xf32>
    %cst_88 = arith.constant 0.000000e+00 : f32
    %134 = vector.broadcast %cst_88 : f32 to vector<2x64xf32>
    %135 = arith.maximumf %133, %134 : vector<2x64xf32>
    %136 = arith.truncf %135 : vector<2x64xf32> to vector<2x64xbf16>
    %c304 = arith.constant 304 : index
    %c0_89 = arith.constant 0 : index
    %137 = vector.load %arg4[%c304, %c0_89] : memref<1008x128xbf16, #tpu.memory_space<vmem>>, vector<64x64xbf16>
    %cst_90 = arith.constant dense<0.000000e+00> : vector<2x64xf32>
    %138 = tpu.matmul %136, %137, %cst_90 {dimension_numbers = #tpu.dot_dimension_numbers<[1], [0], [0], [1], [0, 0, 1, 1], [], []>} : vector<2x64xbf16>, vector<64x64xbf16>, vector<2x64xf32> -> vector<2x64xf32>
    %c56 = arith.constant 56 : index
    %c0_91 = arith.constant 0 : index
    %139 = vector.load %arg5[%c56, %c0_91] : memref<112x128xf32, #tpu.memory_space<vmem>>, vector<1x64xf32>
    %140 = vector.broadcast %139 : vector<1x64xf32> to vector<2x64xf32>
    %141 = arith.addf %138, %140 : vector<2x64xf32>
    %142 = arith.mulf %141, %30 : vector<2x64xf32>
    %c1_92 = arith.constant 1 : index
    %c0_93 = arith.constant 0 : index
    %c0_94 = arith.constant 0 : index
    %143 = vector.load %arg3[%c1_92, %c0_93, %c0_94] : memref<7x2x8xf32, #tpu.memory_space<vmem>>, vector<1x2x8xf32>
    %144 = vector.shape_cast %143 : vector<1x2x8xf32> to vector<2x8xf32>
    %145 = arith.truncf %144 : vector<2x8xf32> to vector<2x8xbf16>
    %c288_95 = arith.constant 288 : index
    %c0_96 = arith.constant 0 : index
    %146 = vector.load %arg4[%c288_95, %c0_96] : memref<1008x128xbf16, #tpu.memory_space<vmem>>, vector<8x64xbf16>
    %cst_97 = arith.constant dense<0.000000e+00> : vector<2x64xf32>
    %147 = tpu.matmul %145, %146, %cst_97 {dimension_numbers = #tpu.dot_dimension_numbers<[1], [0], [0], [1], [0, 0, 1, 1], [], []>} : vector<2x8xbf16>, vector<8x64xbf16>, vector<2x64xf32> -> vector<2x64xf32>
    %c48_98 = arith.constant 48 : index
    %c0_99 = arith.constant 0 : index
    %148 = vector.load %arg5[%c48_98, %c0_99] : memref<112x128xf32, #tpu.memory_space<vmem>>, vector<1x64xf32>
    %149 = vector.broadcast %148 : vector<1x64xf32> to vector<2x64xf32>
    %150 = arith.addf %147, %149 : vector<2x64xf32>
    %cst_100 = arith.constant 0.000000e+00 : f32
    %151 = vector.broadcast %cst_100 : f32 to vector<2x64xf32>
    %152 = arith.maximumf %150, %151 : vector<2x64xf32>
    %153 = arith.truncf %152 : vector<2x64xf32> to vector<2x64xbf16>
    %c304_101 = arith.constant 304 : index
    %c0_102 = arith.constant 0 : index
    %154 = vector.load %arg4[%c304_101, %c0_102] : memref<1008x128xbf16, #tpu.memory_space<vmem>>, vector<64x64xbf16>
    %cst_103 = arith.constant dense<0.000000e+00> : vector<2x64xf32>
    %155 = tpu.matmul %153, %154, %cst_103 {dimension_numbers = #tpu.dot_dimension_numbers<[1], [0], [0], [1], [0, 0, 1, 1], [], []>} : vector<2x64xbf16>, vector<64x64xbf16>, vector<2x64xf32> -> vector<2x64xf32>
    %c56_104 = arith.constant 56 : index
    %c0_105 = arith.constant 0 : index
    %156 = vector.load %arg5[%c56_104, %c0_105] : memref<112x128xf32, #tpu.memory_space<vmem>>, vector<1x64xf32>
    %157 = vector.broadcast %156 : vector<1x64xf32> to vector<2x64xf32>
    %158 = arith.addf %155, %157 : vector<2x64xf32>
    %159 = arith.mulf %158, %30 : vector<2x64xf32>
    %160 = arith.maximumf %142, %159 : vector<2x64xf32>
    %c2_106 = arith.constant 2 : index
    %c0_107 = arith.constant 0 : index
    %c0_108 = arith.constant 0 : index
    %161 = vector.load %arg3[%c2_106, %c0_107, %c0_108] : memref<7x2x8xf32, #tpu.memory_space<vmem>>, vector<1x2x8xf32>
    %162 = vector.shape_cast %161 : vector<1x2x8xf32> to vector<2x8xf32>
    %163 = arith.truncf %162 : vector<2x8xf32> to vector<2x8xbf16>
    %c288_109 = arith.constant 288 : index
    %c0_110 = arith.constant 0 : index
    %164 = vector.load %arg4[%c288_109, %c0_110] : memref<1008x128xbf16, #tpu.memory_space<vmem>>, vector<8x64xbf16>
    %cst_111 = arith.constant dense<0.000000e+00> : vector<2x64xf32>
    %165 = tpu.matmul %163, %164, %cst_111 {dimension_numbers = #tpu.dot_dimension_numbers<[1], [0], [0], [1], [0, 0, 1, 1], [], []>} : vector<2x8xbf16>, vector<8x64xbf16>, vector<2x64xf32> -> vector<2x64xf32>
    %c48_112 = arith.constant 48 : index
    %c0_113 = arith.constant 0 : index
    %166 = vector.load %arg5[%c48_112, %c0_113] : memref<112x128xf32, #tpu.memory_space<vmem>>, vector<1x64xf32>
    %167 = vector.broadcast %166 : vector<1x64xf32> to vector<2x64xf32>
    %168 = arith.addf %165, %167 : vector<2x64xf32>
    %cst_114 = arith.constant 0.000000e+00 : f32
    %169 = vector.broadcast %cst_114 : f32 to vector<2x64xf32>
    %170 = arith.maximumf %168, %169 : vector<2x64xf32>
    %171 = arith.truncf %170 : vector<2x64xf32> to vector<2x64xbf16>
    %c304_115 = arith.constant 304 : index
    %c0_116 = arith.constant 0 : index
    %172 = vector.load %arg4[%c304_115, %c0_116] : memref<1008x128xbf16, #tpu.memory_space<vmem>>, vector<64x64xbf16>
    %cst_117 = arith.constant dense<0.000000e+00> : vector<2x64xf32>
    %173 = tpu.matmul %171, %172, %cst_117 {dimension_numbers = #tpu.dot_dimension_numbers<[1], [0], [0], [1], [0, 0, 1, 1], [], []>} : vector<2x64xbf16>, vector<64x64xbf16>, vector<2x64xf32> -> vector<2x64xf32>
    %c56_118 = arith.constant 56 : index
    %c0_119 = arith.constant 0 : index
    %174 = vector.load %arg5[%c56_118, %c0_119] : memref<112x128xf32, #tpu.memory_space<vmem>>, vector<1x64xf32>
    %175 = vector.broadcast %174 : vector<1x64xf32> to vector<2x64xf32>
    %176 = arith.addf %173, %175 : vector<2x64xf32>
    %177 = arith.mulf %176, %30 : vector<2x64xf32>
    %178 = arith.maximumf %160, %177 : vector<2x64xf32>
    %c3 = arith.constant 3 : index
    %c0_120 = arith.constant 0 : index
    %c0_121 = arith.constant 0 : index
    %179 = vector.load %arg3[%c3, %c0_120, %c0_121] : memref<7x2x8xf32, #tpu.memory_space<vmem>>, vector<1x2x8xf32>
    %180 = vector.shape_cast %179 : vector<1x2x8xf32> to vector<2x8xf32>
    %181 = arith.truncf %180 : vector<2x8xf32> to vector<2x8xbf16>
    %c288_122 = arith.constant 288 : index
    %c0_123 = arith.constant 0 : index
    %182 = vector.load %arg4[%c288_122, %c0_123] : memref<1008x128xbf16, #tpu.memory_space<vmem>>, vector<8x64xbf16>
    %cst_124 = arith.constant dense<0.000000e+00> : vector<2x64xf32>
    %183 = tpu.matmul %181, %182, %cst_124 {dimension_numbers = #tpu.dot_dimension_numbers<[1], [0], [0], [1], [0, 0, 1, 1], [], []>} : vector<2x8xbf16>, vector<8x64xbf16>, vector<2x64xf32> -> vector<2x64xf32>
    %c48_125 = arith.constant 48 : index
    %c0_126 = arith.constant 0 : index
    %184 = vector.load %arg5[%c48_125, %c0_126] : memref<112x128xf32, #tpu.memory_space<vmem>>, vector<1x64xf32>
    %185 = vector.broadcast %184 : vector<1x64xf32> to vector<2x64xf32>
    %186 = arith.addf %183, %185 : vector<2x64xf32>
    %cst_127 = arith.constant 0.000000e+00 : f32
    %187 = vector.broadcast %cst_127 : f32 to vector<2x64xf32>
    %188 = arith.maximumf %186, %187 : vector<2x64xf32>
    %189 = arith.truncf %188 : vector<2x64xf32> to vector<2x64xbf16>
    %c304_128 = arith.constant 304 : index
    %c0_129 = arith.constant 0 : index
    %190 = vector.load %arg4[%c304_128, %c0_129] : memref<1008x128xbf16, #tpu.memory_space<vmem>>, vector<64x64xbf16>
    %cst_130 = arith.constant dense<0.000000e+00> : vector<2x64xf32>
    %191 = tpu.matmul %189, %190, %cst_130 {dimension_numbers = #tpu.dot_dimension_numbers<[1], [0], [0], [1], [0, 0, 1, 1], [], []>} : vector<2x64xbf16>, vector<64x64xbf16>, vector<2x64xf32> -> vector<2x64xf32>
    %c56_131 = arith.constant 56 : index
    %c0_132 = arith.constant 0 : index
    %192 = vector.load %arg5[%c56_131, %c0_132] : memref<112x128xf32, #tpu.memory_space<vmem>>, vector<1x64xf32>
    %193 = vector.broadcast %192 : vector<1x64xf32> to vector<2x64xf32>
    %194 = arith.addf %191, %193 : vector<2x64xf32>
    %195 = arith.mulf %194, %30 : vector<2x64xf32>
    %196 = arith.maximumf %178, %195 : vector<2x64xf32>
    %c4 = arith.constant 4 : index
    %c0_133 = arith.constant 0 : index
    %c0_134 = arith.constant 0 : index
    %197 = vector.load %arg3[%c4, %c0_133, %c0_134] : memref<7x2x8xf32, #tpu.memory_space<vmem>>, vector<1x2x8xf32>
    %198 = vector.shape_cast %197 : vector<1x2x8xf32> to vector<2x8xf32>
    %199 = arith.truncf %198 : vector<2x8xf32> to vector<2x8xbf16>
    %c288_135 = arith.constant 288 : index
    %c0_136 = arith.constant 0 : index
    %200 = vector.load %arg4[%c288_135, %c0_136] : memref<1008x128xbf16, #tpu.memory_space<vmem>>, vector<8x64xbf16>
    %cst_137 = arith.constant dense<0.000000e+00> : vector<2x64xf32>
    %201 = tpu.matmul %199, %200, %cst_137 {dimension_numbers = #tpu.dot_dimension_numbers<[1], [0], [0], [1], [0, 0, 1, 1], [], []>} : vector<2x8xbf16>, vector<8x64xbf16>, vector<2x64xf32> -> vector<2x64xf32>
    %c48_138 = arith.constant 48 : index
    %c0_139 = arith.constant 0 : index
    %202 = vector.load %arg5[%c48_138, %c0_139] : memref<112x128xf32, #tpu.memory_space<vmem>>, vector<1x64xf32>
    %203 = vector.broadcast %202 : vector<1x64xf32> to vector<2x64xf32>
    %204 = arith.addf %201, %203 : vector<2x64xf32>
    %cst_140 = arith.constant 0.000000e+00 : f32
    %205 = vector.broadcast %cst_140 : f32 to vector<2x64xf32>
    %206 = arith.maximumf %204, %205 : vector<2x64xf32>
    %207 = arith.truncf %206 : vector<2x64xf32> to vector<2x64xbf16>
    %c304_141 = arith.constant 304 : index
    %c0_142 = arith.constant 0 : index
    %208 = vector.load %arg4[%c304_141, %c0_142] : memref<1008x128xbf16, #tpu.memory_space<vmem>>, vector<64x64xbf16>
    %cst_143 = arith.constant dense<0.000000e+00> : vector<2x64xf32>
    %209 = tpu.matmul %207, %208, %cst_143 {dimension_numbers = #tpu.dot_dimension_numbers<[1], [0], [0], [1], [0, 0, 1, 1], [], []>} : vector<2x64xbf16>, vector<64x64xbf16>, vector<2x64xf32> -> vector<2x64xf32>
    %c56_144 = arith.constant 56 : index
    %c0_145 = arith.constant 0 : index
    %210 = vector.load %arg5[%c56_144, %c0_145] : memref<112x128xf32, #tpu.memory_space<vmem>>, vector<1x64xf32>
    %211 = vector.broadcast %210 : vector<1x64xf32> to vector<2x64xf32>
    %212 = arith.addf %209, %211 : vector<2x64xf32>
    %213 = arith.mulf %212, %30 : vector<2x64xf32>
    %214 = arith.maximumf %196, %213 : vector<2x64xf32>
    %c5 = arith.constant 5 : index
    %c0_146 = arith.constant 0 : index
    %c0_147 = arith.constant 0 : index
    %215 = vector.load %arg3[%c5, %c0_146, %c0_147] : memref<7x2x8xf32, #tpu.memory_space<vmem>>, vector<1x2x8xf32>
    %216 = vector.shape_cast %215 : vector<1x2x8xf32> to vector<2x8xf32>
    %217 = arith.truncf %216 : vector<2x8xf32> to vector<2x8xbf16>
    %c288_148 = arith.constant 288 : index
    %c0_149 = arith.constant 0 : index
    %218 = vector.load %arg4[%c288_148, %c0_149] : memref<1008x128xbf16, #tpu.memory_space<vmem>>, vector<8x64xbf16>
    %cst_150 = arith.constant dense<0.000000e+00> : vector<2x64xf32>
    %219 = tpu.matmul %217, %218, %cst_150 {dimension_numbers = #tpu.dot_dimension_numbers<[1], [0], [0], [1], [0, 0, 1, 1], [], []>} : vector<2x8xbf16>, vector<8x64xbf16>, vector<2x64xf32> -> vector<2x64xf32>
    %c48_151 = arith.constant 48 : index
    %c0_152 = arith.constant 0 : index
    %220 = vector.load %arg5[%c48_151, %c0_152] : memref<112x128xf32, #tpu.memory_space<vmem>>, vector<1x64xf32>
    %221 = vector.broadcast %220 : vector<1x64xf32> to vector<2x64xf32>
    %222 = arith.addf %219, %221 : vector<2x64xf32>
    %cst_153 = arith.constant 0.000000e+00 : f32
    %223 = vector.broadcast %cst_153 : f32 to vector<2x64xf32>
    %224 = arith.maximumf %222, %223 : vector<2x64xf32>
    %225 = arith.truncf %224 : vector<2x64xf32> to vector<2x64xbf16>
    %c304_154 = arith.constant 304 : index
    %c0_155 = arith.constant 0 : index
    %226 = vector.load %arg4[%c304_154, %c0_155] : memref<1008x128xbf16, #tpu.memory_space<vmem>>, vector<64x64xbf16>
    %cst_156 = arith.constant dense<0.000000e+00> : vector<2x64xf32>
    %227 = tpu.matmul %225, %226, %cst_156 {dimension_numbers = #tpu.dot_dimension_numbers<[1], [0], [0], [1], [0, 0, 1, 1], [], []>} : vector<2x64xbf16>, vector<64x64xbf16>, vector<2x64xf32> -> vector<2x64xf32>
    %c56_157 = arith.constant 56 : index
    %c0_158 = arith.constant 0 : index
    %228 = vector.load %arg5[%c56_157, %c0_158] : memref<112x128xf32, #tpu.memory_space<vmem>>, vector<1x64xf32>
    %229 = vector.broadcast %228 : vector<1x64xf32> to vector<2x64xf32>
    %230 = arith.addf %227, %229 : vector<2x64xf32>
    %231 = arith.mulf %230, %30 : vector<2x64xf32>
    %232 = arith.maximumf %214, %231 : vector<2x64xf32>
    %c6 = arith.constant 6 : index
    %c0_159 = arith.constant 0 : index
    %c0_160 = arith.constant 0 : index
    %233 = vector.load %arg3[%c6, %c0_159, %c0_160] : memref<7x2x8xf32, #tpu.memory_space<vmem>>, vector<1x2x8xf32>
    %234 = vector.shape_cast %233 : vector<1x2x8xf32> to vector<2x8xf32>
    %235 = arith.truncf %234 : vector<2x8xf32> to vector<2x8xbf16>
    %c288_161 = arith.constant 288 : index
    %c0_162 = arith.constant 0 : index
    %236 = vector.load %arg4[%c288_161, %c0_162] : memref<1008x128xbf16, #tpu.memory_space<vmem>>, vector<8x64xbf16>
    %cst_163 = arith.constant dense<0.000000e+00> : vector<2x64xf32>
    %237 = tpu.matmul %235, %236, %cst_163 {dimension_numbers = #tpu.dot_dimension_numbers<[1], [0], [0], [1], [0, 0, 1, 1], [], []>} : vector<2x8xbf16>, vector<8x64xbf16>, vector<2x64xf32> -> vector<2x64xf32>
    %c48_164 = arith.constant 48 : index
    %c0_165 = arith.constant 0 : index
    %238 = vector.load %arg5[%c48_164, %c0_165] : memref<112x128xf32, #tpu.memory_space<vmem>>, vector<1x64xf32>
    %239 = vector.broadcast %238 : vector<1x64xf32> to vector<2x64xf32>
    %240 = arith.addf %237, %239 : vector<2x64xf32>
    %cst_166 = arith.constant 0.000000e+00 : f32
    %241 = vector.broadcast %cst_166 : f32 to vector<2x64xf32>
    %242 = arith.maximumf %240, %241 : vector<2x64xf32>
    %243 = arith.truncf %242 : vector<2x64xf32> to vector<2x64xbf16>
    %c304_167 = arith.constant 304 : index
    %c0_168 = arith.constant 0 : index
    %244 = vector.load %arg4[%c304_167, %c0_168] : memref<1008x128xbf16, #tpu.memory_space<vmem>>, vector<64x64xbf16>
    %cst_169 = arith.constant dense<0.000000e+00> : vector<2x64xf32>
    %245 = tpu.matmul %243, %244, %cst_169 {dimension_numbers = #tpu.dot_dimension_numbers<[1], [0], [0], [1], [0, 0, 1, 1], [], []>} : vector<2x64xbf16>, vector<64x64xbf16>, vector<2x64xf32> -> vector<2x64xf32>
    %c56_170 = arith.constant 56 : index
    %c0_171 = arith.constant 0 : index
    %246 = vector.load %arg5[%c56_170, %c0_171] : memref<112x128xf32, #tpu.memory_space<vmem>>, vector<1x64xf32>
    %247 = vector.broadcast %246 : vector<1x64xf32> to vector<2x64xf32>
    %248 = arith.addf %245, %247 : vector<2x64xf32>
    %249 = arith.mulf %248, %30 : vector<2x64xf32>
    %250 = arith.maximumf %232, %249 : vector<2x64xf32>
    %c528 = arith.constant 528 : index
    %c0_172 = arith.constant 0 : index
    %251 = vector.load %arg4[%c528, %c0_172] : memref<1008x128xbf16, #tpu.memory_space<vmem>>, vector<32x64xbf16>
    %cst_173 = arith.constant dense<0.000000e+00> : vector<2x64xf32>
    %252 = tpu.matmul %15, %251, %cst_173 {dimension_numbers = #tpu.dot_dimension_numbers<[1], [0], [0], [1], [0, 0, 1, 1], [], []>} : vector<2x32xbf16>, vector<32x64xbf16>, vector<2x64xf32> -> vector<2x64xf32>
    %253 = arith.truncf %125 : vector<2x64xf32> to vector<2x64xbf16>
    %c560 = arith.constant 560 : index
    %c0_174 = arith.constant 0 : index
    %254 = vector.load %arg4[%c560, %c0_174] : memref<1008x128xbf16, #tpu.memory_space<vmem>>, vector<64x64xbf16>
    %cst_175 = arith.constant dense<0.000000e+00> : vector<2x64xf32>
    %255 = tpu.matmul %253, %254, %cst_175 {dimension_numbers = #tpu.dot_dimension_numbers<[1], [0], [0], [1], [0, 0, 1, 1], [], []>} : vector<2x64xbf16>, vector<64x64xbf16>, vector<2x64xf32> -> vector<2x64xf32>
    %256 = arith.addf %252, %255 : vector<2x64xf32>
    %257 = arith.truncf %250 : vector<2x64xf32> to vector<2x64xbf16>
    %c624 = arith.constant 624 : index
    %c0_176 = arith.constant 0 : index
    %258 = vector.load %arg4[%c624, %c0_176] : memref<1008x128xbf16, #tpu.memory_space<vmem>>, vector<64x64xbf16>
    %cst_177 = arith.constant dense<0.000000e+00> : vector<2x64xf32>
    %259 = tpu.matmul %257, %258, %cst_177 {dimension_numbers = #tpu.dot_dimension_numbers<[1], [0], [0], [1], [0, 0, 1, 1], [], []>} : vector<2x64xbf16>, vector<64x64xbf16>, vector<2x64xf32> -> vector<2x64xf32>
    %260 = arith.addf %256, %259 : vector<2x64xf32>
    %c104 = arith.constant 104 : index
    %c0_178 = arith.constant 0 : index
    %261 = vector.load %arg5[%c104, %c0_178] : memref<112x128xf32, #tpu.memory_space<vmem>>, vector<4x64xf32>
    %262 = vector.extract_strided_slice %261 {offsets = [0, 0], sizes = [1, 64], strides = [1, 1]} : vector<4x64xf32> to vector<1x64xf32>
    %263 = vector.broadcast %262 : vector<1x64xf32> to vector<2x64xf32>
    %264 = arith.addf %260, %263 : vector<2x64xf32>
    %cst_179 = arith.constant 0.000000e+00 : f32
    %265 = vector.broadcast %cst_179 : f32 to vector<2x64xf32>
    %266 = arith.maximumf %264, %265 : vector<2x64xf32>
    %267 = arith.truncf %266 : vector<2x64xf32> to vector<2x64xbf16>
    %c688 = arith.constant 688 : index
    %c0_180 = arith.constant 0 : index
    %268 = vector.load %arg4[%c688, %c0_180] : memref<1008x128xbf16, #tpu.memory_space<vmem>>, vector<64x128xbf16>
    %cst_181 = arith.constant dense<0.000000e+00> : vector<2x128xf32>
    %269 = tpu.matmul %267, %268, %cst_181 {dimension_numbers = #tpu.dot_dimension_numbers<[1], [0], [0], [1], [0, 0, 1, 1], [], []>} : vector<2x64xbf16>, vector<64x128xbf16>, vector<2x128xf32> -> vector<2x128xf32>
    %c80 = arith.constant 80 : index
    %c0_182 = arith.constant 0 : index
    %270 = vector.load %arg5[%c80, %c0_182] : memref<112x128xf32, #tpu.memory_space<vmem>>, vector<1x128xf32>
    %271 = vector.broadcast %270 : vector<1x128xf32> to vector<2x128xf32>
    %272 = arith.addf %269, %271 : vector<2x128xf32>
    %273 = arith.truncf %272 : vector<2x128xf32> to vector<2x128xbf16>
    %c752 = arith.constant 752 : index
    %c0_183 = arith.constant 0 : index
    %274 = vector.load %arg4[%c752, %c0_183] : memref<1008x128xbf16, #tpu.memory_space<vmem>>, vector<128x128xbf16>
    %cst_184 = arith.constant dense<0.000000e+00> : vector<2x128xf32>
    %275 = tpu.matmul %273, %274, %cst_184 {dimension_numbers = #tpu.dot_dimension_numbers<[1], [0], [0], [1], [0, 0, 1, 1], [], []>} : vector<2x128xbf16>, vector<128x128xbf16>, vector<2x128xf32> -> vector<2x128xf32>
    %c88 = arith.constant 88 : index
    %c0_185 = arith.constant 0 : index
    %276 = vector.load %arg5[%c88, %c0_185] : memref<112x128xf32, #tpu.memory_space<vmem>>, vector<1x128xf32>
    %277 = vector.broadcast %276 : vector<1x128xf32> to vector<2x128xf32>
    %278 = arith.addf %275, %277 : vector<2x128xf32>
    %cst_186 = arith.constant 0.000000e+00 : f32
    %279 = vector.broadcast %cst_186 : f32 to vector<2x128xf32>
    %280 = arith.maximumf %278, %279 : vector<2x128xf32>
    %281 = arith.truncf %280 : vector<2x128xf32> to vector<2x128xbf16>
    %c880 = arith.constant 880 : index
    %c0_187 = arith.constant 0 : index
    %282 = vector.load %arg4[%c880, %c0_187] : memref<1008x128xbf16, #tpu.memory_space<vmem>>, vector<128x128xbf16>
    %cst_188 = arith.constant dense<0.000000e+00> : vector<2x128xf32>
    %283 = tpu.matmul %281, %282, %cst_188 {dimension_numbers = #tpu.dot_dimension_numbers<[1], [0], [0], [1], [0, 0, 1, 1], [], []>} : vector<2x128xbf16>, vector<128x128xbf16>, vector<2x128xf32> -> vector<2x128xf32>
    %c96_189 = arith.constant 96 : index
    %c0_190 = arith.constant 0 : index
    %284 = vector.load %arg5[%c96_189, %c0_190] : memref<112x128xf32, #tpu.memory_space<vmem>>, vector<1x128xf32>
    %285 = vector.broadcast %284 : vector<1x128xf32> to vector<2x128xf32>
    %286 = arith.addf %283, %285 : vector<2x128xf32>
    %287 = arith.truncf %286 : vector<2x128xf32> to vector<2x128xbf16>
    %c0_191 = arith.constant 0 : index
    %c0_192 = arith.constant 0 : index
    %c0_193 = arith.constant 0 : index
    %288 = vector.load %arg6[%c0_191, %c0_192, %c0_193] : memref<4x2x128xbf16, #tpu.memory_space<vmem>>, vector<1x2x128xbf16>
    %289 = vector.shape_cast %288 : vector<1x2x128xbf16> to vector<2x128xbf16>
    %290 = vector.shape_cast %287 : vector<2x128xbf16> to vector<1x2x128xbf16>
    tpu.vector_store %arg6[%c0_191, %c0_192, %c0_193], %290 {strides = array<i32>} : memref<4x2x128xbf16, #tpu.memory_space<vmem>>, vector<1x2x128xbf16>,
    %291 = vector.extract_strided_slice %261 {offsets = [1, 0], sizes = [1, 64], strides = [1, 1]} : vector<4x64xf32> to vector<1x64xf32>
    %292 = vector.broadcast %291 : vector<1x64xf32> to vector<2x64xf32>
    %293 = arith.addf %260, %292 : vector<2x64xf32>
    %cst_194 = arith.constant 0.000000e+00 : f32
    %294 = vector.broadcast %cst_194 : f32 to vector<2x64xf32>
    %295 = arith.maximumf %293, %294 : vector<2x64xf32>
    %296 = arith.truncf %295 : vector<2x64xf32> to vector<2x64xbf16>
    %c688_195 = arith.constant 688 : index
    %c0_196 = arith.constant 0 : index
    %297 = vector.load %arg4[%c688_195, %c0_196] : memref<1008x128xbf16, #tpu.memory_space<vmem>>, vector<64x128xbf16>
    %cst_197 = arith.constant dense<0.000000e+00> : vector<2x128xf32>
    %298 = tpu.matmul %296, %297, %cst_197 {dimension_numbers = #tpu.dot_dimension_numbers<[1], [0], [0], [1], [0, 0, 1, 1], [], []>} : vector<2x64xbf16>, vector<64x128xbf16>, vector<2x128xf32> -> vector<2x128xf32>
    %c80_198 = arith.constant 80 : index
    %c0_199 = arith.constant 0 : index
    %299 = vector.load %arg5[%c80_198, %c0_199] : memref<112x128xf32, #tpu.memory_space<vmem>>, vector<1x128xf32>
    %300 = vector.broadcast %299 : vector<1x128xf32> to vector<2x128xf32>
    %301 = arith.addf %298, %300 : vector<2x128xf32>
    %302 = arith.truncf %301 : vector<2x128xf32> to vector<2x128xbf16>
    %c752_200 = arith.constant 752 : index
    %c0_201 = arith.constant 0 : index
    %303 = vector.load %arg4[%c752_200, %c0_201] : memref<1008x128xbf16, #tpu.memory_space<vmem>>, vector<128x128xbf16>
    %cst_202 = arith.constant dense<0.000000e+00> : vector<2x128xf32>
    %304 = tpu.matmul %302, %303, %cst_202 {dimension_numbers = #tpu.dot_dimension_numbers<[1], [0], [0], [1], [0, 0, 1, 1], [], []>} : vector<2x128xbf16>, vector<128x128xbf16>, vector<2x128xf32> -> vector<2x128xf32>
    %c88_203 = arith.constant 88 : index
    %c0_204 = arith.constant 0 : index
    %305 = vector.load %arg5[%c88_203, %c0_204] : memref<112x128xf32, #tpu.memory_space<vmem>>, vector<1x128xf32>
    %306 = vector.broadcast %305 : vector<1x128xf32> to vector<2x128xf32>
    %307 = arith.addf %304, %306 : vector<2x128xf32>
    %cst_205 = arith.constant 0.000000e+00 : f32
    %308 = vector.broadcast %cst_205 : f32 to vector<2x128xf32>
    %309 = arith.maximumf %307, %308 : vector<2x128xf32>
    %310 = arith.truncf %309 : vector<2x128xf32> to vector<2x128xbf16>
    %c880_206 = arith.constant 880 : index
    %c0_207 = arith.constant 0 : index
    %311 = vector.load %arg4[%c880_206, %c0_207] : memref<1008x128xbf16, #tpu.memory_space<vmem>>, vector<128x128xbf16>
    %cst_208 = arith.constant dense<0.000000e+00> : vector<2x128xf32>
    %312 = tpu.matmul %310, %311, %cst_208 {dimension_numbers = #tpu.dot_dimension_numbers<[1], [0], [0], [1], [0, 0, 1, 1], [], []>} : vector<2x128xbf16>, vector<128x128xbf16>, vector<2x128xf32> -> vector<2x128xf32>
    %c96_209 = arith.constant 96 : index
    %c0_210 = arith.constant 0 : index
    %313 = vector.load %arg5[%c96_209, %c0_210] : memref<112x128xf32, #tpu.memory_space<vmem>>, vector<1x128xf32>
    %314 = vector.broadcast %313 : vector<1x128xf32> to vector<2x128xf32>
    %315 = arith.addf %312, %314 : vector<2x128xf32>
    %316 = arith.truncf %315 : vector<2x128xf32> to vector<2x128xbf16>
    %c1_211 = arith.constant 1 : index
    %c0_212 = arith.constant 0 : index
    %c0_213 = arith.constant 0 : index
    %317 = vector.load %arg6[%c1_211, %c0_212, %c0_213] : memref<4x2x128xbf16, #tpu.memory_space<vmem>>, vector<1x2x128xbf16>
    %318 = vector.shape_cast %317 : vector<1x2x128xbf16> to vector<2x128xbf16>
    %319 = vector.shape_cast %316 : vector<2x128xbf16> to vector<1x2x128xbf16>
    tpu.vector_store %arg6[%c1_211, %c0_212, %c0_213], %319 {strides = array<i32>} : memref<4x2x128xbf16, #tpu.memory_space<vmem>>, vector<1x2x128xbf16>,
    %320 = vector.extract_strided_slice %261 {offsets = [2, 0], sizes = [1, 64], strides = [1, 1]} : vector<4x64xf32> to vector<1x64xf32>
    %321 = vector.broadcast %320 : vector<1x64xf32> to vector<2x64xf32>
    %322 = arith.addf %260, %321 : vector<2x64xf32>
    %cst_214 = arith.constant 0.000000e+00 : f32
    %323 = vector.broadcast %cst_214 : f32 to vector<2x64xf32>
    %324 = arith.maximumf %322, %323 : vector<2x64xf32>
    %325 = arith.truncf %324 : vector<2x64xf32> to vector<2x64xbf16>
    %c688_215 = arith.constant 688 : index
    %c0_216 = arith.constant 0 : index
    %326 = vector.load %arg4[%c688_215, %c0_216] : memref<1008x128xbf16, #tpu.memory_space<vmem>>, vector<64x128xbf16>
    %cst_217 = arith.constant dense<0.000000e+00> : vector<2x128xf32>
    %327 = tpu.matmul %325, %326, %cst_217 {dimension_numbers = #tpu.dot_dimension_numbers<[1], [0], [0], [1], [0, 0, 1, 1], [], []>} : vector<2x64xbf16>, vector<64x128xbf16>, vector<2x128xf32> -> vector<2x128xf32>
    %c80_218 = arith.constant 80 : index
    %c0_219 = arith.constant 0 : index
    %328 = vector.load %arg5[%c80_218, %c0_219] : memref<112x128xf32, #tpu.memory_space<vmem>>, vector<1x128xf32>
    %329 = vector.broadcast %328 : vector<1x128xf32> to vector<2x128xf32>
    %330 = arith.addf %327, %329 : vector<2x128xf32>
    %331 = arith.truncf %330 : vector<2x128xf32> to vector<2x128xbf16>
    %c752_220 = arith.constant 752 : index
    %c0_221 = arith.constant 0 : index
    %332 = vector.load %arg4[%c752_220, %c0_221] : memref<1008x128xbf16, #tpu.memory_space<vmem>>, vector<128x128xbf16>
    %cst_222 = arith.constant dense<0.000000e+00> : vector<2x128xf32>
    %333 = tpu.matmul %331, %332, %cst_222 {dimension_numbers = #tpu.dot_dimension_numbers<[1], [0], [0], [1], [0, 0, 1, 1], [], []>} : vector<2x128xbf16>, vector<128x128xbf16>, vector<2x128xf32> -> vector<2x128xf32>
    %c88_223 = arith.constant 88 : index
    %c0_224 = arith.constant 0 : index
    %334 = vector.load %arg5[%c88_223, %c0_224] : memref<112x128xf32, #tpu.memory_space<vmem>>, vector<1x128xf32>
    %335 = vector.broadcast %334 : vector<1x128xf32> to vector<2x128xf32>
    %336 = arith.addf %333, %335 : vector<2x128xf32>
    %cst_225 = arith.constant 0.000000e+00 : f32
    %337 = vector.broadcast %cst_225 : f32 to vector<2x128xf32>
    %338 = arith.maximumf %336, %337 : vector<2x128xf32>
    %339 = arith.truncf %338 : vector<2x128xf32> to vector<2x128xbf16>
    %c880_226 = arith.constant 880 : index
    %c0_227 = arith.constant 0 : index
    %340 = vector.load %arg4[%c880_226, %c0_227] : memref<1008x128xbf16, #tpu.memory_space<vmem>>, vector<128x128xbf16>
    %cst_228 = arith.constant dense<0.000000e+00> : vector<2x128xf32>
    %341 = tpu.matmul %339, %340, %cst_228 {dimension_numbers = #tpu.dot_dimension_numbers<[1], [0], [0], [1], [0, 0, 1, 1], [], []>} : vector<2x128xbf16>, vector<128x128xbf16>, vector<2x128xf32> -> vector<2x128xf32>
    %c96_229 = arith.constant 96 : index
    %c0_230 = arith.constant 0 : index
    %342 = vector.load %arg5[%c96_229, %c0_230] : memref<112x128xf32, #tpu.memory_space<vmem>>, vector<1x128xf32>
    %343 = vector.broadcast %342 : vector<1x128xf32> to vector<2x128xf32>
    %344 = arith.addf %341, %343 : vector<2x128xf32>
    %345 = arith.truncf %344 : vector<2x128xf32> to vector<2x128xbf16>
    %c2_231 = arith.constant 2 : index
    %c0_232 = arith.constant 0 : index
    %c0_233 = arith.constant 0 : index
    %346 = vector.load %arg6[%c2_231, %c0_232, %c0_233] : memref<4x2x128xbf16, #tpu.memory_space<vmem>>, vector<1x2x128xbf16>
    %347 = vector.shape_cast %346 : vector<1x2x128xbf16> to vector<2x128xbf16>
    %348 = vector.shape_cast %345 : vector<2x128xbf16> to vector<1x2x128xbf16>
    tpu.vector_store %arg6[%c2_231, %c0_232, %c0_233], %348 {strides = array<i32>} : memref<4x2x128xbf16, #tpu.memory_space<vmem>>, vector<1x2x128xbf16>,
    %349 = vector.extract_strided_slice %261 {offsets = [3, 0], sizes = [1, 64], strides = [1, 1]} : vector<4x64xf32> to vector<1x64xf32>
    %350 = vector.broadcast %349 : vector<1x64xf32> to vector<2x64xf32>
    %351 = arith.addf %260, %350 : vector<2x64xf32>
    %cst_234 = arith.constant 0.000000e+00 : f32
    %352 = vector.broadcast %cst_234 : f32 to vector<2x64xf32>
    %353 = arith.maximumf %351, %352 : vector<2x64xf32>
    %354 = arith.truncf %353 : vector<2x64xf32> to vector<2x64xbf16>
    %c688_235 = arith.constant 688 : index
    %c0_236 = arith.constant 0 : index
    %355 = vector.load %arg4[%c688_235, %c0_236] : memref<1008x128xbf16, #tpu.memory_space<vmem>>, vector<64x128xbf16>
    %cst_237 = arith.constant dense<0.000000e+00> : vector<2x128xf32>
    %356 = tpu.matmul %354, %355, %cst_237 {dimension_numbers = #tpu.dot_dimension_numbers<[1], [0], [0], [1], [0, 0, 1, 1], [], []>} : vector<2x64xbf16>, vector<64x128xbf16>, vector<2x128xf32> -> vector<2x128xf32>
    %c80_238 = arith.constant 80 : index
    %c0_239 = arith.constant 0 : index
    %357 = vector.load %arg5[%c80_238, %c0_239] : memref<112x128xf32, #tpu.memory_space<vmem>>, vector<1x128xf32>
    %358 = vector.broadcast %357 : vector<1x128xf32> to vector<2x128xf32>
    %359 = arith.addf %356, %358 : vector<2x128xf32>
    %360 = arith.truncf %359 : vector<2x128xf32> to vector<2x128xbf16>
    %c752_240 = arith.constant 752 : index
    %c0_241 = arith.constant 0 : index
    %361 = vector.load %arg4[%c752_240, %c0_241] : memref<1008x128xbf16, #tpu.memory_space<vmem>>, vector<128x128xbf16>
    %cst_242 = arith.constant dense<0.000000e+00> : vector<2x128xf32>
    %362 = tpu.matmul %360, %361, %cst_242 {dimension_numbers = #tpu.dot_dimension_numbers<[1], [0], [0], [1], [0, 0, 1, 1], [], []>} : vector<2x128xbf16>, vector<128x128xbf16>, vector<2x128xf32> -> vector<2x128xf32>
    %c88_243 = arith.constant 88 : index
    %c0_244 = arith.constant 0 : index
    %363 = vector.load %arg5[%c88_243, %c0_244] : memref<112x128xf32, #tpu.memory_space<vmem>>, vector<1x128xf32>
    %364 = vector.broadcast %363 : vector<1x128xf32> to vector<2x128xf32>
    %365 = arith.addf %362, %364 : vector<2x128xf32>
    %cst_245 = arith.constant 0.000000e+00 : f32
    %366 = vector.broadcast %cst_245 : f32 to vector<2x128xf32>
    %367 = arith.maximumf %365, %366 : vector<2x128xf32>
    %368 = arith.truncf %367 : vector<2x128xf32> to vector<2x128xbf16>
    %c880_246 = arith.constant 880 : index
    %c0_247 = arith.constant 0 : index
    %369 = vector.load %arg4[%c880_246, %c0_247] : memref<1008x128xbf16, #tpu.memory_space<vmem>>, vector<128x128xbf16>
    %cst_248 = arith.constant dense<0.000000e+00> : vector<2x128xf32>
    %370 = tpu.matmul %368, %369, %cst_248 {dimension_numbers = #tpu.dot_dimension_numbers<[1], [0], [0], [1], [0, 0, 1, 1], [], []>} : vector<2x128xbf16>, vector<128x128xbf16>, vector<2x128xf32> -> vector<2x128xf32>
    %c96_249 = arith.constant 96 : index
    %c0_250 = arith.constant 0 : index
    %371 = vector.load %arg5[%c96_249, %c0_250] : memref<112x128xf32, #tpu.memory_space<vmem>>, vector<1x128xf32>
    %372 = vector.broadcast %371 : vector<1x128xf32> to vector<2x128xf32>
    %373 = arith.addf %370, %372 : vector<2x128xf32>
    %374 = arith.truncf %373 : vector<2x128xf32> to vector<2x128xbf16>
    %c3_251 = arith.constant 3 : index
    %c0_252 = arith.constant 0 : index
    %c0_253 = arith.constant 0 : index
    %375 = vector.load %arg6[%c3_251, %c0_252, %c0_253] : memref<4x2x128xbf16, #tpu.memory_space<vmem>>, vector<1x2x128xbf16>
    %376 = vector.shape_cast %375 : vector<1x2x128xbf16> to vector<2x128xbf16>
    %377 = vector.shape_cast %374 : vector<2x128xbf16> to vector<1x2x128xbf16>
    tpu.vector_store %arg6[%c3_251, %c0_252, %c0_253], %377 {strides = array<i32>} : memref<4x2x128xbf16, #tpu.memory_space<vmem>>, vector<1x2x128xbf16>,
    return
  }
  func.func @transform_0(%arg0: i32) -> (i32, i32) {
    %c0_i32 = arith.constant 0 : i32
    %c0_i32_0 = arith.constant 0 : i32
    return %arg0, %c0_i32 : i32, i32
  }
  func.func @transform_1(%arg0: i32) -> (i32, i32, i32) {
    %c0_i32 = arith.constant 0 : i32
    %c0_i32_0 = arith.constant 0 : i32
    %c0_i32_1 = arith.constant 0 : i32
    return %c0_i32, %arg0, %c0_i32_0 : i32, i32, i32
  }
  func.func @transform_2(%arg0: i32) -> (i32, i32, i32) {
    %c0_i32 = arith.constant 0 : i32
    %c0_i32_0 = arith.constant 0 : i32
    %c0_i32_1 = arith.constant 0 : i32
    return %c0_i32, %arg0, %c0_i32_0 : i32, i32, i32
  }
  func.func @transform_3(%arg0: i32) -> (i32, i32) {
    %c0_i32 = arith.constant 0 : i32
    %c0_i32_0 = arith.constant 0 : i32
    %c0_i32_1 = arith.constant 0 : i32
    return %c0_i32, %c0_i32_0 : i32, i32
  }
  func.func @transform_4(%arg0: i32) -> (i32, i32) {
    %c0_i32 = arith.constant 0 : i32
    %c0_i32_0 = arith.constant 0 : i32
    %c0_i32_1 = arith.constant 0 : i32
    return %c0_i32, %c0_i32_0 : i32, i32
  }
  func.func @transform_5(%arg0: i32) -> (i32, i32, i32) {
    %c0_i32 = arith.constant 0 : i32
    %c0_i32_0 = arith.constant 0 : i32
    %c0_i32_1 = arith.constant 0 : i32
    return %c0_i32, %arg0, %c0_i32_0 : i32, i32, i32
  }
}

</mosaic_0001>

<llo_original>
// kernel: forward.1
$region0: #{forward.1}
  #allocation0 [shape = 'u32[]', space=smem, size = 0x4, offset = 0x4, fixed_abs, tag = 'smem constant byte address 0x4 - core index']
  #allocation1 [shape = 'u32[144,128]{1,0:T(1,128)}', space=vmem, size = 0x12000, scoped, tag = 'internal scratch']
  %s0 = inlined_call_operand.vmem [shape: f32[2,20], index: 0, kind: input, shape index: {}]
  %s1 = inlined_call_operand.vmem [shape: f32[3,2,24], index: 1, kind: input, shape index: {}]
  %s2 = inlined_call_operand.vmem [shape: f32[7,2,8], index: 2, kind: input, shape index: {}]
  %s3 = inlined_call_operand.hbm [shape: bf16[1008,128], index: 3, kind: input, shape index: {}]
  %s4 = inlined_call_operand.hbm [shape: f32[112,128], index: 4, kind: input, shape index: {}]
  %s5 = inlined_call_operand.vmem [shape: bf16[4,2,128], index: 5, kind: output, shape index: {}]
  %s6 = sld [smem:[#allocation0]]
  $region38: #{forward.1} parent=0
    _
  %s8 = ssub.s32 1, %s6
  %s9 = scalar_select 0, %s8, %s6
  $region1: #{forward.1} parent=0
    #allocation2 [shape = 'u8[258048]{0}', space=vmem, size = 0x3f000, scoped, tag = 'input window, operand 3, single buffered']
    #allocation3 [shape = 's32[1]{0}', space=sflag, size = 0x4, scoped, tag = 'scoped memory for forward.1']
    #allocation4 [shape = 'u8[57344]{0}', space=vmem, size = 0xe000, scoped, tag = 'input window, operand 4, single buffered']
    #allocation5 [shape = 's32[1]{0}', space=sflag, size = 0x4, scoped, tag = 'scoped memory for forward.1']
    %10 = vsyncpa [#allocation3], 0
    %11 = vsyncpa [#allocation5], 0
    // Predicated region
    $region2: #{forward.1} parent=1 // pred_check
      _
    $region3: #{forward.1} parent=1 // pred_check_branch
      %13 = sbr.rel (0) target = $region5
    $region4: #{forward.1} parent=1 // pred_region
      _
    $region5: #{forward.1} parent=1 // pred_fallthru
      _
    // Predicated region
    $region6: #{forward.1} parent=1 // pred_check
      _
    $region7: #{forward.1} parent=1 // pred_check_branch
      %15 = sbr.rel (0) target = $region9
    $region8: #{forward.1} parent=1 // pred_region
      _
    $region9: #{forward.1} parent=1 // pred_fallthru
      _
    // Predicated region
    $region10: #{forward.1} parent=1 // pred_check
      _
    $region11: #{forward.1} parent=1 // pred_check_branch
      %17 = sbr.rel (0) target = $region13
    $region12: #{forward.1} parent=1 // pred_region
      _
    $region13: #{forward.1} parent=1 // pred_fallthru
      _
    // Predicated region
    $region14: #{forward.1} parent=1 // pred_check
      _
    $region15: #{forward.1} parent=1 // pred_check_branch
      %19 = sbr.rel (0) target = $region17
    $region16: #{forward.1} parent=1 // pred_region
      %s21 = ssub.s32 8064, 8064
      %22 = vsyncadd [#allocation3], %s21
      %s23 = sshll.u32 [#allocation2], 4
      %s24 = int_to_ptr.vmem [resolvable:$true] %s23
      %29 = dma.hbm_to_vmem [thread:$0]  %s3, 8064, %s24, [#allocation3], 64, 64, 4
    $region17: #{forward.1} parent=1 // pred_fallthru
      _
    // Predicated region
    $region18: #{forward.1} parent=1 // pred_check
      _
    $region19: #{forward.1} parent=1 // pred_check_branch
      %31 = sbr.rel (0) target = $region21
    $region20: #{forward.1} parent=1 // pred_region
      %s33 = ssub.s32 1792, 1792
      %34 = vsyncadd [#allocation5], %s33
      %s35 = sshll.u32 [#allocation4], 4
      %s36 = int_to_ptr.vmem [resolvable:$true] %s35
      %41 = dma.hbm_to_vmem [thread:$0]  %s4, 1792, %s36, [#allocation5], 128, 128, 8
    $region21: #{forward.1} parent=1 // pred_fallthru
      _
    // Predicated region
    $region22: #{forward.1} parent=1 // pred_check
      _
    $region23: #{forward.1} parent=1 // pred_check_branch
      %43 = sbr.rel (0) target = $region25
    $region24: #{forward.1} parent=1 // pred_region
      %44 = dma.done [#allocation3], 8064
    $region25: #{forward.1} parent=1 // pred_fallthru
      _
    // Predicated region
    $region26: #{forward.1} parent=1 // pred_check
      _
    $region27: #{forward.1} parent=1 // pred_check_branch
      %46 = sbr.rel (0) target = $region29
    $region28: #{forward.1} parent=1 // pred_region
      %47 = dma.done [#allocation5], 1792
    $region29: #{forward.1} parent=1 // pred_fallthru
      _
    %v49 = vld [vmem:[%s0] sm:$0x3]
    %v50 = vpack.c.bf16 %v49, %v49
    %v51 = vld [vmem:[#allocation2] sm:$0xf]
    %v52 = vld [vmem:[#allocation2 + $0x4] sm:$0xf]
    %v53 = vld [vmem:[#allocation2 + $0x8] sm:$0x3]
    %v54 = vld [vmem:[#allocation4] sm:$0x1]
    %v55 = vlaneseq
    %v56 = vshrl.u32 %v55, 7
    %v57 = vsub.s32 0, %v56
    %v58 = vrot.slane %v54, %v57
    %v62 = vunpack.c.l.b16 %v51
    %v63 = vunpack.c.l.b16 %v52
    %v64 = vunpack.c.l.b16 %v53
    %v65 = vpack.c.b16 %v63, %v62
    %v66 = vpack.c.b16 %v64, %v64
    %vm68 = vcmask 162816
    %v70 = vsel %vm68, %v50, 0
    %vm72 = vcmask 1041408
    %v74 = vsel %vm72, %v66, 0
    %76 = vmatprep.subr.bf16.mxu0 0
    %77 = vmatpush1.bf16.msra.mxu0 %v65
    %78 = vmatprep.subr.bf16.mxu0 0
    %79 = vmatpush1.bf16.msra.mxu0 %v74
    %80 = vmatprep.subr.bf16.mxu0 0
    %81 = vmatpush1.bf16.msra.mxu0 0
    %82 = vmatprep.subr.bf16.mxu0 0
    %83 = vmatpush1.bf16.msra.mxu0 0
    %84 = vmatprep.subr.bf16.mxu0 0
    %85 = vmatpush1.bf16.msra.mxu0 0
    %86 = vmatprep.subr.bf16.mxu0 0
    %87 = vmatpush1.bf16.msra.mxu0 0
    %88 = vmatprep.subr.bf16.mxu0 0
    %89 = vmatpush1.bf16.msra.mxu0 0
    %90 = vmatprep.subr.bf16.mxu0 0
    %91 = vmatpush1.bf16.msra.mxu0 0
    %92 = vmatprep.subr.bf16.mxu0 0
    %93 = vmatpush1.bf16.msra.mxu0 0
    %94 = vmatprep.subr.bf16.mxu0 0
    %95 = vmatpush1.bf16.msra.mxu0 0
    %96 = vmatprep.subr.bf16.mxu0 0
    %97 = vmatpush1.bf16.msra.mxu0 0
    %98 = vmatprep.subr.bf16.mxu0 0
    %99 = vmatpush1.bf16.msra.mxu0 0
    %100 = vmatprep.subr.bf16.mxu0 0
    %101 = vmatpush1.bf16.msra.mxu0 0
    %102 = vmatprep.subr.bf16.mxu0 0
    %103 = vmatpush1.bf16.msra.mxu0 0
    %104 = vmatprep.subr.bf16.mxu0 0
    %105 = vmatpush1.bf16.msra.mxu0 0
    %106 = vmatprep.subr.bf16.mxu0 0
    %107 = vmatpush1.bf16.msra.mxu0 0
    %108 = vmatprep.mubr.bf16.mxu0 0
    %109 = vmatmul.mubr.bf16.gmra.mrb[0].mxu0 %v70
    %v110 = vpop.f32.mrb[0].mxu0
    %v111 = vadd.f32 %v58, %v110
    %v112 = vpop.f32.mrb[0].mxu0
    %v113 = vpop.f32.mrb[0].mxu0
    %v114 = vpop.f32.mrb[0].mxu0
    %115 = vdwg.mxu0
    %v116 = vmax.f32 %v111, 0.0
    %v117 = vpack.c.bf16 %v116, %v116
    %v118 = vld [vmem:[#allocation2 + $0x10] sm:$0xf]
    %v119 = vld [vmem:[#allocation2 + $0x14] sm:$0xf]
    %v120 = vld [vmem:[#allocation2 + $0x18] sm:$0xf]
    %v121 = vld [vmem:[#allocation2 + $0x1c] sm:$0xf]
    %v122 = vld [vmem:[#allocation2 + $0x20] sm:$0xf]
    %v123 = vld [vmem:[#allocation2 + $0x24] sm:$0xf]
    %v124 = vld [vmem:[#allocation2 + $0x28] sm:$0xf]
    %v125 = vld [vmem:[#allocation2 + $0x2c] sm:$0xf]
    %v126 = vld [vmem:[#allocation4 + $0x8] sm:$0x1]
    %v127 = vlaneseq
    %v128 = vshrl.u32 %v127, 7
    %v129 = vsub.s32 0, %v128
    %v130 = vrot.slane %v126, %v129
    %v139 = vunpack.c.l.b16 %v118
    %v140 = vunpack.c.l.b16 %v119
    %v141 = vunpack.c.l.b16 %v120
    %v142 = vunpack.c.l.b16 %v121
    %v143 = vunpack.c.l.b16 %v122
    %v144 = vunpack.c.l.b16 %v123
    %v145 = vunpack.c.l.b16 %v124
    %v146 = vunpack.c.l.b16 %v125
    %v147 = vpack.c.b16 %v140, %v139
    %v148 = vpack.c.b16 %v142, %v141
    %v149 = vpack.c.b16 %v144, %v143
    %v150 = vpack.c.b16 %v146, %v145
    %vm155 = vcmask 523264
    %v157 = vsel %vm155, %v117, 0
    %159 = vmatprep.subr.bf16.mxu0 0
    %160 = vmatpush1.bf16.msra.mxu0 %v147
    %161 = vmatprep.subr.bf16.mxu0 0
    %162 = vmatpush1.bf16.msra.mxu0 %v148
    %163 = vmatprep.subr.bf16.mxu0 0
    %164 = vmatpush1.bf16.msra.mxu0 %v149
    %165 = vmatprep.subr.bf16.mxu0 0
    %166 = vmatpush1.bf16.msra.mxu0 %v150
    %167 = vmatprep.subr.bf16.mxu0 0
    %168 = vmatpush1.bf16.msra.mxu0 0
    %169 = vmatprep.subr.bf16.mxu0 0
    %170 = vmatpush1.bf16.msra.mxu0 0
    %171 = vmatprep.subr.bf16.mxu0 0
    %172 = vmatpush1.bf16.msra.mxu0 0
    %173 = vmatprep.subr.bf16.mxu0 0
    %174 = vmatpush1.bf16.msra.mxu0 0
    %175 = vmatprep.subr.bf16.mxu0 0
    %176 = vmatpush1.bf16.msra.mxu0 0
    %177 = vmatprep.subr.bf16.mxu0 0
    %178 = vmatpush1.bf16.msra.mxu0 0
    %179 = vmatprep.subr.bf16.mxu0 0
    %180 = vmatpush1.bf16.msra.mxu0 0
    %181 = vmatprep.subr.bf16.mxu0 0
    %182 = vmatpush1.bf16.msra.mxu0 0
    %183 = vmatprep.subr.bf16.mxu0 0
    %184 = vmatpush1.bf16.msra.mxu0 0
    %185 = vmatprep.subr.bf16.mxu0 0
    %186 = vmatpush1.bf16.msra.mxu0 0
    %187 = vmatprep.subr.bf16.mxu0 0
    %188 = vmatpush1.bf16.msra.mxu0 0
    %189 = vmatprep.subr.bf16.mxu0 0
    %190 = vmatpush1.bf16.msra.mxu0 0
    %191 = vmatprep.mubr.bf16.mxu0 0
    %192 = vmatmul.mubr.bf16.gmra.mrb[0].mxu0 %v157
    %v193 = vpop.f32.mrb[0].mxu0
    %v194 = vadd.f32 %v130, %v193
    %v195 = vpop.f32.mrb[0].mxu0
    %v196 = vpop.f32.mrb[0].mxu0
    %v197 = vpop.f32.mrb[0].mxu0
    %198 = vdwg.mxu0
    %v199 = vpack.c.bf16 %v194, %v194
    %v200 = vld [vmem:[#allocation2 + $0xb8] sm:$0xf]
    %v201 = vld [vmem:[#allocation2 + $0xbc] sm:$0xf]
    %v202 = vld [vmem:[#allocation2 + $0xc0] sm:$0xf]
    %v203 = vld [vmem:[#allocation2 + $0xc4] sm:$0xf]
    %v204 = vld [vmem:[#allocation4 + $0x40] sm:$0x1]
    %v205 = vlaneseq
    %v206 = vshrl.u32 %v205, 7
    %v207 = vsub.s32 0, %v206
    %v208 = vrot.slane %v204, %v207
    %v213 = vunpack.c.l.b16 %v200
    %v214 = vunpack.c.l.b16 %v201
    %v215 = vunpack.c.l.b16 %v202
    %v216 = vunpack.c.l.b16 %v203
    %v217 = vpack.c.b16 %v214, %v213
    %v218 = vpack.c.b16 %v216, %v215
    %vm221 = vcmask 261120
    %v223 = vsel %vm221, %v199, 0
    %225 = vmatprep.subr.bf16.mxu0 0
    %226 = vmatpush1.bf16.msra.mxu0 %v217
    %227 = vmatprep.subr.bf16.mxu0 0
    %228 = vmatpush1.bf16.msra.mxu0 %v218
    %229 = vmatprep.subr.bf16.mxu0 0
    %230 = vmatpush1.bf16.msra.mxu0 0
    %231 = vmatprep.subr.bf16.mxu0 0
    %232 = vmatpush1.bf16.msra.mxu0 0
    %233 = vmatprep.subr.bf16.mxu0 0
    %234 = vmatpush1.bf16.msra.mxu0 0
    %235 = vmatprep.subr.bf16.mxu0 0
    %236 = vmatpush1.bf16.msra.mxu0 0
    %237 = vmatprep.subr.bf16.mxu0 0
    %238 = vmatpush1.bf16.msra.mxu0 0
    %239 = vmatprep.subr.bf16.mxu0 0
    %240 = vmatpush1.bf16.msra.mxu0 0
    %241 = vmatprep.subr.bf16.mxu0 0
    %242 = vmatpush1.bf16.msra.mxu0 0
    %243 = vmatprep.subr.bf16.mxu0 0
    %244 = vmatpush1.bf16.msra.mxu0 0
    %245 = vmatprep.subr.bf16.mxu0 0
    %246 = vmatpush1.bf16.msra.mxu0 0
    %247 = vmatprep.subr.bf16.mxu0 0
    %248 = vmatpush1.bf16.msra.mxu0 0
    %249 = vmatprep.subr.bf16.mxu0 0
    %250 = vmatpush1.bf16.msra.mxu0 0
    %251 = vmatprep.subr.bf16.mxu0 0
    %252 = vmatpush1.bf16.msra.mxu0 0
    %253 = vmatprep.subr.bf16.mxu0 0
    %254 = vmatpush1.bf16.msra.mxu0 0
    %255 = vmatprep.subr.bf16.mxu0 0
    %256 = vmatpush1.bf16.msra.mxu0 0
    %257 = vmatprep.mubr.bf16.mxu0 0
    %258 = vmatmul.mubr.bf16.gmra.mrb[0].mxu0 %v223
    %v259 = vpop.f32.mrb[0].mxu0
    %v260 = vadd.f32 %v208, %v259
    %v261 = vpop.f32.mrb[0].mxu0
    %v262 = vpop.f32.mrb[0].mxu0
    %v263 = vpop.f32.mrb[0].mxu0
    %264 = vdwg.mxu0
    %v265 = vmax.f32 %v260, 0.0
    %v266 = vpack.c.bf16 %v265, %v265
    %v267 = vld [vmem:[#allocation2 + $0xc8] sm:$0xf]
    %v268 = vld [vmem:[#allocation2 + $0xcc] sm:$0xf]
    %v269 = vld [vmem:[#allocation2 + $0xd0] sm:$0xf]
    %v270 = vld [vmem:[#allocation2 + $0xd4] sm:$0xf]
    %v271 = vld [vmem:[#allocation2 + $0xd8] sm:$0xf]
    %v272 = vld [vmem:[#allocation2 + $0xdc] sm:$0xf]
    %v273 = vld [vmem:[#allocation2 + $0xe0] sm:$0xf]
    %v274 = vld [vmem:[#allocation2 + $0xe4] sm:$0xf]
    %v275 = vld [vmem:[#allocation2 + $0xe8] sm:$0xf]
    %v276 = vld [vmem:[#allocation2 + $0xec] sm:$0xf]
    %v277 = vld [vmem:[#allocation2 + $0xf0] sm:$0xf]
    %v278 = vld [vmem:[#allocation2 + $0xf4] sm:$0xf]
    %v279 = vld [vmem:[#allocation2 + $0xf8] sm:$0xf]
    %v280 = vld [vmem:[#allocation2 + $0xfc] sm:$0xf]
    %v281 = vld [vmem:[#allocation2 + $0x100] sm:$0xf]
    %v282 = vld [vmem:[#allocation2 + $0x104] sm:$0xf]
    %v283 = vld [vmem:[#allocation4 + $0x48] sm:$0x1]
    %v284 = vlaneseq
    %v285 = vshrl.u32 %v284, 7
    %v286 = vsub.s32 0, %v285
    %v287 = vrot.slane %v283, %v286
    %v304 = vunpack.c.l.b16 %v267
    %v305 = vunpack.c.l.b16 %v268
    %v306 = vunpack.c.l.b16 %v269
    %v307 = vunpack.c.l.b16 %v270
    %v308 = vunpack.c.l.b16 %v271
    %v309 = vunpack.c.l.b16 %v272
    %v310 = vunpack.c.l.b16 %v273
    %v311 = vunpack.c.l.b16 %v274
    %v312 = vunpack.c.l.b16 %v275
    %v313 = vunpack.c.l.b16 %v276
    %v314 = vunpack.c.l.b16 %v277
    %v315 = vunpack.c.l.b16 %v278
    %v316 = vunpack.c.l.b16 %v279
    %v317 = vunpack.c.l.b16 %v280
    %v318 = vunpack.c.l.b16 %v281
    %v319 = vunpack.c.l.b16 %v282
    %v320 = vpack.c.b16 %v305, %v304
    %v321 = vpack.c.b16 %v307, %v306
    %v322 = vpack.c.b16 %v309, %v308
    %v323 = vpack.c.b16 %v311, %v310
    %v324 = vpack.c.b16 %v313, %v312
    %v325 = vpack.c.b16 %v315, %v314
    %v326 = vpack.c.b16 %v317, %v316
    %v327 = vpack.c.b16 %v319, %v318
    %336 = vmatprep.subr.bf16.mxu0 0
    %337 = vmatpush1.bf16.msra.mxu0 %v320
    %338 = vmatprep.subr.bf16.mxu0 0
    %339 = vmatpush1.bf16.msra.mxu0 %v321
    %340 = vmatprep.subr.bf16.mxu0 0
    %341 = vmatpush1.bf16.msra.mxu0 %v322
    %342 = vmatprep.subr.bf16.mxu0 0
    %343 = vmatpush1.bf16.msra.mxu0 %v323
    %344 = vmatprep.subr.bf16.mxu0 0
    %345 = vmatpush1.bf16.msra.mxu0 %v324
    %346 = vmatprep.subr.bf16.mxu0 0
    %347 = vmatpush1.bf16.msra.mxu0 %v325
    %348 = vmatprep.subr.bf16.mxu0 0
    %349 = vmatpush1.bf16.msra.mxu0 %v326
    %350 = vmatprep.subr.bf16.mxu0 0
    %351 = vmatpush1.bf16.msra.mxu0 %v327
    %352 = vmatprep.subr.bf16.mxu0 0
    %353 = vmatpush1.bf16.msra.mxu0 0
    %354 = vmatprep.subr.bf16.mxu0 0
    %355 = vmatpush1.bf16.msra.mxu0 0
    %356 = vmatprep.subr.bf16.mxu0 0
    %357 = vmatpush1.bf16.msra.mxu0 0
    %358 = vmatprep.subr.bf16.mxu0 0
    %359 = vmatpush1.bf16.msra.mxu0 0
    %360 = vmatprep.subr.bf16.mxu0 0
    %361 = vmatpush1.bf16.msra.mxu0 0
    %362 = vmatprep.subr.bf16.mxu0 0
    %363 = vmatpush1.bf16.msra.mxu0 0
    %364 = vmatprep.subr.bf16.mxu0 0
    %365 = vmatpush1.bf16.msra.mxu0 0
    %366 = vmatprep.subr.bf16.mxu0 0
    %367 = vmatpush1.bf16.msra.mxu0 0
    %368 = vmatprep.mubr.bf16.mxu0 0
    %369 = vmatmul.mubr.bf16.gmra.mrb[0].mxu0 %v266
    %v370 = vpop.f32.mrb[0].mxu0
    %v371 = vadd.f32 %v287, %v370
    %v372 = vpop.f32.mrb[0].mxu0
    %v373 = vpop.f32.mrb[0].mxu0
    %v374 = vpop.f32.mrb[0].mxu0
    %375 = vdwg.mxu0
    %v376 = vld [vmem:[%s1] sm:$0x3]
    %v377 = vpack.c.bf16 %v376, %v376
    %v378 = vld [vmem:[#allocation2 + $0x30] sm:$0xf]
    %v379 = vld [vmem:[#allocation2 + $0x34] sm:$0xf]
    %v380 = vld [vmem:[#allocation2 + $0x38] sm:$0xf]
    %v381 = vld [vmem:[#allocation4 + $0x10] sm:$0x1]
    %v382 = vlaneseq
    %v383 = vshrl.u32 %v382, 7
    %v384 = vsub.s32 0, %v383
    %v385 = vrot.slane %v381, %v384
    %v389 = vunpack.c.l.b16 %v378
    %v390 = vunpack.c.l.b16 %v379
    %v391 = vunpack.c.l.b16 %v380
    %v392 = vpack.c.b16 %v390, %v389
    %v393 = vpack.c.b16 %v391, %v391
    %vm395 = vcmask 195584
    %v397 = vsel %vm395, %v377, 0
    %vm399 = vcmask 1043456
    %v401 = vsel %vm399, %v393, 0
    %403 = vmatprep.subr.bf16.mxu0 0
    %404 = vmatpush1.bf16.msra.mxu0 %v392
    %405 = vmatprep.subr.bf16.mxu0 0
    %406 = vmatpush1.bf16.msra.mxu0 %v401
    %407 = vmatprep.subr.bf16.mxu0 0
    %408 = vmatpush1.bf16.msra.mxu0 0
    %409 = vmatprep.subr.bf16.mxu0 0
    %410 = vmatpush1.bf16.msra.mxu0 0
    %411 = vmatprep.subr.bf16.mxu0 0
    %412 = vmatpush1.bf16.msra.mxu0 0
    %413 = vmatprep.subr.bf16.mxu0 0
    %414 = vmatpush1.bf16.msra.mxu0 0
    %415 = vmatprep.subr.bf16.mxu0 0
    %416 = vmatpush1.bf16.msra.mxu0 0
    %417 = vmatprep.subr.bf16.mxu0 0
    %418 = vmatpush1.bf16.msra.mxu0 0
    %419 = vmatprep.subr.bf16.mxu0 0
    %420 = vmatpush1.bf16.msra.mxu0 0
    %421 = vmatprep.subr.bf16.mxu0 0
    %422 = vmatpush1.bf16.msra.mxu0 0
    %423 = vmatprep.subr.bf16.mxu0 0
    %424 = vmatpush1.bf16.msra.mxu0 0
    %425 = vmatprep.subr.bf16.mxu0 0
    %426 = vmatpush1.bf16.msra.mxu0 0
    %427 = vmatprep.subr.bf16.mxu0 0
    %428 = vmatpush1.bf16.msra.mxu0 0
    %429 = vmatprep.subr.bf16.mxu0 0
    %430 = vmatpush1.bf16.msra.mxu0 0
    %431 = vmatprep.subr.bf16.mxu0 0
    %432 = vmatpush1.bf16.msra.mxu0 0
    %433 = vmatprep.subr.bf16.mxu0 0
    %434 = vmatpush1.bf16.msra.mxu0 0
    %435 = vmatprep.mubr.bf16.mxu0 0
    %436 = vmatmul.mubr.bf16.gmra.mrb[0].mxu0 %v397
    %v437 = vpop.f32.mrb[0].mxu0
    %v438 = vadd.f32 %v385, %v437
    %v439 = vpop.f32.mrb[0].mxu0
    %v440 = vpop.f32.mrb[0].mxu0
    %v441 = vpop.f32.mrb[0].mxu0
    %442 = vdwg.mxu0
    %v443 = vmax.f32 %v438, 0.0
    %v444 = vpack.c.bf16 %v443, %v443
    %v445 = vld [vmem:[#allocation2 + $0x40] sm:$0xf]
    %v446 = vld [vmem:[#allocation2 + $0x44] sm:$0xf]
    %v447 = vld [vmem:[#allocation2 + $0x48] sm:$0xf]
    %v448 = vld [vmem:[#allocation2 + $0x4c] sm:$0xf]
    %v449 = vld [vmem:[#allocation2 + $0x50] sm:$0xf]
    %v450 = vld [vmem:[#allocation2 + $0x54] sm:$0xf]
    %v451 = vld [vmem:[#allocation2 + $0x58] sm:$0xf]
    %v452 = vld [vmem:[#allocation2 + $0x5c] sm:$0xf]
    %v453 = vld [vmem:[#allocation4 + $0x18] sm:$0x1]
    %v454 = vlaneseq
    %v455 = vshrl.u32 %v454, 7
    %v456 = vsub.s32 0, %v455
    %v457 = vrot.slane %v453, %v456
    %v466 = vunpack.c.l.b16 %v445
    %v467 = vunpack.c.l.b16 %v446
    %v468 = vunpack.c.l.b16 %v447
    %v469 = vunpack.c.l.b16 %v448
    %v470 = vunpack.c.l.b16 %v449
    %v471 = vunpack.c.l.b16 %v450
    %v472 = vunpack.c.l.b16 %v451
    %v473 = vunpack.c.l.b16 %v452
    %v474 = vpack.c.b16 %v467, %v466
    %v475 = vpack.c.b16 %v469, %v468
    %v476 = vpack.c.b16 %v471, %v470
    %v477 = vpack.c.b16 %v473, %v472
    %v483 = vsel %vm155, %v444, 0
    %485 = vmatprep.subr.bf16.mxu0 0
    %486 = vmatpush1.bf16.msra.mxu0 %v474
    %487 = vmatprep.subr.bf16.mxu0 0
    %488 = vmatpush1.bf16.msra.mxu0 %v475
    %489 = vmatprep.subr.bf16.mxu0 0
    %490 = vmatpush1.bf16.msra.mxu0 %v476
    %491 = vmatprep.subr.bf16.mxu0 0
    %492 = vmatpush1.bf16.msra.mxu0 %v477
    %493 = vmatprep.subr.bf16.mxu0 0
    %494 = vmatpush1.bf16.msra.mxu0 0
    %495 = vmatprep.subr.bf16.mxu0 0
    %496 = vmatpush1.bf16.msra.mxu0 0
    %497 = vmatprep.subr.bf16.mxu0 0
    %498 = vmatpush1.bf16.msra.mxu0 0
    %499 = vmatprep.subr.bf16.mxu0 0
    %500 = vmatpush1.bf16.msra.mxu0 0
    %501 = vmatprep.subr.bf16.mxu0 0
    %502 = vmatpush1.bf16.msra.mxu0 0
    %503 = vmatprep.subr.bf16.mxu0 0
    %504 = vmatpush1.bf16.msra.mxu0 0
    %505 = vmatprep.subr.bf16.mxu0 0
    %506 = vmatpush1.bf16.msra.mxu0 0
    %507 = vmatprep.subr.bf16.mxu0 0
    %508 = vmatpush1.bf16.msra.mxu0 0
    %509 = vmatprep.subr.bf16.mxu0 0
    %510 = vmatpush1.bf16.msra.mxu0 0
    %511 = vmatprep.subr.bf16.mxu0 0
    %512 = vmatpush1.bf16.msra.mxu0 0
    %513 = vmatprep.subr.bf16.mxu0 0
    %514 = vmatpush1.bf16.msra.mxu0 0
    %515 = vmatprep.subr.bf16.mxu0 0
    %516 = vmatpush1.bf16.msra.mxu0 0
    %517 = vmatprep.mubr.bf16.mxu0 0
    %518 = vmatmul.mubr.bf16.gmra.mrb[0].mxu0 %v483
    %v519 = vpop.f32.mrb[0].mxu0
    %v520 = vadd.f32 %v457, %v519
    %v521 = vpop.f32.mrb[0].mxu0
    %v522 = vpop.f32.mrb[0].mxu0
    %v523 = vpop.f32.mrb[0].mxu0
    %524 = vdwg.mxu0
    %v525 = vpack.c.bf16 %v520, %v520
    %v526 = vld [vmem:[#allocation2 + $0x60] sm:$0xf]
    %v527 = vld [vmem:[#allocation2 + $0x64] sm:$0xf]
    %v528 = vld [vmem:[#allocation2 + $0x68] sm:$0xf]
    %v529 = vld [vmem:[#allocation2 + $0x6c] sm:$0xf]
    %v530 = vld [vmem:[#allocation4 + $0x20] sm:$0x1]
    %v531 = vlaneseq
    %v532 = vshrl.u32 %v531, 7
    %v533 = vsub.s32 0, %v532
    %v534 = vrot.slane %v530, %v533
    %v539 = vunpack.c.l.b16 %v526
    %v540 = vunpack.c.l.b16 %v527
    %v541 = vunpack.c.l.b16 %v528
    %v542 = vunpack.c.l.b16 %v529
    %v543 = vpack.c.b16 %v540, %v539
    %v544 = vpack.c.b16 %v542, %v541
    %v548 = vsel %vm221, %v525, 0
    %550 = vmatprep.subr.bf16.mxu0 0
    %551 = vmatpush1.bf16.msra.mxu0 %v543
    %552 = vmatprep.subr.bf16.mxu0 0
    %553 = vmatpush1.bf16.msra.mxu0 %v544
    %554 = vmatprep.subr.bf16.mxu0 0
    %555 = vmatpush1.bf16.msra.mxu0 0
    %556 = vmatprep.subr.bf16.mxu0 0
    %557 = vmatpush1.bf16.msra.mxu0 0
    %558 = vmatprep.subr.bf16.mxu0 0
    %559 = vmatpush1.bf16.msra.mxu0 0
    %560 = vmatprep.subr.bf16.mxu0 0
    %561 = vmatpush1.bf16.msra.mxu0 0
    %562 = vmatprep.subr.bf16.mxu0 0
    %563 = vmatpush1.bf16.msra.mxu0 0
    %564 = vmatprep.subr.bf16.mxu0 0
    %565 = vmatpush1.bf16.msra.mxu0 0
    %566 = vmatprep.subr.bf16.mxu0 0
    %567 = vmatpush1.bf16.msra.mxu0 0
    %568 = vmatprep.subr.bf16.mxu0 0
    %569 = vmatpush1.bf16.msra.mxu0 0
    %570 = vmatprep.subr.bf16.mxu0 0
    %571 = vmatpush1.bf16.msra.mxu0 0
    %572 = vmatprep.subr.bf16.mxu0 0
    %573 = vmatpush1.bf16.msra.mxu0 0
    %574 = vmatprep.subr.bf16.mxu0 0
    %575 = vmatpush1.bf16.msra.mxu0 0
    %576 = vmatprep.subr.bf16.mxu0 0
    %577 = vmatpush1.bf16.msra.mxu0 0
    %578 = vmatprep.subr.bf16.mxu0 0
    %579 = vmatpush1.bf16.msra.mxu0 0
    %580 = vmatprep.subr.bf16.mxu0 0
    %581 = vmatpush1.bf16.msra.mxu0 0
    %582 = vmatprep.mubr.bf16.mxu0 0
    %583 = vmatmul.mubr.bf16.gmra.mrb[0].mxu0 %v548
    %v584 = vpop.f32.mrb[0].mxu0
    %v585 = vadd.f32 %v534, %v584
    %v586 = vpop.f32.mrb[0].mxu0
    %v587 = vpop.f32.mrb[0].mxu0
    %v588 = vpop.f32.mrb[0].mxu0
    %589 = vdwg.mxu0
    %v590 = vmax.f32 %v585, 0.0
    %v591 = vpack.c.bf16 %v590, %v590
    %v592 = vld [vmem:[#allocation2 + $0x70] sm:$0xf]
    %v593 = vld [vmem:[#allocation2 + $0x74] sm:$0xf]
    %v594 = vld [vmem:[#allocation2 + $0x78] sm:$0xf]
    %v595 = vld [vmem:[#allocation2 + $0x7c] sm:$0xf]
    %v596 = vld [vmem:[#allocation2 + $0x80] sm:$0xf]
    %v597 = vld [vmem:[#allocation2 + $0x84] sm:$0xf]
    %v598 = vld [vmem:[#allocation2 + $0x88] sm:$0xf]
    %v599 = vld [vmem:[#allocation2 + $0x8c] sm:$0xf]
    %v600 = vld [vmem:[#allocation4 + $0x28] sm:$0x1]
    %v601 = vlaneseq
    %v602 = vshrl.u32 %v601, 7
    %v603 = vsub.s32 0, %v602
    %v604 = vrot.slane %v600, %v603
    %v613 = vunpack.c.l.b16 %v592
    %v614 = vunpack.c.l.b16 %v593
    %v615 = vunpack.c.l.b16 %v594
    %v616 = vunpack.c.l.b16 %v595
    %v617 = vunpack.c.l.b16 %v596
    %v618 = vunpack.c.l.b16 %v597
    %v619 = vunpack.c.l.b16 %v598
    %v620 = vunpack.c.l.b16 %v599
    %v621 = vpack.c.b16 %v614, %v613
    %v622 = vpack.c.b16 %v616, %v615
    %v623 = vpack.c.b16 %v618, %v617
    %v624 = vpack.c.b16 %v620, %v619
    %v630 = vsel %vm155, %v591, 0
    %632 = vmatprep.subr.bf16.mxu0 0
    %633 = vmatpush1.bf16.msra.mxu0 %v621
    %634 = vmatprep.subr.bf16.mxu0 0
    %635 = vmatpush1.bf16.msra.mxu0 %v622
    %636 = vmatprep.subr.bf16.mxu0 0
    %637 = vmatpush1.bf16.msra.mxu0 %v623
    %638 = vmatprep.subr.bf16.mxu0 0
    %639 = vmatpush1.bf16.msra.mxu0 %v624
    %640 = vmatprep.subr.bf16.mxu0 0
    %641 = vmatpush1.bf16.msra.mxu0 0
    %642 = vmatprep.subr.bf16.mxu0 0
    %643 = vmatpush1.bf16.msra.mxu0 0
    %644 = vmatprep.subr.bf16.mxu0 0
    %645 = vmatpush1.bf16.msra.mxu0 0
    %646 = vmatprep.subr.bf16.mxu0 0
    %647 = vmatpush1.bf16.msra.mxu0 0
    %648 = vmatprep.subr.bf16.mxu0 0
    %649 = vmatpush1.bf16.msra.mxu0 0
    %650 = vmatprep.subr.bf16.mxu0 0
    %651 = vmatpush1.bf16.msra.mxu0 0
    %652 = vmatprep.subr.bf16.mxu0 0
    %653 = vmatpush1.bf16.msra.mxu0 0
    %654 = vmatprep.subr.bf16.mxu0 0
    %655 = vmatpush1.bf16.msra.mxu0 0
    %656 = vmatprep.subr.bf16.mxu0 0
    %657 = vmatpush1.bf16.msra.mxu0 0
    %658 = vmatprep.subr.bf16.mxu0 0
    %659 = vmatpush1.bf16.msra.mxu0 0
    %660 = vmatprep.subr.bf16.mxu0 0
    %661 = vmatpush1.bf16.msra.mxu0 0
    %662 = vmatprep.subr.bf16.mxu0 0
    %663 = vmatpush1.bf16.msra.mxu0 0
    %664 = vmatprep.mubr.bf16.mxu0 0
    %665 = vmatmul.mubr.bf16.gmra.mrb[0].mxu0 %v630
    %v666 = vpop.f32.mrb[0].mxu0
    %v667 = vadd.f32 %v604, %v666
    %v668 = vpop.f32.mrb[0].mxu0
    %v669 = vpop.f32.mrb[0].mxu0
    %v670 = vpop.f32.mrb[0].mxu0
    %671 = vdwg.mxu0
    %v672 = vmul.f32 %v667, %v371
    %s673 = scalar_lea.vmem %s1, 2
    %v674 = vld [vmem:[%s673] sm:$0x3]
    %v675 = vpack.c.bf16 %v674, %v674
    %v677 = vsel %vm395, %v675, 0
    %679 = vmatprep.subr.bf16.mxu0 0
    %680 = vmatpush1.bf16.msra.mxu0 %v392
    %681 = vmatprep.subr.bf16.mxu0 0
    %682 = vmatpush1.bf16.msra.mxu0 %v401
    %683 = vmatprep.subr.bf16.mxu0 0
    %684 = vmatpush1.bf16.msra.mxu0 0
    %685 = vmatprep.subr.bf16.mxu0 0
    %686 = vmatpush1.bf16.msra.mxu0 0
    %687 = vmatprep.subr.bf16.mxu0 0
    %688 = vmatpush1.bf16.msra.mxu0 0
    %689 = vmatprep.subr.bf16.mxu0 0
    %690 = vmatpush1.bf16.msra.mxu0 0
    %691 = vmatprep.subr.bf16.mxu0 0
    %692 = vmatpush1.bf16.msra.mxu0 0
    %693 = vmatprep.subr.bf16.mxu0 0
    %694 = vmatpush1.bf16.msra.mxu0 0
    %695 = vmatprep.subr.bf16.mxu0 0
    %696 = vmatpush1.bf16.msra.mxu0 0
    %697 = vmatprep.subr.bf16.mxu0 0
    %698 = vmatpush1.bf16.msra.mxu0 0
    %699 = vmatprep.subr.bf16.mxu0 0
    %700 = vmatpush1.bf16.msra.mxu0 0
    %701 = vmatprep.subr.bf16.mxu0 0
    %702 = vmatpush1.bf16.msra.mxu0 0
    %703 = vmatprep.subr.bf16.mxu0 0
    %704 = vmatpush1.bf16.msra.mxu0 0
    %705 = vmatprep.subr.bf16.mxu0 0
    %706 = vmatpush1.bf16.msra.mxu0 0
    %707 = vmatprep.subr.bf16.mxu0 0
    %708 = vmatpush1.bf16.msra.mxu0 0
    %709 = vmatprep.subr.bf16.mxu0 0
    %710 = vmatpush1.bf16.msra.mxu0 0
    %711 = vmatprep.mubr.bf16.mxu0 0
    %712 = vmatmul.mubr.bf16.gmra.mrb[0].mxu0 %v677
    %v713 = vpop.f32.mrb[0].mxu0
    %v714 = vadd.f32 %v385, %v713
    %v715 = vpop.f32.mrb[0].mxu0
    %v716 = vpop.f32.mrb[0].mxu0
    %v717 = vpop.f32.mrb[0].mxu0
    %718 = vdwg.mxu0
    %v719 = vmax.f32 %v714, 0.0
    %v720 = vpack.c.bf16 %v719, %v719
    %v722 = vsel %vm155, %v720, 0
    %724 = vmatprep.subr.bf16.mxu0 0
    %725 = vmatpush1.bf16.msra.mxu0 %v474
    %726 = vmatprep.subr.bf16.mxu0 0
    %727 = vmatpush1.bf16.msra.mxu0 %v475
    %728 = vmatprep.subr.bf16.mxu0 0
    %729 = vmatpush1.bf16.msra.mxu0 %v476
    %730 = vmatprep.subr.bf16.mxu0 0
    %731 = vmatpush1.bf16.msra.mxu0 %v477
    %732 = vmatprep.subr.bf16.mxu0 0
    %733 = vmatpush1.bf16.msra.mxu0 0
    %734 = vmatprep.subr.bf16.mxu0 0
    %735 = vmatpush1.bf16.msra.mxu0 0
    %736 = vmatprep.subr.bf16.mxu0 0
    %737 = vmatpush1.bf16.msra.mxu0 0
    %738 = vmatprep.subr.bf16.mxu0 0
    %739 = vmatpush1.bf16.msra.mxu0 0
    %740 = vmatprep.subr.bf16.mxu0 0
    %741 = vmatpush1.bf16.msra.mxu0 0
    %742 = vmatprep.subr.bf16.mxu0 0
    %743 = vmatpush1.bf16.msra.mxu0 0
    %744 = vmatprep.subr.bf16.mxu0 0
    %745 = vmatpush1.bf16.msra.mxu0 0
    %746 = vmatprep.subr.bf16.mxu0 0
    %747 = vmatpush1.bf16.msra.mxu0 0
    %748 = vmatprep.subr.bf16.mxu0 0
    %749 = vmatpush1.bf16.msra.mxu0 0
    %750 = vmatprep.subr.bf16.mxu0 0
    %751 = vmatpush1.bf16.msra.mxu0 0
    %752 = vmatprep.subr.bf16.mxu0 0
    %753 = vmatpush1.bf16.msra.mxu0 0
    %754 = vmatprep.subr.bf16.mxu0 0
    %755 = vmatpush1.bf16.msra.mxu0 0
    %756 = vmatprep.mubr.bf16.mxu0 0
    %757 = vmatmul.mubr.bf16.gmra.mrb[0].mxu0 %v722
    %v758 = vpop.f32.mrb[0].mxu0
    %v759 = vadd.f32 %v457, %v758
    %v760 = vpop.f32.mrb[0].mxu0
    %v761 = vpop.f32.mrb[0].mxu0
    %v762 = vpop.f32.mrb[0].mxu0
    %763 = vdwg.mxu0
    %v764 = vpack.c.bf16 %v759, %v759
    %v766 = vsel %vm221, %v764, 0
    %768 = vmatprep.subr.bf16.mxu0 0
    %769 = vmatpush1.bf16.msra.mxu0 %v543
    %770 = vmatprep.subr.bf16.mxu0 0
    %771 = vmatpush1.bf16.msra.mxu0 %v544
    %772 = vmatprep.subr.bf16.mxu0 0
    %773 = vmatpush1.bf16.msra.mxu0 0
    %774 = vmatprep.subr.bf16.mxu0 0
    %775 = vmatpush1.bf16.msra.mxu0 0
    %776 = vmatprep.subr.bf16.mxu0 0
    %777 = vmatpush1.bf16.msra.mxu0 0
    %778 = vmatprep.subr.bf16.mxu0 0
    %779 = vmatpush1.bf16.msra.mxu0 0
    %780 = vmatprep.subr.bf16.mxu0 0
    %781 = vmatpush1.bf16.msra.mxu0 0
    %782 = vmatprep.subr.bf16.mxu0 0
    %783 = vmatpush1.bf16.msra.mxu0 0
    %784 = vmatprep.subr.bf16.mxu0 0
    %785 = vmatpush1.bf16.msra.mxu0 0
    %786 = vmatprep.subr.bf16.mxu0 0
    %787 = vmatpush1.bf16.msra.mxu0 0
    %788 = vmatprep.subr.bf16.mxu0 0
    %789 = vmatpush1.bf16.msra.mxu0 0
    %790 = vmatprep.subr.bf16.mxu0 0
    %791 = vmatpush1.bf16.msra.mxu0 0
    %792 = vmatprep.subr.bf16.mxu0 0
    %793 = vmatpush1.bf16.msra.mxu0 0
    %794 = vmatprep.subr.bf16.mxu0 0
    %795 = vmatpush1.bf16.msra.mxu0 0
    %796 = vmatprep.subr.bf16.mxu0 0
    %797 = vmatpush1.bf16.msra.mxu0 0
    %798 = vmatprep.subr.bf16.mxu0 0
    %799 = vmatpush1.bf16.msra.mxu0 0
    %800 = vmatprep.mubr.bf16.mxu0 0
    %801 = vmatmul.mubr.bf16.gmra.mrb[0].mxu0 %v766
    %v802 = vpop.f32.mrb[0].mxu0
    %v803 = vadd.f32 %v534, %v802
    %v804 = vpop.f32.mrb[0].mxu0
    %v805 = vpop.f32.mrb[0].mxu0
    %v806 = vpop.f32.mrb[0].mxu0
    %807 = vdwg.mxu0
    %v808 = vmax.f32 %v803, 0.0
    %v809 = vpack.c.bf16 %v808, %v808
    %v811 = vsel %vm155, %v809, 0
    %813 = vmatprep.subr.bf16.mxu0 0
    %814 = vmatpush1.bf16.msra.mxu0 %v621
    %815 = vmatprep.subr.bf16.mxu0 0
    %816 = vmatpush1.bf16.msra.mxu0 %v622
    %817 = vmatprep.subr.bf16.mxu0 0
    %818 = vmatpush1.bf16.msra.mxu0 %v623
    %819 = vmatprep.subr.bf16.mxu0 0
    %820 = vmatpush1.bf16.msra.mxu0 %v624
    %821 = vmatprep.subr.bf16.mxu0 0
    %822 = vmatpush1.bf16.msra.mxu0 0
    %823 = vmatprep.subr.bf16.mxu0 0
    %824 = vmatpush1.bf16.msra.mxu0 0
    %825 = vmatprep.subr.bf16.mxu0 0
    %826 = vmatpush1.bf16.msra.mxu0 0
    %827 = vmatprep.subr.bf16.mxu0 0
    %828 = vmatpush1.bf16.msra.mxu0 0
    %829 = vmatprep.subr.bf16.mxu0 0
    %830 = vmatpush1.bf16.msra.mxu0 0
    %831 = vmatprep.subr.bf16.mxu0 0
    %832 = vmatpush1.bf16.msra.mxu0 0
    %833 = vmatprep.subr.bf16.mxu0 0
    %834 = vmatpush1.bf16.msra.mxu0 0
    %835 = vmatprep.subr.bf16.mxu0 0
    %836 = vmatpush1.bf16.msra.mxu0 0
    %837 = vmatprep.subr.bf16.mxu0 0
    %838 = vmatpush1.bf16.msra.mxu0 0
    %839 = vmatprep.subr.bf16.mxu0 0
    %840 = vmatpush1.bf16.msra.mxu0 0
    %841 = vmatprep.subr.bf16.mxu0 0
    %842 = vmatpush1.bf16.msra.mxu0 0
    %843 = vmatprep.subr.bf16.mxu0 0
    %844 = vmatpush1.bf16.msra.mxu0 0
    %845 = vmatprep.mubr.bf16.mxu0 0
    %846 = vmatmul.mubr.bf16.gmra.mrb[0].mxu0 %v811
    %v847 = vpop.f32.mrb[0].mxu0
    %v848 = vadd.f32 %v604, %v847
    %v849 = vpop.f32.mrb[0].mxu0
    %v850 = vpop.f32.mrb[0].mxu0
    %v851 = vpop.f32.mrb[0].mxu0
    %852 = vdwg.mxu0
    %v853 = vmul.f32 %v848, %v371
    %v854 = vmax.f32 %v672, %v853
    %s855 = scalar_lea.vmem %s1, 4
    %v856 = vld [vmem:[%s855] sm:$0x3]
    %v857 = vpack.c.bf16 %v856, %v856
    %v859 = vsel %vm395, %v857, 0
    %861 = vmatprep.subr.bf16.mxu0 0
    %862 = vmatpush1.bf16.msra.mxu0 %v392
    %863 = vmatprep.subr.bf16.mxu0 0
    %864 = vmatpush1.bf16.msra.mxu0 %v401
    %865 = vmatprep.subr.bf16.mxu0 0
    %866 = vmatpush1.bf16.msra.mxu0 0
    %867 = vmatprep.subr.bf16.mxu0 0
    %868 = vmatpush1.bf16.msra.mxu0 0
    %869 = vmatprep.subr.bf16.mxu0 0
    %870 = vmatpush1.bf16.msra.mxu0 0
    %871 = vmatprep.subr.bf16.mxu0 0
    %872 = vmatpush1.bf16.msra.mxu0 0
    %873 = vmatprep.subr.bf16.mxu0 0
    %874 = vmatpush1.bf16.msra.mxu0 0
    %875 = vmatprep.subr.bf16.mxu0 0
    %876 = vmatpush1.bf16.msra.mxu0 0
    %877 = vmatprep.subr.bf16.mxu0 0
    %878 = vmatpush1.bf16.msra.mxu0 0
    %879 = vmatprep.subr.bf16.mxu0 0
    %880 = vmatpush1.bf16.msra.mxu0 0
    %881 = vmatprep.subr.bf16.mxu0 0
    %882 = vmatpush1.bf16.msra.mxu0 0
    %883 = vmatprep.subr.bf16.mxu0 0
    %884 = vmatpush1.bf16.msra.mxu0 0
    %885 = vmatprep.subr.bf16.mxu0 0
    %886 = vmatpush1.bf16.msra.mxu0 0
    %887 = vmatprep.subr.bf16.mxu0 0
    %888 = vmatpush1.bf16.msra.mxu0 0
    %889 = vmatprep.subr.bf16.mxu0 0
    %890 = vmatpush1.bf16.msra.mxu0 0
    %891 = vmatprep.subr.bf16.mxu0 0
    %892 = vmatpush1.bf16.msra.mxu0 0
    %893 = vmatprep.mubr.bf16.mxu0 0
    %894 = vmatmul.mubr.bf16.gmra.mrb[0].mxu0 %v859
    %v895 = vpop.f32.mrb[0].mxu0
    %v896 = vadd.f32 %v385, %v895
    %v897 = vpop.f32.mrb[0].mxu0
    %v898 = vpop.f32.mrb[0].mxu0
    %v899 = vpop.f32.mrb[0].mxu0
    %900 = vdwg.mxu0
    %v901 = vmax.f32 %v896, 0.0
    %v902 = vpack.c.bf16 %v901, %v901
    %v904 = vsel %vm155, %v902, 0
    %906 = vmatprep.subr.bf16.mxu0 0
    %907 = vmatpush1.bf16.msra.mxu0 %v474
    %908 = vmatprep.subr.bf16.mxu0 0
    %909 = vmatpush1.bf16.msra.mxu0 %v475
    %910 = vmatprep.subr.bf16.mxu0 0
    %911 = vmatpush1.bf16.msra.mxu0 %v476
    %912 = vmatprep.subr.bf16.mxu0 0
    %913 = vmatpush1.bf16.msra.mxu0 %v477
    %914 = vmatprep.subr.bf16.mxu0 0
    %915 = vmatpush1.bf16.msra.mxu0 0
    %916 = vmatprep.subr.bf16.mxu0 0
    %917 = vmatpush1.bf16.msra.mxu0 0
    %918 = vmatprep.subr.bf16.mxu0 0
    %919 = vmatpush1.bf16.msra.mxu0 0
    %920 = vmatprep.subr.bf16.mxu0 0
    %921 = vmatpush1.bf16.msra.mxu0 0
    %922 = vmatprep.subr.bf16.mxu0 0
    %923 = vmatpush1.bf16.msra.mxu0 0
    %924 = vmatprep.subr.bf16.mxu0 0
    %925 = vmatpush1.bf16.msra.mxu0 0
    %926 = vmatprep.subr.bf16.mxu0 0
    %927 = vmatpush1.bf16.msra.mxu0 0
    %928 = vmatprep.subr.bf16.mxu0 0
    %929 = vmatpush1.bf16.msra.mxu0 0
    %930 = vmatprep.subr.bf16.mxu0 0
    %931 = vmatpush1.bf16.msra.mxu0 0
    %932 = vmatprep.subr.bf16.mxu0 0
    %933 = vmatpush1.bf16.msra.mxu0 0
    %934 = vmatprep.subr.bf16.mxu0 0
    %935 = vmatpush1.bf16.msra.mxu0 0
    %936 = vmatprep.subr.bf16.mxu0 0
    %937 = vmatpush1.bf16.msra.mxu0 0
    %938 = vmatprep.mubr.bf16.mxu0 0
    %939 = vmatmul.mubr.bf16.gmra.mrb[0].mxu0 %v904
    %v940 = vpop.f32.mrb[0].mxu0
    %v941 = vadd.f32 %v457, %v940
    %v942 = vpop.f32.mrb[0].mxu0
    %v943 = vpop.f32.mrb[0].mxu0
    %v944 = vpop.f32.mrb[0].mxu0
    %945 = vdwg.mxu0
    %v946 = vpack.c.bf16 %v941, %v941
    %v948 = vsel %vm221, %v946, 0
    %950 = vmatprep.subr.bf16.mxu0 0
    %951 = vmatpush1.bf16.msra.mxu0 %v543
    %952 = vmatprep.subr.bf16.mxu0 0
    %953 = vmatpush1.bf16.msra.mxu0 %v544
    %954 = vmatprep.subr.bf16.mxu0 0
    %955 = vmatpush1.bf16.msra.mxu0 0
    %956 = vmatprep.subr.bf16.mxu0 0
    %957 = vmatpush1.bf16.msra.mxu0 0
    %958 = vmatprep.subr.bf16.mxu0 0
    %959 = vmatpush1.bf16.msra.mxu0 0
    %960 = vmatprep.subr.bf16.mxu0 0
    %961 = vmatpush1.bf16.msra.mxu0 0
    %962 = vmatprep.subr.bf16.mxu0 0
    %963 = vmatpush1.bf16.msra.mxu0 0
    %964 = vmatprep.subr.bf16.mxu0 0
    %965 = vmatpush1.bf16.msra.mxu0 0
    %966 = vmatprep.subr.bf16.mxu0 0
    %967 = vmatpush1.bf16.msra.mxu0 0
    %968 = vmatprep.subr.bf16.mxu0 0
    %969 = vmatpush1.bf16.msra.mxu0 0
    %970 = vmatprep.subr.bf16.mxu0 0
    %971 = vmatpush1.bf16.msra.mxu0 0
    %972 = vmatprep.subr.bf16.mxu0 0
    %973 = vmatpush1.bf16.msra.mxu0 0
    %974 = vmatprep.subr.bf16.mxu0 0
    %975 = vmatpush1.bf16.msra.mxu0 0
    %976 = vmatprep.subr.bf16.mxu0 0
    %977 = vmatpush1.bf16.msra.mxu0 0
    %978 = vmatprep.subr.bf16.mxu0 0
    %979 = vmatpush1.bf16.msra.mxu0 0
    %980 = vmatprep.subr.bf16.mxu0 0
    %981 = vmatpush1.bf16.msra.mxu0 0
    %982 = vmatprep.mubr.bf16.mxu0 0
    %983 = vmatmul.mubr.bf16.gmra.mrb[0].mxu0 %v948
    %v984 = vpop.f32.mrb[0].mxu0
    %v985 = vadd.f32 %v534, %v984
    %v986 = vpop.f32.mrb[0].mxu0
    %v987 = vpop.f32.mrb[0].mxu0
    %v988 = vpop.f32.mrb[0].mxu0
    %989 = vdwg.mxu0
    %v990 = vmax.f32 %v985, 0.0
    %v991 = vpack.c.bf16 %v990, %v990
    %v993 = vsel %vm155, %v991, 0
    %995 = vmatprep.subr.bf16.mxu0 0
    %996 = vmatpush1.bf16.msra.mxu0 %v621
    %997 = vmatprep.subr.bf16.mxu0 0
    %998 = vmatpush1.bf16.msra.mxu0 %v622
    %999 = vmatprep.subr.bf16.mxu0 0
    %1000 = vmatpush1.bf16.msra.mxu0 %v623
    %1001 = vmatprep.subr.bf16.mxu0 0
    %1002 = vmatpush1.bf16.msra.mxu0 %v624
    %1003 = vmatprep.subr.bf16.mxu0 0
    %1004 = vmatpush1.bf16.msra.mxu0 0
    %1005 = vmatprep.subr.bf16.mxu0 0
    %1006 = vmatpush1.bf16.msra.mxu0 0
    %1007 = vmatprep.subr.bf16.mxu0 0
    %1008 = vmatpush1.bf16.msra.mxu0 0
    %1009 = vmatprep.subr.bf16.mxu0 0
    %1010 = vmatpush1.bf16.msra.mxu0 0
    %1011 = vmatprep.subr.bf16.mxu0 0
    %1012 = vmatpush1.bf16.msra.mxu0 0
    %1013 = vmatprep.subr.bf16.mxu0 0
    %1014 = vmatpush1.bf16.msra.mxu0 0
    %1015 = vmatprep.subr.bf16.mxu0 0
    %1016 = vmatpush1.bf16.msra.mxu0 0
    %1017 = vmatprep.subr.bf16.mxu0 0
    %1018 = vmatpush1.bf16.msra.mxu0 0
    %1019 = vmatprep.subr.bf16.mxu0 0
    %1020 = vmatpush1.bf16.msra.mxu0 0
    %1021 = vmatprep.subr.bf16.mxu0 0
    %1022 = vmatpush1.bf16.msra.mxu0 0
    %1023 = vmatprep.subr.bf16.mxu0 0
    %1024 = vmatpush1.bf16.msra.mxu0 0
    %1025 = vmatprep.subr.bf16.mxu0 0
    %1026 = vmatpush1.bf16.msra.mxu0 0
    %1027 = vmatprep.mubr.bf16.mxu0 0
    %1028 = vmatmul.mubr.bf16.gmra.mrb[0].mxu0 %v993
    %v1029 = vpop.f32.mrb[0].mxu0
    %v1030 = vadd.f32 %v604, %v1029
    %v1031 = vpop.f32.mrb[0].mxu0
    %v1032 = vpop.f32.mrb[0].mxu0
    %v1033 = vpop.f32.mrb[0].mxu0
    %1034 = vdwg.mxu0
    %v1035 = vmul.f32 %v1030, %v371
    %v1036 = vmax.f32 %v854, %v1035
    %v1037 = vld [vmem:[%s2] sm:$0x3]
    %v1038 = vpack.c.bf16 %v1037, %v1037
    %v1039 = vld [vmem:[#allocation2 + $0x90] sm:$0xf]
    %v1040 = vld [vmem:[#allocation4 + $0x30] sm:$0x1]
    %v1041 = vlaneseq
    %v1042 = vshrl.u32 %v1041, 7
    %v1043 = vsub.s32 0, %v1042
    %v1044 = vrot.slane %v1040, %v1043
    %vm1045 = vcmask 64512
    %v1047 = vsel %vm1045, %v1038, 0
    %v1050 = vsel %vm399, %v1039, 0
    %1052 = vmatprep.subr.bf16.mxu0 0
    %1053 = vmatpush1.bf16.msra.mxu0 %v1050
    %1054 = vmatprep.subr.bf16.mxu0 0
    %1055 = vmatpush1.bf16.msra.mxu0 0
    %1056 = vmatprep.subr.bf16.mxu0 0
    %1057 = vmatpush1.bf16.msra.mxu0 0
    %1058 = vmatprep.subr.bf16.mxu0 0
    %1059 = vmatpush1.bf16.msra.mxu0 0
    %1060 = vmatprep.subr.bf16.mxu0 0
    %1061 = vmatpush1.bf16.msra.mxu0 0
    %1062 = vmatprep.subr.bf16.mxu0 0
    %1063 = vmatpush1.bf16.msra.mxu0 0
    %1064 = vmatprep.subr.bf16.mxu0 0
    %1065 = vmatpush1.bf16.msra.mxu0 0
    %1066 = vmatprep.subr.bf16.mxu0 0
    %1067 = vmatpush1.bf16.msra.mxu0 0
    %1068 = vmatprep.subr.bf16.mxu0 0
    %1069 = vmatpush1.bf16.msra.mxu0 0
    %1070 = vmatprep.subr.bf16.mxu0 0
    %1071 = vmatpush1.bf16.msra.mxu0 0
    %1072 = vmatprep.subr.bf16.mxu0 0
    %1073 = vmatpush1.bf16.msra.mxu0 0
    %1074 = vmatprep.subr.bf16.mxu0 0
    %1075 = vmatpush1.bf16.msra.mxu0 0
    %1076 = vmatprep.subr.bf16.mxu0 0
    %1077 = vmatpush1.bf16.msra.mxu0 0
    %1078 = vmatprep.subr.bf16.mxu0 0
    %1079 = vmatpush1.bf16.msra.mxu0 0
    %1080 = vmatprep.subr.bf16.mxu0 0
    %1081 = vmatpush1.bf16.msra.mxu0 0
    %1082 = vmatprep.subr.bf16.mxu0 0
    %1083 = vmatpush1.bf16.msra.mxu0 0
    %1084 = vmatprep.mubr.bf16.mxu0 0
    %1085 = vmatmul.mubr.bf16.gmra.mrb[0].mxu0 %v1047
    %v1086 = vpop.f32.mrb[0].mxu0
    %v1087 = vadd.f32 %v1044, %v1086
    %v1088 = vpop.f32.mrb[0].mxu0
    %v1089 = vpop.f32.mrb[0].mxu0
    %v1090 = vpop.f32.mrb[0].mxu0
    %1091 = vdwg.mxu0
    %v1092 = vmax.f32 %v1087, 0.0
    %v1093 = vpack.c.bf16 %v1092, %v1092
    %v1094 = vld [vmem:[#allocation2 + $0x98] sm:$0xf]
    %v1095 = vld [vmem:[#allocation2 + $0x9c] sm:$0xf]
    %v1096 = vld [vmem:[#allocation2 + $0xa0] sm:$0xf]
    %v1097 = vld [vmem:[#allocation2 + $0xa4] sm:$0xf]
    %v1098 = vld [vmem:[#allocation2 + $0xa8] sm:$0xf]
    %v1099 = vld [vmem:[#allocation2 + $0xac] sm:$0xf]
    %v1100 = vld [vmem:[#allocation2 + $0xb0] sm:$0xf]
    %v1101 = vld [vmem:[#allocation2 + $0xb4] sm:$0xf]
    %v1102 = vld [vmem:[#allocation4 + $0x38] sm:$0x1]
    %v1103 = vlaneseq
    %v1104 = vshrl.u32 %v1103, 7
    %v1105 = vsub.s32 0, %v1104
    %v1106 = vrot.slane %v1102, %v1105
    %v1115 = vunpack.c.l.b16 %v1094
    %v1116 = vunpack.c.l.b16 %v1095
    %v1117 = vunpack.c.l.b16 %v1096
    %v1118 = vunpack.c.l.b16 %v1097
    %v1119 = vunpack.c.l.b16 %v1098
    %v1120 = vunpack.c.l.b16 %v1099
    %v1121 = vunpack.c.l.b16 %v1100
    %v1122 = vunpack.c.l.b16 %v1101
    %v1123 = vpack.c.b16 %v1116, %v1115
    %v1124 = vpack.c.b16 %v1118, %v1117
    %v1125 = vpack.c.b16 %v1120, %v1119
    %v1126 = vpack.c.b16 %v1122, %v1121
    %v1132 = vsel %vm155, %v1093, 0
    %1134 = vmatprep.subr.bf16.mxu0 0
    %1135 = vmatpush1.bf16.msra.mxu0 %v1123
    %1136 = vmatprep.subr.bf16.mxu0 0
    %1137 = vmatpush1.bf16.msra.mxu0 %v1124
    %1138 = vmatprep.subr.bf16.mxu0 0
    %1139 = vmatpush1.bf16.msra.mxu0 %v1125
    %1140 = vmatprep.subr.bf16.mxu0 0
    %1141 = vmatpush1.bf16.msra.mxu0 %v1126
    %1142 = vmatprep.subr.bf16.mxu0 0
    %1143 = vmatpush1.bf16.msra.mxu0 0
    %1144 = vmatprep.subr.bf16.mxu0 0
    %1145 = vmatpush1.bf16.msra.mxu0 0
    %1146 = vmatprep.subr.bf16.mxu0 0
    %1147 = vmatpush1.bf16.msra.mxu0 0
    %1148 = vmatprep.subr.bf16.mxu0 0
    %1149 = vmatpush1.bf16.msra.mxu0 0
    %1150 = vmatprep.subr.bf16.mxu0 0
    %1151 = vmatpush1.bf16.msra.mxu0 0
    %1152 = vmatprep.subr.bf16.mxu0 0
    %1153 = vmatpush1.bf16.msra.mxu0 0
    %1154 = vmatprep.subr.bf16.mxu0 0
    %1155 = vmatpush1.bf16.msra.mxu0 0
    %1156 = vmatprep.subr.bf16.mxu0 0
    %1157 = vmatpush1.bf16.msra.mxu0 0
    %1158 = vmatprep.subr.bf16.mxu0 0
    %1159 = vmatpush1.bf16.msra.mxu0 0
    %1160 = vmatprep.subr.bf16.mxu0 0
    %1161 = vmatpush1.bf16.msra.mxu0 0
    %1162 = vmatprep.subr.bf16.mxu0 0
    %1163 = vmatpush1.bf16.msra.mxu0 0
    %1164 = vmatprep.subr.bf16.mxu0 0
    %1165 = vmatpush1.bf16.msra.mxu0 0
    %1166 = vmatprep.mubr.bf16.mxu0 0
    %1167 = vmatmul.mubr.bf16.gmra.mrb[0].mxu0 %v1132
    %v1168 = vpop.f32.mrb[0].mxu0
    %v1169 = vadd.f32 %v1106, %v1168
    %v1170 = vpop.f32.mrb[0].mxu0
    %v1171 = vpop.f32.mrb[0].mxu0
    %v1172 = vpop.f32.mrb[0].mxu0
    %1173 = vdwg.mxu0
    %1175 = vrot.lane.b32.xlu0 %v371, 64
    %v1176 = vpop.permute.xlu0 %1175
    %v1178 = vmul.f32 %v1169, %v1176
    %s1179 = scalar_lea.vmem %s2, 2
    %v1180 = vld [vmem:[%s1179] sm:$0x3]
    %v1181 = vpack.c.bf16 %v1180, %v1180
    %v1183 = vsel %vm1045, %v1181, 0
    %1185 = vmatprep.subr.bf16.mxu0 0
    %1186 = vmatpush1.bf16.msra.mxu0 %v1050
    %1187 = vmatprep.subr.bf16.mxu0 0
    %1188 = vmatpush1.bf16.msra.mxu0 0
    %1189 = vmatprep.subr.bf16.mxu0 0
    %1190 = vmatpush1.bf16.msra.mxu0 0
    %1191 = vmatprep.subr.bf16.mxu0 0
    %1192 = vmatpush1.bf16.msra.mxu0 0
    %1193 = vmatprep.subr.bf16.mxu0 0
    %1194 = vmatpush1.bf16.msra.mxu0 0
    %1195 = vmatprep.subr.bf16.mxu0 0
    %1196 = vmatpush1.bf16.msra.mxu0 0
    %1197 = vmatprep.subr.bf16.mxu0 0
    %1198 = vmatpush1.bf16.msra.mxu0 0
    %1199 = vmatprep.subr.bf16.mxu0 0
    %1200 = vmatpush1.bf16.msra.mxu0 0
    %1201 = vmatprep.subr.bf16.mxu0 0
    %1202 = vmatpush1.bf16.msra.mxu0 0
    %1203 = vmatprep.subr.bf16.mxu0 0
    %1204 = vmatpush1.bf16.msra.mxu0 0
    %1205 = vmatprep.subr.bf16.mxu0 0
    %1206 = vmatpush1.bf16.msra.mxu0 0
    %1207 = vmatprep.subr.bf16.mxu0 0
    %1208 = vmatpush1.bf16.msra.mxu0 0
    %1209 = vmatprep.subr.bf16.mxu0 0
    %1210 = vmatpush1.bf16.msra.mxu0 0
    %1211 = vmatprep.subr.bf16.mxu0 0
    %1212 = vmatpush1.bf16.msra.mxu0 0
    %1213 = vmatprep.subr.bf16.mxu0 0
    %1214 = vmatpush1.bf16.msra.mxu0 0
    %1215 = vmatprep.subr.bf16.mxu0 0
    %1216 = vmatpush1.bf16.msra.mxu0 0
    %1217 = vmatprep.mubr.bf16.mxu0 0
    %1218 = vmatmul.mubr.bf16.gmra.mrb[0].mxu0 %v1183
    %v1219 = vpop.f32.mrb[0].mxu0
    %v1220 = vadd.f32 %v1044, %v1219
    %v1221 = vpop.f32.mrb[0].mxu0
    %v1222 = vpop.f32.mrb[0].mxu0
    %v1223 = vpop.f32.mrb[0].mxu0
    %1224 = vdwg.mxu0
    %v1225 = vmax.f32 %v1220, 0.0
    %v1226 = vpack.c.bf16 %v1225, %v1225
    %v1228 = vsel %vm155, %v1226, 0
    %1230 = vmatprep.subr.bf16.mxu0 0
    %1231 = vmatpush1.bf16.msra.mxu0 %v1123
    %1232 = vmatprep.subr.bf16.mxu0 0
    %1233 = vmatpush1.bf16.msra.mxu0 %v1124
    %1234 = vmatprep.subr.bf16.mxu0 0
    %1235 = vmatpush1.bf16.msra.mxu0 %v1125
    %1236 = vmatprep.subr.bf16.mxu0 0
    %1237 = vmatpush1.bf16.msra.mxu0 %v1126
    %1238 = vmatprep.subr.bf16.mxu0 0
    %1239 = vmatpush1.bf16.msra.mxu0 0
    %1240 = vmatprep.subr.bf16.mxu0 0
    %1241 = vmatpush1.bf16.msra.mxu0 0
    %1242 = vmatprep.subr.bf16.mxu0 0
    %1243 = vmatpush1.bf16.msra.mxu0 0
    %1244 = vmatprep.subr.bf16.mxu0 0
    %1245 = vmatpush1.bf16.msra.mxu0 0
    %1246 = vmatprep.subr.bf16.mxu0 0
    %1247 = vmatpush1.bf16.msra.mxu0 0
    %1248 = vmatprep.subr.bf16.mxu0 0
    %1249 = vmatpush1.bf16.msra.mxu0 0
    %1250 = vmatprep.subr.bf16.mxu0 0
    %1251 = vmatpush1.bf16.msra.mxu0 0
    %1252 = vmatprep.subr.bf16.mxu0 0
    %1253 = vmatpush1.bf16.msra.mxu0 0
    %1254 = vmatprep.subr.bf16.mxu0 0
    %1255 = vmatpush1.bf16.msra.mxu0 0
    %1256 = vmatprep.subr.bf16.mxu0 0
    %1257 = vmatpush1.bf16.msra.mxu0 0
    %1258 = vmatprep.subr.bf16.mxu0 0
    %1259 = vmatpush1.bf16.msra.mxu0 0
    %1260 = vmatprep.subr.bf16.mxu0 0
    %1261 = vmatpush1.bf16.msra.mxu0 0
    %1262 = vmatprep.mubr.bf16.mxu0 0
    %1263 = vmatmul.mubr.bf16.gmra.mrb[0].mxu0 %v1228
    %v1264 = vpop.f32.mrb[0].mxu0
    %v1265 = vadd.f32 %v1106, %v1264
    %v1266 = vpop.f32.mrb[0].mxu0
    %v1267 = vpop.f32.mrb[0].mxu0
    %v1268 = vpop.f32.mrb[0].mxu0
    %1269 = vdwg.mxu0
    %v1270 = vmul.f32 %v1265, %v1176
    %v1271 = vmax.f32 %v1178, %v1270
    %s1272 = scalar_lea.vmem %s2, 4
    %v1273 = vld [vmem:[%s1272] sm:$0x3]
    %v1274 = vpack.c.bf16 %v1273, %v1273
    %v1276 = vsel %vm1045, %v1274, 0
    %1278 = vmatprep.subr.bf16.mxu0 0
    %1279 = vmatpush1.bf16.msra.mxu0 %v1050
    %1280 = vmatprep.subr.bf16.mxu0 0
    %1281 = vmatpush1.bf16.msra.mxu0 0
    %1282 = vmatprep.subr.bf16.mxu0 0
    %1283 = vmatpush1.bf16.msra.mxu0 0
    %1284 = vmatprep.subr.bf16.mxu0 0
    %1285 = vmatpush1.bf16.msra.mxu0 0
    %1286 = vmatprep.subr.bf16.mxu0 0
    %1287 = vmatpush1.bf16.msra.mxu0 0
    %1288 = vmatprep.subr.bf16.mxu0 0
    %1289 = vmatpush1.bf16.msra.mxu0 0
    %1290 = vmatprep.subr.bf16.mxu0 0
    %1291 = vmatpush1.bf16.msra.mxu0 0
    %1292 = vmatprep.subr.bf16.mxu0 0
    %1293 = vmatpush1.bf16.msra.mxu0 0
    %1294 = vmatprep.subr.bf16.mxu0 0
    %1295 = vmatpush1.bf16.msra.mxu0 0
    %1296 = vmatprep.subr.bf16.mxu0 0
    %1297 = vmatpush1.bf16.msra.mxu0 0
    %1298 = vmatprep.subr.bf16.mxu0 0
    %1299 = vmatpush1.bf16.msra.mxu0 0
    %1300 = vmatprep.subr.bf16.mxu0 0
    %1301 = vmatpush1.bf16.msra.mxu0 0
    %1302 = vmatprep.subr.bf16.mxu0 0
    %1303 = vmatpush1.bf16.msra.mxu0 0
    %1304 = vmatprep.subr.bf16.mxu0 0
    %1305 = vmatpush1.bf16.msra.mxu0 0
    %1306 = vmatprep.subr.bf16.mxu0 0
    %1307 = vmatpush1.bf16.msra.mxu0 0
    %1308 = vmatprep.subr.bf16.mxu0 0
    %1309 = vmatpush1.bf16.msra.mxu0 0
    %1310 = vmatprep.mubr.bf16.mxu0 0
    %1311 = vmatmul.mubr.bf16.gmra.mrb[0].mxu0 %v1276
    %v1312 = vpop.f32.mrb[0].mxu0
    %v1313 = vadd.f32 %v1044, %v1312
    %v1314 = vpop.f32.mrb[0].mxu0
    %v1315 = vpop.f32.mrb[0].mxu0
    %v1316 = vpop.f32.mrb[0].mxu0
    %1317 = vdwg.mxu0
    %v1318 = vmax.f32 %v1313, 0.0
    %v1319 = vpack.c.bf16 %v1318, %v1318
    %v1321 = vsel %vm155, %v1319, 0
    %1323 = vmatprep.subr.bf16.mxu0 0
    %1324 = vmatpush1.bf16.msra.mxu0 %v1123
    %1325 = vmatprep.subr.bf16.mxu0 0
    %1326 = vmatpush1.bf16.msra.mxu0 %v1124
    %1327 = vmatprep.subr.bf16.mxu0 0
    %1328 = vmatpush1.bf16.msra.mxu0 %v1125
    %1329 = vmatprep.subr.bf16.mxu0 0
    %1330 = vmatpush1.bf16.msra.mxu0 %v1126
    %1331 = vmatprep.subr.bf16.mxu0 0
    %1332 = vmatpush1.bf16.msra.mxu0 0
    %1333 = vmatprep.subr.bf16.mxu0 0
    %1334 = vmatpush1.bf16.msra.mxu0 0
    %1335 = vmatprep.subr.bf16.mxu0 0
    %1336 = vmatpush1.bf16.msra.mxu0 0
    %1337 = vmatprep.subr.bf16.mxu0 0
    %1338 = vmatpush1.bf16.msra.mxu0 0
    %1339 = vmatprep.subr.bf16.mxu0 0
    %1340 = vmatpush1.bf16.msra.mxu0 0
    %1341 = vmatprep.subr.bf16.mxu0 0
    %1342 = vmatpush1.bf16.msra.mxu0 0
    %1343 = vmatprep.subr.bf16.mxu0 0
    %1344 = vmatpush1.bf16.msra.mxu0 0
    %1345 = vmatprep.subr.bf16.mxu0 0
    %1346 = vmatpush1.bf16.msra.mxu0 0
    %1347 = vmatprep.subr.bf16.mxu0 0
    %1348 = vmatpush1.bf16.msra.mxu0 0
    %1349 = vmatprep.subr.bf16.mxu0 0
    %1350 = vmatpush1.bf16.msra.mxu0 0
    %1351 = vmatprep.subr.bf16.mxu0 0
    %1352 = vmatpush1.bf16.msra.mxu0 0
    %1353 = vmatprep.subr.bf16.mxu0 0
    %1354 = vmatpush1.bf16.msra.mxu0 0
    %1355 = vmatprep.mubr.bf16.mxu0 0
    %1356 = vmatmul.mubr.bf16.gmra.mrb[0].mxu0 %v1321
    %v1357 = vpop.f32.mrb[0].mxu0
    %v1358 = vadd.f32 %v1106, %v1357
    %v1359 = vpop.f32.mrb[0].mxu0
    %v1360 = vpop.f32.mrb[0].mxu0
    %v1361 = vpop.f32.mrb[0].mxu0
    %1362 = vdwg.mxu0
    %v1363 = vmul.f32 %v1358, %v1176
    %v1364 = vmax.f32 %v1271, %v1363
    %s1365 = scalar_lea.vmem %s2, 6
    %v1366 = vld [vmem:[%s1365] sm:$0x3]
    %v1367 = vpack.c.bf16 %v1366, %v1366
    %v1369 = vsel %vm1045, %v1367, 0
    %1371 = vmatprep.subr.bf16.mxu0 0
    %1372 = vmatpush1.bf16.msra.mxu0 %v1050
    %1373 = vmatprep.subr.bf16.mxu0 0
    %1374 = vmatpush1.bf16.msra.mxu0 0
    %1375 = vmatprep.subr.bf16.mxu0 0
    %1376 = vmatpush1.bf16.msra.mxu0 0
    %1377 = vmatprep.subr.bf16.mxu0 0
    %1378 = vmatpush1.bf16.msra.mxu0 0
    %1379 = vmatprep.subr.bf16.mxu0 0
    %1380 = vmatpush1.bf16.msra.mxu0 0
    %1381 = vmatprep.subr.bf16.mxu0 0
    %1382 = vmatpush1.bf16.msra.mxu0 0
    %1383 = vmatprep.subr.bf16.mxu0 0
    %1384 = vmatpush1.bf16.msra.mxu0 0
    %1385 = vmatprep.subr.bf16.mxu0 0
    %1386 = vmatpush1.bf16.msra.mxu0 0
    %1387 = vmatprep.subr.bf16.mxu0 0
    %1388 = vmatpush1.bf16.msra.mxu0 0
    %1389 = vmatprep.subr.bf16.mxu0 0
    %1390 = vmatpush1.bf16.msra.mxu0 0
    %1391 = vmatprep.subr.bf16.mxu0 0
    %1392 = vmatpush1.bf16.msra.mxu0 0
    %1393 = vmatprep.subr.bf16.mxu0 0
    %1394 = vmatpush1.bf16.msra.mxu0 0
    %1395 = vmatprep.subr.bf16.mxu0 0
    %1396 = vmatpush1.bf16.msra.mxu0 0
    %1397 = vmatprep.subr.bf16.mxu0 0
    %1398 = vmatpush1.bf16.msra.mxu0 0
    %1399 = vmatprep.subr.bf16.mxu0 0
    %1400 = vmatpush1.bf16.msra.mxu0 0
    %1401 = vmatprep.subr.bf16.mxu0 0
    %1402 = vmatpush1.bf16.msra.mxu0 0
    %1403 = vmatprep.mubr.bf16.mxu0 0
    %1404 = vmatmul.mubr.bf16.gmra.mrb[0].mxu0 %v1369
    %v1405 = vpop.f32.mrb[0].mxu0
    %v1406 = vadd.f32 %v1044, %v1405
    %v1407 = vpop.f32.mrb[0].mxu0
    %v1408 = vpop.f32.mrb[0].mxu0
    %v1409 = vpop.f32.mrb[0].mxu0
    %1410 = vdwg.mxu0
    %v1411 = vmax.f32 %v1406, 0.0
    %v1412 = vpack.c.bf16 %v1411, %v1411
    %v1414 = vsel %vm155, %v1412, 0
    %1416 = vmatprep.subr.bf16.mxu0 0
    %1417 = vmatpush1.bf16.msra.mxu0 %v1123
    %1418 = vmatprep.subr.bf16.mxu0 0
    %1419 = vmatpush1.bf16.msra.mxu0 %v1124
    %1420 = vmatprep.subr.bf16.mxu0 0
    %1421 = vmatpush1.bf16.msra.mxu0 %v1125
    %1422 = vmatprep.subr.bf16.mxu0 0
    %1423 = vmatpush1.bf16.msra.mxu0 %v1126
    %1424 = vmatprep.subr.bf16.mxu0 0
    %1425 = vmatpush1.bf16.msra.mxu0 0
    %1426 = vmatprep.subr.bf16.mxu0 0
    %1427 = vmatpush1.bf16.msra.mxu0 0
    %1428 = vmatprep.subr.bf16.mxu0 0
    %1429 = vmatpush1.bf16.msra.mxu0 0
    %1430 = vmatprep.subr.bf16.mxu0 0
    %1431 = vmatpush1.bf16.msra.mxu0 0
    %1432 = vmatprep.subr.bf16.mxu0 0
    %1433 = vmatpush1.bf16.msra.mxu0 0
    %1434 = vmatprep.subr.bf16.mxu0 0
    %1435 = vmatpush1.bf16.msra.mxu0 0
    %1436 = vmatprep.subr.bf16.mxu0 0
    %1437 = vmatpush1.bf16.msra.mxu0 0
    %1438 = vmatprep.subr.bf16.mxu0 0
    %1439 = vmatpush1.bf16.msra.mxu0 0
    %1440 = vmatprep.subr.bf16.mxu0 0
    %1441 = vmatpush1.bf16.msra.mxu0 0
    %1442 = vmatprep.subr.bf16.mxu0 0
    %1443 = vmatpush1.bf16.msra.mxu0 0
    %1444 = vmatprep.subr.bf16.mxu0 0
    %1445 = vmatpush1.bf16.msra.mxu0 0
    %1446 = vmatprep.subr.bf16.mxu0 0
    %1447 = vmatpush1.bf16.msra.mxu0 0
    %1448 = vmatprep.mubr.bf16.mxu0 0
    %1449 = vmatmul.mubr.bf16.gmra.mrb[0].mxu0 %v1414
    %v1450 = vpop.f32.mrb[0].mxu0
    %v1451 = vadd.f32 %v1106, %v1450
    %v1452 = vpop.f32.mrb[0].mxu0
    %v1453 = vpop.f32.mrb[0].mxu0
    %v1454 = vpop.f32.mrb[0].mxu0
    %1455 = vdwg.mxu0
    %v1456 = vmul.f32 %v1451, %v1176
    %v1457 = vmax.f32 %v1364, %v1456
    %s1458 = scalar_lea.vmem %s2, 8
    %v1459 = vld [vmem:[%s1458] sm:$0x3]
    %v1460 = vpack.c.bf16 %v1459, %v1459
    %v1462 = vsel %vm1045, %v1460, 0
    %1464 = vmatprep.subr.bf16.mxu0 0
    %1465 = vmatpush1.bf16.msra.mxu0 %v1050
    %1466 = vmatprep.subr.bf16.mxu0 0
    %1467 = vmatpush1.bf16.msra.mxu0 0
    %1468 = vmatprep.subr.bf16.mxu0 0
    %1469 = vmatpush1.bf16.msra.mxu0 0
    %1470 = vmatprep.subr.bf16.mxu0 0
    %1471 = vmatpush1.bf16.msra.mxu0 0
    %1472 = vmatprep.subr.bf16.mxu0 0
    %1473 = vmatpush1.bf16.msra.mxu0 0
    %1474 = vmatprep.subr.bf16.mxu0 0
    %1475 = vmatpush1.bf16.msra.mxu0 0
    %1476 = vmatprep.subr.bf16.mxu0 0
    %1477 = vmatpush1.bf16.msra.mxu0 0
    %1478 = vmatprep.subr.bf16.mxu0 0
    %1479 = vmatpush1.bf16.msra.mxu0 0
    %1480 = vmatprep.subr.bf16.mxu0 0
    %1481 = vmatpush1.bf16.msra.mxu0 0
    %1482 = vmatprep.subr.bf16.mxu0 0
    %1483 = vmatpush1.bf16.msra.mxu0 0
    %1484 = vmatprep.subr.bf16.mxu0 0
    %1485 = vmatpush1.bf16.msra.mxu0 0
    %1486 = vmatprep.subr.bf16.mxu0 0
    %1487 = vmatpush1.bf16.msra.mxu0 0
    %1488 = vmatprep.subr.bf16.mxu0 0
    %1489 = vmatpush1.bf16.msra.mxu0 0
    %1490 = vmatprep.subr.bf16.mxu0 0
    %1491 = vmatpush1.bf16.msra.mxu0 0
    %1492 = vmatprep.subr.bf16.mxu0 0
    %1493 = vmatpush1.bf16.msra.mxu0 0
    %1494 = vmatprep.subr.bf16.mxu0 0
    %1495 = vmatpush1.bf16.msra.mxu0 0
    %1496 = vmatprep.mubr.bf16.mxu0 0
    %1497 = vmatmul.mubr.bf16.gmra.mrb[0].mxu0 %v1462
    %v1498 = vpop.f32.mrb[0].mxu0
    %v1499 = vadd.f32 %v1044, %v1498
    %v1500 = vpop.f32.mrb[0].mxu0
    %v1501 = vpop.f32.mrb[0].mxu0
    %v1502 = vpop.f32.mrb[0].mxu0
    %1503 = vdwg.mxu0
    %v1504 = vmax.f32 %v1499, 0.0
    %v1505 = vpack.c.bf16 %v1504, %v1504
    %v1507 = vsel %vm155, %v1505, 0
    %1509 = vmatprep.subr.bf16.mxu0 0
    %1510 = vmatpush1.bf16.msra.mxu0 %v1123
    %1511 = vmatprep.subr.bf16.mxu0 0
    %1512 = vmatpush1.bf16.msra.mxu0 %v1124
    %1513 = vmatprep.subr.bf16.mxu0 0
    %1514 = vmatpush1.bf16.msra.mxu0 %v1125
    %1515 = vmatprep.subr.bf16.mxu0 0
    %1516 = vmatpush1.bf16.msra.mxu0 %v1126
    %1517 = vmatprep.subr.bf16.mxu0 0
    %1518 = vmatpush1.bf16.msra.mxu0 0
    %1519 = vmatprep.subr.bf16.mxu0 0
    %1520 = vmatpush1.bf16.msra.mxu0 0
    %1521 = vmatprep.subr.bf16.mxu0 0
    %1522 = vmatpush1.bf16.msra.mxu0 0
    %1523 = vmatprep.subr.bf16.mxu0 0
    %1524 = vmatpush1.bf16.msra.mxu0 0
    %1525 = vmatprep.subr.bf16.mxu0 0
    %1526 = vmatpush1.bf16.msra.mxu0 0
    %1527 = vmatprep.subr.bf16.mxu0 0
    %1528 = vmatpush1.bf16.msra.mxu0 0
    %1529 = vmatprep.subr.bf16.mxu0 0
    %1530 = vmatpush1.bf16.msra.mxu0 0
    %1531 = vmatprep.subr.bf16.mxu0 0
    %1532 = vmatpush1.bf16.msra.mxu0 0
    %1533 = vmatprep.subr.bf16.mxu0 0
    %1534 = vmatpush1.bf16.msra.mxu0 0
    %1535 = vmatprep.subr.bf16.mxu0 0
    %1536 = vmatpush1.bf16.msra.mxu0 0
    %1537 = vmatprep.subr.bf16.mxu0 0
    %1538 = vmatpush1.bf16.msra.mxu0 0
    %1539 = vmatprep.subr.bf16.mxu0 0
    %1540 = vmatpush1.bf16.msra.mxu0 0
    %1541 = vmatprep.mubr.bf16.mxu0 0
    %1542 = vmatmul.mubr.bf16.gmra.mrb[0].mxu0 %v1507
    %v1543 = vpop.f32.mrb[0].mxu0
    %v1544 = vadd.f32 %v1106, %v1543
    %v1545 = vpop.f32.mrb[0].mxu0
    %v1546 = vpop.f32.mrb[0].mxu0
    %v1547 = vpop.f32.mrb[0].mxu0
    %1548 = vdwg.mxu0
    %v1549 = vmul.f32 %v1544, %v1176
    %v1550 = vmax.f32 %v1457, %v1549
    %s1551 = scalar_lea.vmem %s2, 10
    %v1552 = vld [vmem:[%s1551] sm:$0x3]
    %v1553 = vpack.c.bf16 %v1552, %v1552
    %v1555 = vsel %vm1045, %v1553, 0
    %1557 = vmatprep.subr.bf16.mxu0 0
    %1558 = vmatpush1.bf16.msra.mxu0 %v1050
    %1559 = vmatprep.subr.bf16.mxu0 0
    %1560 = vmatpush1.bf16.msra.mxu0 0
    %1561 = vmatprep.subr.bf16.mxu0 0
    %1562 = vmatpush1.bf16.msra.mxu0 0
    %1563 = vmatprep.subr.bf16.mxu0 0
    %1564 = vmatpush1.bf16.msra.mxu0 0
    %1565 = vmatprep.subr.bf16.mxu0 0
    %1566 = vmatpush1.bf16.msra.mxu0 0
    %1567 = vmatprep.subr.bf16.mxu0 0
    %1568 = vmatpush1.bf16.msra.mxu0 0
    %1569 = vmatprep.subr.bf16.mxu0 0
    %1570 = vmatpush1.bf16.msra.mxu0 0
    %1571 = vmatprep.subr.bf16.mxu0 0
    %1572 = vmatpush1.bf16.msra.mxu0 0
    %1573 = vmatprep.subr.bf16.mxu0 0
    %1574 = vmatpush1.bf16.msra.mxu0 0
    %1575 = vmatprep.subr.bf16.mxu0 0
    %1576 = vmatpush1.bf16.msra.mxu0 0
    %1577 = vmatprep.subr.bf16.mxu0 0
    %1578 = vmatpush1.bf16.msra.mxu0 0
    %1579 = vmatprep.subr.bf16.mxu0 0
    %1580 = vmatpush1.bf16.msra.mxu0 0
    %1581 = vmatprep.subr.bf16.mxu0 0
    %1582 = vmatpush1.bf16.msra.mxu0 0
    %1583 = vmatprep.subr.bf16.mxu0 0
    %1584 = vmatpush1.bf16.msra.mxu0 0
    %1585 = vmatprep.subr.bf16.mxu0 0
    %1586 = vmatpush1.bf16.msra.mxu0 0
    %1587 = vmatprep.subr.bf16.mxu0 0
    %1588 = vmatpush1.bf16.msra.mxu0 0
    %1589 = vmatprep.mubr.bf16.mxu0 0
    %1590 = vmatmul.mubr.bf16.gmra.mrb[0].mxu0 %v1555
    %v1591 = vpop.f32.mrb[0].mxu0
    %v1592 = vadd.f32 %v1044, %v1591
    %v1593 = vpop.f32.mrb[0].mxu0
    %v1594 = vpop.f32.mrb[0].mxu0
    %v1595 = vpop.f32.mrb[0].mxu0
    %1596 = vdwg.mxu0
    %v1597 = vmax.f32 %v1592, 0.0
    %v1598 = vpack.c.bf16 %v1597, %v1597
    %v1600 = vsel %vm155, %v1598, 0
    %1602 = vmatprep.subr.bf16.mxu0 0
    %1603 = vmatpush1.bf16.msra.mxu0 %v1123
    %1604 = vmatprep.subr.bf16.mxu0 0
    %1605 = vmatpush1.bf16.msra.mxu0 %v1124
    %1606 = vmatprep.subr.bf16.mxu0 0
    %1607 = vmatpush1.bf16.msra.mxu0 %v1125
    %1608 = vmatprep.subr.bf16.mxu0 0
    %1609 = vmatpush1.bf16.msra.mxu0 %v1126
    %1610 = vmatprep.subr.bf16.mxu0 0
    %1611 = vmatpush1.bf16.msra.mxu0 0
    %1612 = vmatprep.subr.bf16.mxu0 0
    %1613 = vmatpush1.bf16.msra.mxu0 0
    %1614 = vmatprep.subr.bf16.mxu0 0
    %1615 = vmatpush1.bf16.msra.mxu0 0
    %1616 = vmatprep.subr.bf16.mxu0 0
    %1617 = vmatpush1.bf16.msra.mxu0 0
    %1618 = vmatprep.subr.bf16.mxu0 0
    %1619 = vmatpush1.bf16.msra.mxu0 0
    %1620 = vmatprep.subr.bf16.mxu0 0
    %1621 = vmatpush1.bf16.msra.mxu0 0
    %1622 = vmatprep.subr.bf16.mxu0 0
    %1623 = vmatpush1.bf16.msra.mxu0 0
    %1624 = vmatprep.subr.bf16.mxu0 0
    %1625 = vmatpush1.bf16.msra.mxu0 0
    %1626 = vmatprep.subr.bf16.mxu0 0
    %1627 = vmatpush1.bf16.msra.mxu0 0
    %1628 = vmatprep.subr.bf16.mxu0 0
    %1629 = vmatpush1.bf16.msra.mxu0 0
    %1630 = vmatprep.subr.bf16.mxu0 0
    %1631 = vmatpush1.bf16.msra.mxu0 0
    %1632 = vmatprep.subr.bf16.mxu0 0
    %1633 = vmatpush1.bf16.msra.mxu0 0
    %1634 = vmatprep.mubr.bf16.mxu0 0
    %1635 = vmatmul.mubr.bf16.gmra.mrb[0].mxu0 %v1600
    %v1636 = vpop.f32.mrb[0].mxu0
    %v1637 = vadd.f32 %v1106, %v1636
    %v1638 = vpop.f32.mrb[0].mxu0
    %v1639 = vpop.f32.mrb[0].mxu0
    %v1640 = vpop.f32.mrb[0].mxu0
    %1641 = vdwg.mxu0
    %v1642 = vmul.f32 %v1637, %v1176
    %v1643 = vmax.f32 %v1550, %v1642
    %s1644 = scalar_lea.vmem %s2, 12
    %v1645 = vld [vmem:[%s1644] sm:$0x3]
    %v1646 = vpack.c.bf16 %v1645, %v1645
    %v1648 = vsel %vm1045, %v1646, 0
    %1650 = vmatprep.subr.bf16.mxu0 0
    %1651 = vmatpush1.bf16.msra.mxu0 %v1050
    %1652 = vmatprep.subr.bf16.mxu0 0
    %1653 = vmatpush1.bf16.msra.mxu0 0
    %1654 = vmatprep.subr.bf16.mxu0 0
    %1655 = vmatpush1.bf16.msra.mxu0 0
    %1656 = vmatprep.subr.bf16.mxu0 0
    %1657 = vmatpush1.bf16.msra.mxu0 0
    %1658 = vmatprep.subr.bf16.mxu0 0
    %1659 = vmatpush1.bf16.msra.mxu0 0
    %1660 = vmatprep.subr.bf16.mxu0 0
    %1661 = vmatpush1.bf16.msra.mxu0 0
    %1662 = vmatprep.subr.bf16.mxu0 0
    %1663 = vmatpush1.bf16.msra.mxu0 0
    %1664 = vmatprep.subr.bf16.mxu0 0
    %1665 = vmatpush1.bf16.msra.mxu0 0
    %1666 = vmatprep.subr.bf16.mxu0 0
    %1667 = vmatpush1.bf16.msra.mxu0 0
    %1668 = vmatprep.subr.bf16.mxu0 0
    %1669 = vmatpush1.bf16.msra.mxu0 0
    %1670 = vmatprep.subr.bf16.mxu0 0
    %1671 = vmatpush1.bf16.msra.mxu0 0
    %1672 = vmatprep.subr.bf16.mxu0 0
    %1673 = vmatpush1.bf16.msra.mxu0 0
    %1674 = vmatprep.subr.bf16.mxu0 0
    %1675 = vmatpush1.bf16.msra.mxu0 0
    %1676 = vmatprep.subr.bf16.mxu0 0
    %1677 = vmatpush1.bf16.msra.mxu0 0
    %1678 = vmatprep.subr.bf16.mxu0 0
    %1679 = vmatpush1.bf16.msra.mxu0 0
    %1680 = vmatprep.subr.bf16.mxu0 0
    %1681 = vmatpush1.bf16.msra.mxu0 0
    %1682 = vmatprep.mubr.bf16.mxu0 0
    %1683 = vmatmul.mubr.bf16.gmra.mrb[0].mxu0 %v1648
    %v1684 = vpop.f32.mrb[0].mxu0
    %v1685 = vadd.f32 %v1044, %v1684
    %v1686 = vpop.f32.mrb[0].mxu0
    %v1687 = vpop.f32.mrb[0].mxu0
    %v1688 = vpop.f32.mrb[0].mxu0
    %1689 = vdwg.mxu0
    %v1690 = vmax.f32 %v1685, 0.0
    %v1691 = vpack.c.bf16 %v1690, %v1690
    %v1693 = vsel %vm155, %v1691, 0
    %1695 = vmatprep.subr.bf16.mxu0 0
    %1696 = vmatpush1.bf16.msra.mxu0 %v1123
    %1697 = vmatprep.subr.bf16.mxu0 0
    %1698 = vmatpush1.bf16.msra.mxu0 %v1124
    %1699 = vmatprep.subr.bf16.mxu0 0
    %1700 = vmatpush1.bf16.msra.mxu0 %v1125
    %1701 = vmatprep.subr.bf16.mxu0 0
    %1702 = vmatpush1.bf16.msra.mxu0 %v1126
    %1703 = vmatprep.subr.bf16.mxu0 0
    %1704 = vmatpush1.bf16.msra.mxu0 0
    %1705 = vmatprep.subr.bf16.mxu0 0
    %1706 = vmatpush1.bf16.msra.mxu0 0
    %1707 = vmatprep.subr.bf16.mxu0 0
    %1708 = vmatpush1.bf16.msra.mxu0 0
    %1709 = vmatprep.subr.bf16.mxu0 0
    %1710 = vmatpush1.bf16.msra.mxu0 0
    %1711 = vmatprep.subr.bf16.mxu0 0
    %1712 = vmatpush1.bf16.msra.mxu0 0
    %1713 = vmatprep.subr.bf16.mxu0 0
    %1714 = vmatpush1.bf16.msra.mxu0 0
    %1715 = vmatprep.subr.bf16.mxu0 0
    %1716 = vmatpush1.bf16.msra.mxu0 0
    %1717 = vmatprep.subr.bf16.mxu0 0
    %1718 = vmatpush1.bf16.msra.mxu0 0
    %1719 = vmatprep.subr.bf16.mxu0 0
    %1720 = vmatpush1.bf16.msra.mxu0 0
    %1721 = vmatprep.subr.bf16.mxu0 0
    %1722 = vmatpush1.bf16.msra.mxu0 0
    %1723 = vmatprep.subr.bf16.mxu0 0
    %1724 = vmatpush1.bf16.msra.mxu0 0
    %1725 = vmatprep.subr.bf16.mxu0 0
    %1726 = vmatpush1.bf16.msra.mxu0 0
    %1727 = vmatprep.mubr.bf16.mxu0 0
    %1728 = vmatmul.mubr.bf16.gmra.mrb[0].mxu0 %v1693
    %v1729 = vpop.f32.mrb[0].mxu0
    %v1730 = vadd.f32 %v1106, %v1729
    %v1731 = vpop.f32.mrb[0].mxu0
    %v1732 = vpop.f32.mrb[0].mxu0
    %v1733 = vpop.f32.mrb[0].mxu0
    %1734 = vdwg.mxu0
    %v1735 = vmul.f32 %v1730, %v1176
    %v1736 = vmax.f32 %v1643, %v1735
    %v1737 = vld [vmem:[#allocation2 + $0x108] sm:$0xf]
    %v1738 = vld [vmem:[#allocation2 + $0x10c] sm:$0xf]
    %v1739 = vld [vmem:[#allocation2 + $0x110] sm:$0xf]
    %v1740 = vld [vmem:[#allocation2 + $0x114] sm:$0xf]
    %v1741 = vpack.c.bf16 %v1036, %v1036
    %v1742 = vld [vmem:[#allocation2 + $0x118] sm:$0xf]
    %v1743 = vld [vmem:[#allocation2 + $0x11c] sm:$0xf]
    %v1744 = vld [vmem:[#allocation2 + $0x120] sm:$0xf]
    %v1745 = vld [vmem:[#allocation2 + $0x124] sm:$0xf]
    %v1746 = vld [vmem:[#allocation2 + $0x128] sm:$0xf]
    %v1747 = vld [vmem:[#allocation2 + $0x12c] sm:$0xf]
    %v1748 = vld [vmem:[#allocation2 + $0x130] sm:$0xf]
    %v1749 = vld [vmem:[#allocation2 + $0x134] sm:$0xf]
    %v1758 = vunpack.c.l.b16 %v1742
    %v1759 = vunpack.c.l.b16 %v1743
    %v1760 = vunpack.c.l.b16 %v1744
    %v1761 = vunpack.c.l.b16 %v1745
    %v1762 = vunpack.c.l.b16 %v1746
    %v1763 = vunpack.c.l.b16 %v1747
    %v1764 = vunpack.c.l.b16 %v1748
    %v1765 = vunpack.c.l.b16 %v1749
    %v1766 = vpack.c.b16 %v1759, %v1758
    %v1767 = vpack.c.b16 %v1761, %v1760
    %v1768 = vpack.c.b16 %v1763, %v1762
    %v1769 = vpack.c.b16 %v1765, %v1764
    %v1775 = vsel %vm155, %v1741, 0
    %1777 = vmatprep.subr.bf16.mxu0 0
    %1778 = vmatpush1.bf16.msra.mxu0 %v1766
    %1779 = vmatprep.subr.bf16.mxu0 0
    %1780 = vmatpush1.bf16.msra.mxu0 %v1767
    %1781 = vmatprep.subr.bf16.mxu0 0
    %1782 = vmatpush1.bf16.msra.mxu0 %v1768
    %1783 = vmatprep.subr.bf16.mxu0 0
    %1784 = vmatpush1.bf16.msra.mxu0 %v1769
    %1785 = vmatprep.subr.bf16.mxu0 0
    %1786 = vmatpush1.bf16.msra.mxu0 0
    %1787 = vmatprep.subr.bf16.mxu0 0
    %1788 = vmatpush1.bf16.msra.mxu0 0
    %1789 = vmatprep.subr.bf16.mxu0 0
    %1790 = vmatpush1.bf16.msra.mxu0 0
    %1791 = vmatprep.subr.bf16.mxu0 0
    %1792 = vmatpush1.bf16.msra.mxu0 0
    %1793 = vmatprep.subr.bf16.mxu0 0
    %1794 = vmatpush1.bf16.msra.mxu0 0
    %1795 = vmatprep.subr.bf16.mxu0 0
    %1796 = vmatpush1.bf16.msra.mxu0 0
    %1797 = vmatprep.subr.bf16.mxu0 0
    %1798 = vmatpush1.bf16.msra.mxu0 0
    %1799 = vmatprep.subr.bf16.mxu0 0
    %1800 = vmatpush1.bf16.msra.mxu0 0
    %1801 = vmatprep.subr.bf16.mxu0 0
    %1802 = vmatpush1.bf16.msra.mxu0 0
    %1803 = vmatprep.subr.bf16.mxu0 0
    %1804 = vmatpush1.bf16.msra.mxu0 0
    %1805 = vmatprep.subr.bf16.mxu0 0
    %1806 = vmatpush1.bf16.msra.mxu0 0
    %1807 = vmatprep.subr.bf16.mxu0 0
    %1808 = vmatpush1.bf16.msra.mxu0 0
    %1809 = vmatprep.mubr.bf16.mxu0 0
    %1810 = vmatmul.mubr.bf16.gmra.mrb[0].mxu0 %v1775
    %v1811 = vpop.f32.mrb[0].mxu0
    %v1812 = vadd.f32 0.0, %v1811
    %v1813 = vpop.f32.mrb[0].mxu0
    %v1814 = vpop.f32.mrb[0].mxu0
    %v1815 = vpop.f32.mrb[0].mxu0
    %1816 = vdwg.mxu0
    %v1821 = vunpack.c.l.b16 %v1737
    %v1822 = vunpack.c.l.b16 %v1738
    %v1823 = vunpack.c.l.b16 %v1739
    %v1824 = vunpack.c.l.b16 %v1740
    %v1825 = vpack.c.b16 %v1822, %v1821
    %v1826 = vpack.c.b16 %v1824, %v1823
    %1829 = vmatprep.subr.bf16.mxu0 0
    %1830 = vmatpush1.bf16.msra.mxu0 %v1825
    %1831 = vmatprep.subr.bf16.mxu0 0
    %1832 = vmatpush1.bf16.msra.mxu0 %v1826
    %1833 = vmatprep.subr.bf16.mxu0 0
    %1834 = vmatpush1.bf16.msra.mxu0 0
    %1835 = vmatprep.subr.bf16.mxu0 0
    %1836 = vmatpush1.bf16.msra.mxu0 0
    %1837 = vmatprep.subr.bf16.mxu0 0
    %1838 = vmatpush1.bf16.msra.mxu0 0
    %1839 = vmatprep.subr.bf16.mxu0 0
    %1840 = vmatpush1.bf16.msra.mxu0 0
    %1841 = vmatprep.subr.bf16.mxu0 0
    %1842 = vmatpush1.bf16.msra.mxu0 0
    %1843 = vmatprep.subr.bf16.mxu0 0
    %1844 = vmatpush1.bf16.msra.mxu0 0
    %1845 = vmatprep.subr.bf16.mxu0 0
    %1846 = vmatpush1.bf16.msra.mxu0 0
    %1847 = vmatprep.subr.bf16.mxu0 0
    %1848 = vmatpush1.bf16.msra.mxu0 0
    %1849 = vmatprep.subr.bf16.mxu0 0
    %1850 = vmatpush1.bf16.msra.mxu0 0
    %1851 = vmatprep.subr.bf16.mxu0 0
    %1852 = vmatpush1.bf16.msra.mxu0 0
    %1853 = vmatprep.subr.bf16.mxu0 0
    %1854 = vmatpush1.bf16.msra.mxu0 0
    %1855 = vmatprep.subr.bf16.mxu0 0
    %1856 = vmatpush1.bf16.msra.mxu0 0
    %1857 = vmatprep.subr.bf16.mxu0 0
    %1858 = vmatpush1.bf16.msra.mxu0 0
    %1859 = vmatprep.subr.bf16.mxu0 0
    %1860 = vmatpush1.bf16.msra.mxu0 0
    %1861 = vmatprep.mubr.bf16.mxu0 0
    %1862 = vmatmul.mubr.bf16.gmra.mrb[0].mxu0 %v223
    %v1863 = vpop.f32.mrb[0].mxu0
    %v1864 = vadd.f32 %v1812, %v1863
    %v1865 = vpop.f32.mrb[0].mxu0
    %v1866 = vpop.f32.mrb[0].mxu0
    %v1867 = vpop.f32.mrb[0].mxu0
    %1868 = vdwg.mxu0
    %v1869 = vpack.c.bf16 %v1736, %v1736
    %v1870 = vld [vmem:[#allocation2 + $0x138] sm:$0xf]
    %v1871 = vld [vmem:[#allocation2 + $0x13c] sm:$0xf]
    %v1872 = vld [vmem:[#allocation2 + $0x140] sm:$0xf]
    %v1873 = vld [vmem:[#allocation2 + $0x144] sm:$0xf]
    %v1874 = vld [vmem:[#allocation2 + $0x148] sm:$0xf]
    %v1875 = vld [vmem:[#allocation2 + $0x14c] sm:$0xf]
    %v1876 = vld [vmem:[#allocation2 + $0x150] sm:$0xf]
    %v1877 = vld [vmem:[#allocation2 + $0x154] sm:$0xf]
    %v1886 = vunpack.c.l.b16 %v1870
    %v1887 = vunpack.c.l.b16 %v1871
    %v1888 = vunpack.c.l.b16 %v1872
    %v1889 = vunpack.c.l.b16 %v1873
    %v1890 = vunpack.c.l.b16 %v1874
    %v1891 = vunpack.c.l.b16 %v1875
    %v1892 = vunpack.c.l.b16 %v1876
    %v1893 = vunpack.c.l.b16 %v1877
    %v1894 = vpack.c.b16 %v1887, %v1886
    %v1895 = vpack.c.b16 %v1889, %v1888
    %v1896 = vpack.c.b16 %v1891, %v1890
    %v1897 = vpack.c.b16 %v1893, %v1892
    %v1903 = vsel %vm155, %v1869, 0
    %1905 = vmatprep.subr.bf16.mxu0 0
    %1906 = vmatpush1.bf16.msra.mxu0 %v1894
    %1907 = vmatprep.subr.bf16.mxu0 0
    %1908 = vmatpush1.bf16.msra.mxu0 %v1895
    %1909 = vmatprep.subr.bf16.mxu0 0
    %1910 = vmatpush1.bf16.msra.mxu0 %v1896
    %1911 = vmatprep.subr.bf16.mxu0 0
    %1912 = vmatpush1.bf16.msra.mxu0 %v1897
    %1913 = vmatprep.subr.bf16.mxu0 0
    %1914 = vmatpush1.bf16.msra.mxu0 0
    %1915 = vmatprep.subr.bf16.mxu0 0
    %1916 = vmatpush1.bf16.msra.mxu0 0
    %1917 = vmatprep.subr.bf16.mxu0 0
    %1918 = vmatpush1.bf16.msra.mxu0 0
    %1919 = vmatprep.subr.bf16.mxu0 0
    %1920 = vmatpush1.bf16.msra.mxu0 0
    %1921 = vmatprep.subr.bf16.mxu0 0
    %1922 = vmatpush1.bf16.msra.mxu0 0
    %1923 = vmatprep.subr.bf16.mxu0 0
    %1924 = vmatpush1.bf16.msra.mxu0 0
    %1925 = vmatprep.subr.bf16.mxu0 0
    %1926 = vmatpush1.bf16.msra.mxu0 0
    %1927 = vmatprep.subr.bf16.mxu0 0
    %1928 = vmatpush1.bf16.msra.mxu0 0
    %1929 = vmatprep.subr.bf16.mxu0 0
    %1930 = vmatpush1.bf16.msra.mxu0 0
    %1931 = vmatprep.subr.bf16.mxu0 0
    %1932 = vmatpush1.bf16.msra.mxu0 0
    %1933 = vmatprep.subr.bf16.mxu0 0
    %1934 = vmatpush1.bf16.msra.mxu0 0
    %1935 = vmatprep.subr.bf16.mxu0 0
    %1936 = vmatpush1.bf16.msra.mxu0 0
    %1937 = vmatprep.mubr.bf16.mxu0 0
    %1938 = vmatmul.mubr.bf16.gmra.mrb[0].mxu0 %v1903
    %v1939 = vpop.f32.mrb[0].mxu0
    %v1940 = vadd.f32 0.0, %v1939
    %v1941 = vpop.f32.mrb[0].mxu0
    %v1942 = vpop.f32.mrb[0].mxu0
    %v1943 = vpop.f32.mrb[0].mxu0
    %1944 = vdwg.mxu0
    %v1945 = vadd.f32 %v1864, %v1940
    %v1946 = vld [vmem:[#allocation4 + $0x68] sm:$0xf]
    %v1947 = vlaneseq
    %v1948 = vshrl.u32 %v1947, 7
    %v1949 = vsub.s32 0, %v1948
    %v1950 = vrot.slane %v1946, %v1949
    %v1951 = vadd.f32 %v1945, %v1950
    %v1952 = vmax.f32 %v1951, 0.0
    %v1953 = vpack.c.bf16 %v1952, %v1952
    %v1954 = vld [vmem:[#allocation2 + $0x158] sm:$0xf]
    %v1955 = vld [vmem:[#allocation2 + $0x15c] sm:$0xf]
    %v1956 = vld [vmem:[#allocation2 + $0x160] sm:$0xf]
    %v1957 = vld [vmem:[#allocation2 + $0x164] sm:$0xf]
    %v1958 = vld [vmem:[#allocation2 + $0x168] sm:$0xf]
    %v1959 = vld [vmem:[#allocation2 + $0x16c] sm:$0xf]
    %v1960 = vld [vmem:[#allocation2 + $0x170] sm:$0xf]
    %v1961 = vld [vmem:[#allocation2 + $0x174] sm:$0xf]
    %v1962 = vld [vmem:[#allocation4 + $0x50] sm:$0x1]
    %v1963 = vlaneseq
    %v1964 = vshrl.u32 %v1963, 7
    %v1965 = vsub.s32 0, %v1964
    %v1966 = vrot.slane %v1962, %v1965
    %v1975 = vunpack.c.l.b16 %v1954
    %v1976 = vunpack.c.l.b16 %v1955
    %v1977 = vunpack.c.l.b16 %v1956
    %v1978 = vunpack.c.l.b16 %v1957
    %v1979 = vunpack.c.l.b16 %v1958
    %v1980 = vunpack.c.l.b16 %v1959
    %v1981 = vunpack.c.l.b16 %v1960
    %v1982 = vunpack.c.l.b16 %v1961
    %v1983 = vpack.c.b16 %v1976, %v1975
    %v1984 = vpack.c.b16 %v1978, %v1977
    %v1985 = vpack.c.b16 %v1980, %v1979
    %v1986 = vpack.c.b16 %v1982, %v1981
    %v1992 = vsel %vm155, %v1953, 0
    %1994 = vmatprep.subr.bf16.mxu0 0
    %1995 = vmatpush1.bf16.msra.mxu0 %v1983
    %1996 = vmatprep.subr.bf16.mxu0 0
    %1997 = vmatpush1.bf16.msra.mxu0 %v1984
    %1998 = vmatprep.subr.bf16.mxu0 0
    %1999 = vmatpush1.bf16.msra.mxu0 %v1985
    %2000 = vmatprep.subr.bf16.mxu0 0
    %2001 = vmatpush1.bf16.msra.mxu0 %v1986
    %2002 = vmatprep.subr.bf16.mxu0 0
    %2003 = vmatpush1.bf16.msra.mxu0 0
    %2004 = vmatprep.subr.bf16.mxu0 0
    %2005 = vmatpush1.bf16.msra.mxu0 0
    %2006 = vmatprep.subr.bf16.mxu0 0
    %2007 = vmatpush1.bf16.msra.mxu0 0
    %2008 = vmatprep.subr.bf16.mxu0 0
    %2009 = vmatpush1.bf16.msra.mxu0 0
    %2010 = vmatprep.subr.bf16.mxu0 0
    %2011 = vmatpush1.bf16.msra.mxu0 0
    %2012 = vmatprep.subr.bf16.mxu0 0
    %2013 = vmatpush1.bf16.msra.mxu0 0
    %2014 = vmatprep.subr.bf16.mxu0 0
    %2015 = vmatpush1.bf16.msra.mxu0 0
    %2016 = vmatprep.subr.bf16.mxu0 0
    %2017 = vmatpush1.bf16.msra.mxu0 0
    %2018 = vmatprep.subr.bf16.mxu0 0
    %2019 = vmatpush1.bf16.msra.mxu0 0
    %2020 = vmatprep.subr.bf16.mxu0 0
    %2021 = vmatpush1.bf16.msra.mxu0 0
    %2022 = vmatprep.subr.bf16.mxu0 0
    %2023 = vmatpush1.bf16.msra.mxu0 0
    %2024 = vmatprep.subr.bf16.mxu0 0
    %2025 = vmatpush1.bf16.msra.mxu0 0
    %2026 = vmatprep.mubr.bf16.mxu0 0
    %2027 = vmatmul.mubr.bf16.gmra.mrb[0].mxu0 %v1992
    %v2028 = vpop.f32.mrb[0].mxu0
    %v2029 = vadd.f32 %v1966, %v2028
    %v2030 = vpop.f32.mrb[0].mxu0
    %v2031 = vpop.f32.mrb[0].mxu0
    %v2032 = vpop.f32.mrb[0].mxu0
    %2033 = vdwg.mxu0
    %v2034 = vpack.c.bf16 %v2029, %v2029
    %v2035 = vld [vmem:[#allocation2 + $0x178] sm:$0xf]
    %v2036 = vld [vmem:[#allocation2 + $0x17c] sm:$0xf]
    %v2037 = vld [vmem:[#allocation2 + $0x180] sm:$0xf]
    %v2038 = vld [vmem:[#allocation2 + $0x184] sm:$0xf]
    %v2039 = vld [vmem:[#allocation2 + $0x188] sm:$0xf]
    %v2040 = vld [vmem:[#allocation2 + $0x18c] sm:$0xf]
    %v2041 = vld [vmem:[#allocation2 + $0x190] sm:$0xf]
    %v2042 = vld [vmem:[#allocation2 + $0x194] sm:$0xf]
    %v2043 = vld [vmem:[#allocation2 + $0x198] sm:$0xf]
    %v2044 = vld [vmem:[#allocation2 + $0x19c] sm:$0xf]
    %v2045 = vld [vmem:[#allocation2 + $0x1a0] sm:$0xf]
    %v2046 = vld [vmem:[#allocation2 + $0x1a4] sm:$0xf]
    %v2047 = vld [vmem:[#allocation2 + $0x1a8] sm:$0xf]
    %v2048 = vld [vmem:[#allocation2 + $0x1ac] sm:$0xf]
    %v2049 = vld [vmem:[#allocation2 + $0x1b0] sm:$0xf]
    %v2050 = vld [vmem:[#allocation2 + $0x1b4] sm:$0xf]
    %v2051 = vld [vmem:[#allocation4 + $0x58] sm:$0x1]
    %v2052 = vlaneseq
    %v2053 = vshrl.u32 %v2052, 7
    %v2054 = vsub.s32 0, %v2053
    %v2055 = vrot.slane %v2051, %v2054
    %v2072 = vunpack.c.l.b16 %v2035
    %v2073 = vunpack.c.l.b16 %v2036
    %v2074 = vunpack.c.l.b16 %v2037
    %v2075 = vunpack.c.l.b16 %v2038
    %v2076 = vunpack.c.l.b16 %v2039
    %v2077 = vunpack.c.l.b16 %v2040
    %v2078 = vunpack.c.l.b16 %v2041
    %v2079 = vunpack.c.l.b16 %v2042
    %v2080 = vunpack.c.l.b16 %v2043
    %v2081 = vunpack.c.l.b16 %v2044
    %v2082 = vunpack.c.l.b16 %v2045
    %v2083 = vunpack.c.l.b16 %v2046
    %v2084 = vunpack.c.l.b16 %v2047
    %v2085 = vunpack.c.l.b16 %v2048
    %v2086 = vunpack.c.l.b16 %v2049
    %v2087 = vunpack.c.l.b16 %v2050
    %v2088 = vpack.c.b16 %v2073, %v2072
    %v2089 = vpack.c.b16 %v2075, %v2074
    %v2090 = vpack.c.b16 %v2077, %v2076
    %v2091 = vpack.c.b16 %v2079, %v2078
    %v2092 = vpack.c.b16 %v2081, %v2080
    %v2093 = vpack.c.b16 %v2083, %v2082
    %v2094 = vpack.c.b16 %v2085, %v2084
    %v2095 = vpack.c.b16 %v2087, %v2086
    %2104 = vmatprep.subr.bf16.mxu0 0
    %2105 = vmatpush1.bf16.msra.mxu0 %v2088
    %2106 = vmatprep.subr.bf16.mxu0 0
    %2107 = vmatpush1.bf16.msra.mxu0 %v2089
    %2108 = vmatprep.subr.bf16.mxu0 0
    %2109 = vmatpush1.bf16.msra.mxu0 %v2090
    %2110 = vmatprep.subr.bf16.mxu0 0
    %2111 = vmatpush1.bf16.msra.mxu0 %v2091
    %2112 = vmatprep.subr.bf16.mxu0 0
    %2113 = vmatpush1.bf16.msra.mxu0 %v2092
    %2114 = vmatprep.subr.bf16.mxu0 0
    %2115 = vmatpush1.bf16.msra.mxu0 %v2093
    %2116 = vmatprep.subr.bf16.mxu0 0
    %2117 = vmatpush1.bf16.msra.mxu0 %v2094
    %2118 = vmatprep.subr.bf16.mxu0 0
    %2119 = vmatpush1.bf16.msra.mxu0 %v2095
    %2120 = vmatprep.subr.bf16.mxu0 0
    %2121 = vmatpush1.bf16.msra.mxu0 0
    %2122 = vmatprep.subr.bf16.mxu0 0
    %2123 = vmatpush1.bf16.msra.mxu0 0
    %2124 = vmatprep.subr.bf16.mxu0 0
    %2125 = vmatpush1.bf16.msra.mxu0 0
    %2126 = vmatprep.subr.bf16.mxu0 0
    %2127 = vmatpush1.bf16.msra.mxu0 0
    %2128 = vmatprep.subr.bf16.mxu0 0
    %2129 = vmatpush1.bf16.msra.mxu0 0
    %2130 = vmatprep.subr.bf16.mxu0 0
    %2131 = vmatpush1.bf16.msra.mxu0 0
    %2132 = vmatprep.subr.bf16.mxu0 0
    %2133 = vmatpush1.bf16.msra.mxu0 0
    %2134 = vmatprep.subr.bf16.mxu0 0
    %2135 = vmatpush1.bf16.msra.mxu0 0
    %2136 = vmatprep.mubr.bf16.mxu0 0
    %2137 = vmatmul.mubr.bf16.gmra.mrb[0].mxu0 %v2034
    %v2138 = vpop.f32.mrb[0].mxu0
    %v2139 = vadd.f32 %v2055, %v2138
    %v2140 = vpop.f32.mrb[0].mxu0
    %v2141 = vpop.f32.mrb[0].mxu0
    %v2142 = vpop.f32.mrb[0].mxu0
    %2143 = vdwg.mxu0
    %v2144 = vmax.f32 %v2139, 0.0
    %v2145 = vpack.c.bf16 %v2144, %v2144
    %v2146 = vld [vmem:[#allocation2 + $0x1b8] sm:$0xf]
    %v2147 = vld [vmem:[#allocation2 + $0x1bc] sm:$0xf]
    %v2148 = vld [vmem:[#allocation2 + $0x1c0] sm:$0xf]
    %v2149 = vld [vmem:[#allocation2 + $0x1c4] sm:$0xf]
    %v2150 = vld [vmem:[#allocation2 + $0x1c8] sm:$0xf]
    %v2151 = vld [vmem:[#allocation2 + $0x1cc] sm:$0xf]
    %v2152 = vld [vmem:[#allocation2 + $0x1d0] sm:$0xf]
    %v2153 = vld [vmem:[#allocation2 + $0x1d4] sm:$0xf]
    %v2154 = vld [vmem:[#allocation2 + $0x1d8] sm:$0xf]
    %v2155 = vld [vmem:[#allocation2 + $0x1dc] sm:$0xf]
    %v2156 = vld [vmem:[#allocation2 + $0x1e0] sm:$0xf]
    %v2157 = vld [vmem:[#allocation2 + $0x1e4] sm:$0xf]
    %v2158 = vld [vmem:[#allocation2 + $0x1e8] sm:$0xf]
    %v2159 = vld [vmem:[#allocation2 + $0x1ec] sm:$0xf]
    %v2160 = vld [vmem:[#allocation2 + $0x1f0] sm:$0xf]
    %v2161 = vld [vmem:[#allocation2 + $0x1f4] sm:$0xf]
    %v2162 = vld [vmem:[#allocation4 + $0x60] sm:$0x1]
    %v2163 = vlaneseq
    %v2164 = vshrl.u32 %v2163, 7
    %v2165 = vsub.s32 0, %v2164
    %v2166 = vrot.slane %v2162, %v2165
    %v2183 = vunpack.c.l.b16 %v2146
    %v2184 = vunpack.c.l.b16 %v2147
    %v2185 = vunpack.c.l.b16 %v2148
    %v2186 = vunpack.c.l.b16 %v2149
    %v2187 = vunpack.c.l.b16 %v2150
    %v2188 = vunpack.c.l.b16 %v2151
    %v2189 = vunpack.c.l.b16 %v2152
    %v2190 = vunpack.c.l.b16 %v2153
    %v2191 = vunpack.c.l.b16 %v2154
    %v2192 = vunpack.c.l.b16 %v2155
    %v2193 = vunpack.c.l.b16 %v2156
    %v2194 = vunpack.c.l.b16 %v2157
    %v2195 = vunpack.c.l.b16 %v2158
    %v2196 = vunpack.c.l.b16 %v2159
    %v2197 = vunpack.c.l.b16 %v2160
    %v2198 = vunpack.c.l.b16 %v2161
    %v2199 = vpack.c.b16 %v2184, %v2183
    %v2200 = vpack.c.b16 %v2186, %v2185
    %v2201 = vpack.c.b16 %v2188, %v2187
    %v2202 = vpack.c.b16 %v2190, %v2189
    %v2203 = vpack.c.b16 %v2192, %v2191
    %v2204 = vpack.c.b16 %v2194, %v2193
    %v2205 = vpack.c.b16 %v2196, %v2195
    %v2206 = vpack.c.b16 %v2198, %v2197
    %2215 = vmatprep.subr.bf16.mxu0 0
    %2216 = vmatpush1.bf16.msra.mxu0 %v2199
    %2217 = vmatprep.subr.bf16.mxu0 0
    %2218 = vmatpush1.bf16.msra.mxu0 %v2200
    %2219 = vmatprep.subr.bf16.mxu0 0
    %2220 = vmatpush1.bf16.msra.mxu0 %v2201
    %2221 = vmatprep.subr.bf16.mxu0 0
    %2222 = vmatpush1.bf16.msra.mxu0 %v2202
    %2223 = vmatprep.subr.bf16.mxu0 0
    %2224 = vmatpush1.bf16.msra.mxu0 %v2203
    %2225 = vmatprep.subr.bf16.mxu0 0
    %2226 = vmatpush1.bf16.msra.mxu0 %v2204
    %2227 = vmatprep.subr.bf16.mxu0 0
    %2228 = vmatpush1.bf16.msra.mxu0 %v2205
    %2229 = vmatprep.subr.bf16.mxu0 0
    %2230 = vmatpush1.bf16.msra.mxu0 %v2206
    %2231 = vmatprep.subr.bf16.mxu0 0
    %2232 = vmatpush1.bf16.msra.mxu0 0
    %2233 = vmatprep.subr.bf16.mxu0 0
    %2234 = vmatpush1.bf16.msra.mxu0 0
    %2235 = vmatprep.subr.bf16.mxu0 0
    %2236 = vmatpush1.bf16.msra.mxu0 0
    %2237 = vmatprep.subr.bf16.mxu0 0
    %2238 = vmatpush1.bf16.msra.mxu0 0
    %2239 = vmatprep.subr.bf16.mxu0 0
    %2240 = vmatpush1.bf16.msra.mxu0 0
    %2241 = vmatprep.subr.bf16.mxu0 0
    %2242 = vmatpush1.bf16.msra.mxu0 0
    %2243 = vmatprep.subr.bf16.mxu0 0
    %2244 = vmatpush1.bf16.msra.mxu0 0
    %2245 = vmatprep.subr.bf16.mxu0 0
    %2246 = vmatpush1.bf16.msra.mxu0 0
    %2247 = vmatprep.mubr.bf16.mxu0 0
    %2248 = vmatmul.mubr.bf16.gmra.mrb[0].mxu0 %v2145
    %v2249 = vpop.f32.mrb[0].mxu0
    %v2250 = vadd.f32 %v2166, %v2249
    %v2251 = vpop.f32.mrb[0].mxu0
    %v2252 = vpop.f32.mrb[0].mxu0
    %v2253 = vpop.f32.mrb[0].mxu0
    %2254 = vdwg.mxu0
    %v2255 = vpack.c.bf16 %v2250, %v2250
    %2256 = vst [vmem:[%s5] sm:$0x1] %v2255
    %v2257 = vlaneseq
    %v2258 = vshrl.u32 %v2257, 7
    %v2259 = vsub.s32 1, %v2258
    %v2260 = vrot.slane %v1946, %v2259
    %v2261 = vadd.f32 %v1945, %v2260
    %v2262 = vmax.f32 %v2261, 0.0
    %v2263 = vpack.c.bf16 %v2262, %v2262
    %v2264 = vld [vmem:[#allocation2 + $0x158] sm:$0xf]
    %v2265 = vld [vmem:[#allocation2 + $0x15c] sm:$0xf]
    %v2266 = vld [vmem:[#allocation2 + $0x160] sm:$0xf]
    %v2267 = vld [vmem:[#allocation2 + $0x164] sm:$0xf]
    %v2268 = vld [vmem:[#allocation2 + $0x168] sm:$0xf]
    %v2269 = vld [vmem:[#allocation2 + $0x16c] sm:$0xf]
    %v2270 = vld [vmem:[#allocation2 + $0x170] sm:$0xf]
    %v2271 = vld [vmem:[#allocation2 + $0x174] sm:$0xf]
    %v2272 = vld [vmem:[#allocation4 + $0x50] sm:$0x1]
    %v2273 = vlaneseq
    %v2274 = vshrl.u32 %v2273, 7
    %v2275 = vsub.s32 0, %v2274
    %v2276 = vrot.slane %v2272, %v2275
    %v2285 = vunpack.c.l.b16 %v2264
    %v2286 = vunpack.c.l.b16 %v2265
    %v2287 = vunpack.c.l.b16 %v2266
    %v2288 = vunpack.c.l.b16 %v2267
    %v2289 = vunpack.c.l.b16 %v2268
    %v2290 = vunpack.c.l.b16 %v2269
    %v2291 = vunpack.c.l.b16 %v2270
    %v2292 = vunpack.c.l.b16 %v2271
    %v2293 = vpack.c.b16 %v2286, %v2285
    %v2294 = vpack.c.b16 %v2288, %v2287
    %v2295 = vpack.c.b16 %v2290, %v2289
    %v2296 = vpack.c.b16 %v2292, %v2291
    %v2302 = vsel %vm155, %v2263, 0
    %2304 = vmatprep.subr.bf16.mxu0 0
    %2305 = vmatpush1.bf16.msra.mxu0 %v2293
    %2306 = vmatprep.subr.bf16.mxu0 0
    %2307 = vmatpush1.bf16.msra.mxu0 %v2294
    %2308 = vmatprep.subr.bf16.mxu0 0
    %2309 = vmatpush1.bf16.msra.mxu0 %v2295
    %2310 = vmatprep.subr.bf16.mxu0 0
    %2311 = vmatpush1.bf16.msra.mxu0 %v2296
    %2312 = vmatprep.subr.bf16.mxu0 0
    %2313 = vmatpush1.bf16.msra.mxu0 0
    %2314 = vmatprep.subr.bf16.mxu0 0
    %2315 = vmatpush1.bf16.msra.mxu0 0
    %2316 = vmatprep.subr.bf16.mxu0 0
    %2317 = vmatpush1.bf16.msra.mxu0 0
    %2318 = vmatprep.subr.bf16.mxu0 0
    %2319 = vmatpush1.bf16.msra.mxu0 0
    %2320 = vmatprep.subr.bf16.mxu0 0
    %2321 = vmatpush1.bf16.msra.mxu0 0
    %2322 = vmatprep.subr.bf16.mxu0 0
    %2323 = vmatpush1.bf16.msra.mxu0 0
    %2324 = vmatprep.subr.bf16.mxu0 0
    %2325 = vmatpush1.bf16.msra.mxu0 0
    %2326 = vmatprep.subr.bf16.mxu0 0
    %2327 = vmatpush1.bf16.msra.mxu0 0
    %2328 = vmatprep.subr.bf16.mxu0 0
    %2329 = vmatpush1.bf16.msra.mxu0 0
    %2330 = vmatprep.subr.bf16.mxu0 0
    %2331 = vmatpush1.bf16.msra.mxu0 0
    %2332 = vmatprep.subr.bf16.mxu0 0
    %2333 = vmatpush1.bf16.msra.mxu0 0
    %2334 = vmatprep.subr.bf16.mxu0 0
    %2335 = vmatpush1.bf16.msra.mxu0 0
    %2336 = vmatprep.mubr.bf16.mxu0 0
    %2337 = vmatmul.mubr.bf16.gmra.mrb[0].mxu0 %v2302
    %v2338 = vpop.f32.mrb[0].mxu0
    %v2339 = vadd.f32 %v2276, %v2338
    %v2340 = vpop.f32.mrb[0].mxu0
    %v2341 = vpop.f32.mrb[0].mxu0
    %v2342 = vpop.f32.mrb[0].mxu0
    %2343 = vdwg.mxu0
    %v2344 = vpack.c.bf16 %v2339, %v2339
    %v2345 = vld [vmem:[#allocation2 + $0x178] sm:$0xf]
    %v2346 = vld [vmem:[#allocation2 + $0x17c] sm:$0xf]
    %v2347 = vld [vmem:[#allocation2 + $0x180] sm:$0xf]
    %v2348 = vld [vmem:[#allocation2 + $0x184] sm:$0xf]
    %v2349 = vld [vmem:[#allocation2 + $0x188] sm:$0xf]
    %v2350 = vld [vmem:[#allocation2 + $0x18c] sm:$0xf]
    %v2351 = vld [vmem:[#allocation2 + $0x190] sm:$0xf]
    %v2352 = vld [vmem:[#allocation2 + $0x194] sm:$0xf]
    %v2353 = vld [vmem:[#allocation2 + $0x198] sm:$0xf]
    %v2354 = vld [vmem:[#allocation2 + $0x19c] sm:$0xf]
    %v2355 = vld [vmem:[#allocation2 + $0x1a0] sm:$0xf]
    %v2356 = vld [vmem:[#allocation2 + $0x1a4] sm:$0xf]
    %v2357 = vld [vmem:[#allocation2 + $0x1a8] sm:$0xf]
    %v2358 = vld [vmem:[#allocation2 + $0x1ac] sm:$0xf]
    %v2359 = vld [vmem:[#allocation2 + $0x1b0] sm:$0xf]
    %v2360 = vld [vmem:[#allocation2 + $0x1b4] sm:$0xf]
    %v2361 = vld [vmem:[#allocation4 + $0x58] sm:$0x1]
    %v2362 = vlaneseq
    %v2363 = vshrl.u32 %v2362, 7
    %v2364 = vsub.s32 0, %v2363
    %v2365 = vrot.slane %v2361, %v2364
    %v2382 = vunpack.c.l.b16 %v2345
    %v2383 = vunpack.c.l.b16 %v2346
    %v2384 = vunpack.c.l.b16 %v2347
    %v2385 = vunpack.c.l.b16 %v2348
    %v2386 = vunpack.c.l.b16 %v2349
    %v2387 = vunpack.c.l.b16 %v2350
    %v2388 = vunpack.c.l.b16 %v2351
    %v2389 = vunpack.c.l.b16 %v2352
    %v2390 = vunpack.c.l.b16 %v2353
    %v2391 = vunpack.c.l.b16 %v2354
    %v2392 = vunpack.c.l.b16 %v2355
    %v2393 = vunpack.c.l.b16 %v2356
    %v2394 = vunpack.c.l.b16 %v2357
    %v2395 = vunpack.c.l.b16 %v2358
    %v2396 = vunpack.c.l.b16 %v2359
    %v2397 = vunpack.c.l.b16 %v2360
    %v2398 = vpack.c.b16 %v2383, %v2382
    %v2399 = vpack.c.b16 %v2385, %v2384
    %v2400 = vpack.c.b16 %v2387, %v2386
    %v2401 = vpack.c.b16 %v2389, %v2388
    %v2402 = vpack.c.b16 %v2391, %v2390
    %v2403 = vpack.c.b16 %v2393, %v2392
    %v2404 = vpack.c.b16 %v2395, %v2394
    %v2405 = vpack.c.b16 %v2397, %v2396
    %2414 = vmatprep.subr.bf16.mxu0 0
    %2415 = vmatpush1.bf16.msra.mxu0 %v2398
    %2416 = vmatprep.subr.bf16.mxu0 0
    %2417 = vmatpush1.bf16.msra.mxu0 %v2399
    %2418 = vmatprep.subr.bf16.mxu0 0
    %2419 = vmatpush1.bf16.msra.mxu0 %v2400
    %2420 = vmatprep.subr.bf16.mxu0 0
    %2421 = vmatpush1.bf16.msra.mxu0 %v2401
    %2422 = vmatprep.subr.bf16.mxu0 0
    %2423 = vmatpush1.bf16.msra.mxu0 %v2402
    %2424 = vmatprep.subr.bf16.mxu0 0
    %2425 = vmatpush1.bf16.msra.mxu0 %v2403
    %2426 = vmatprep.subr.bf16.mxu0 0
    %2427 = vmatpush1.bf16.msra.mxu0 %v2404
    %2428 = vmatprep.subr.bf16.mxu0 0
    %2429 = vmatpush1.bf16.msra.mxu0 %v2405
    %2430 = vmatprep.subr.bf16.mxu0 0
    %2431 = vmatpush1.bf16.msra.mxu0 0
    %2432 = vmatprep.subr.bf16.mxu0 0
    %2433 = vmatpush1.bf16.msra.mxu0 0
    %2434 = vmatprep.subr.bf16.mxu0 0
    %2435 = vmatpush1.bf16.msra.mxu0 0
    %2436 = vmatprep.subr.bf16.mxu0 0
    %2437 = vmatpush1.bf16.msra.mxu0 0
    %2438 = vmatprep.subr.bf16.mxu0 0
    %2439 = vmatpush1.bf16.msra.mxu0 0
    %2440 = vmatprep.subr.bf16.mxu0 0
    %2441 = vmatpush1.bf16.msra.mxu0 0
    %2442 = vmatprep.subr.bf16.mxu0 0
    %2443 = vmatpush1.bf16.msra.mxu0 0
    %2444 = vmatprep.subr.bf16.mxu0 0
    %2445 = vmatpush1.bf16.msra.mxu0 0
    %2446 = vmatprep.mubr.bf16.mxu0 0
    %2447 = vmatmul.mubr.bf16.gmra.mrb[0].mxu0 %v2344
    %v2448 = vpop.f32.mrb[0].mxu0
    %v2449 = vadd.f32 %v2365, %v2448
    %v2450 = vpop.f32.mrb[0].mxu0
    %v2451 = vpop.f32.mrb[0].mxu0
    %v2452 = vpop.f32.mrb[0].mxu0
    %2453 = vdwg.mxu0
    %v2454 = vmax.f32 %v2449, 0.0
    %v2455 = vpack.c.bf16 %v2454, %v2454
    %v2456 = vld [vmem:[#allocation2 + $0x1b8] sm:$0xf]
    %v2457 = vld [vmem:[#allocation2 + $0x1bc] sm:$0xf]
    %v2458 = vld [vmem:[#allocation2 + $0x1c0] sm:$0xf]
    %v2459 = vld [vmem:[#allocation2 + $0x1c4] sm:$0xf]
    %v2460 = vld [vmem:[#allocation2 + $0x1c8] sm:$0xf]
    %v2461 = vld [vmem:[#allocation2 + $0x1cc] sm:$0xf]
    %v2462 = vld [vmem:[#allocation2 + $0x1d0] sm:$0xf]
    %v2463 = vld [vmem:[#allocation2 + $0x1d4] sm:$0xf]
    %v2464 = vld [vmem:[#allocation2 + $0x1d8] sm:$0xf]
    %v2465 = vld [vmem:[#allocation2 + $0x1dc] sm:$0xf]
    %v2466 = vld [vmem:[#allocation2 + $0x1e0] sm:$0xf]
    %v2467 = vld [vmem:[#allocation2 + $0x1e4] sm:$0xf]
    %v2468 = vld [vmem:[#allocation2 + $0x1e8] sm:$0xf]
    %v2469 = vld [vmem:[#allocation2 + $0x1ec] sm:$0xf]
    %v2470 = vld [vmem:[#allocation2 + $0x1f0] sm:$0xf]
    %v2471 = vld [vmem:[#allocation2 + $0x1f4] sm:$0xf]
    %v2472 = vld [vmem:[#allocation4 + $0x60] sm:$0x1]
    %v2473 = vlaneseq
    %v2474 = vshrl.u32 %v2473, 7
    %v2475 = vsub.s32 0, %v2474
    %v2476 = vrot.slane %v2472, %v2475
    %v2493 = vunpack.c.l.b16 %v2456
    %v2494 = vunpack.c.l.b16 %v2457
    %v2495 = vunpack.c.l.b16 %v2458
    %v2496 = vunpack.c.l.b16 %v2459
    %v2497 = vunpack.c.l.b16 %v2460
    %v2498 = vunpack.c.l.b16 %v2461
    %v2499 = vunpack.c.l.b16 %v2462
    %v2500 = vunpack.c.l.b16 %v2463
    %v2501 = vunpack.c.l.b16 %v2464
    %v2502 = vunpack.c.l.b16 %v2465
    %v2503 = vunpack.c.l.b16 %v2466
    %v2504 = vunpack.c.l.b16 %v2467
    %v2505 = vunpack.c.l.b16 %v2468
    %v2506 = vunpack.c.l.b16 %v2469
    %v2507 = vunpack.c.l.b16 %v2470
    %v2508 = vunpack.c.l.b16 %v2471
    %v2509 = vpack.c.b16 %v2494, %v2493
    %v2510 = vpack.c.b16 %v2496, %v2495
    %v2511 = vpack.c.b16 %v2498, %v2497
    %v2512 = vpack.c.b16 %v2500, %v2499
    %v2513 = vpack.c.b16 %v2502, %v2501
    %v2514 = vpack.c.b16 %v2504, %v2503
    %v2515 = vpack.c.b16 %v2506, %v2505
    %v2516 = vpack.c.b16 %v2508, %v2507
    %2525 = vmatprep.subr.bf16.mxu0 0
    %2526 = vmatpush1.bf16.msra.mxu0 %v2509
    %2527 = vmatprep.subr.bf16.mxu0 0
    %2528 = vmatpush1.bf16.msra.mxu0 %v2510
    %2529 = vmatprep.subr.bf16.mxu0 0
    %2530 = vmatpush1.bf16.msra.mxu0 %v2511
    %2531 = vmatprep.subr.bf16.mxu0 0
    %2532 = vmatpush1.bf16.msra.mxu0 %v2512
    %2533 = vmatprep.subr.bf16.mxu0 0
    %2534 = vmatpush1.bf16.msra.mxu0 %v2513
    %2535 = vmatprep.subr.bf16.mxu0 0
    %2536 = vmatpush1.bf16.msra.mxu0 %v2514
    %2537 = vmatprep.subr.bf16.mxu0 0
    %2538 = vmatpush1.bf16.msra.mxu0 %v2515
    %2539 = vmatprep.subr.bf16.mxu0 0
    %2540 = vmatpush1.bf16.msra.mxu0 %v2516
    %2541 = vmatprep.subr.bf16.mxu0 0
    %2542 = vmatpush1.bf16.msra.mxu0 0
    %2543 = vmatprep.subr.bf16.mxu0 0
    %2544 = vmatpush1.bf16.msra.mxu0 0
    %2545 = vmatprep.subr.bf16.mxu0 0
    %2546 = vmatpush1.bf16.msra.mxu0 0
    %2547 = vmatprep.subr.bf16.mxu0 0
    %2548 = vmatpush1.bf16.msra.mxu0 0
    %2549 = vmatprep.subr.bf16.mxu0 0
    %2550 = vmatpush1.bf16.msra.mxu0 0
    %2551 = vmatprep.subr.bf16.mxu0 0
    %2552 = vmatpush1.bf16.msra.mxu0 0
    %2553 = vmatprep.subr.bf16.mxu0 0
    %2554 = vmatpush1.bf16.msra.mxu0 0
    %2555 = vmatprep.subr.bf16.mxu0 0
    %2556 = vmatpush1.bf16.msra.mxu0 0
    %2557 = vmatprep.mubr.bf16.mxu0 0
    %2558 = vmatmul.mubr.bf16.gmra.mrb[0].mxu0 %v2455
    %v2559 = vpop.f32.mrb[0].mxu0
    %v2560 = vadd.f32 %v2476, %v2559
    %v2561 = vpop.f32.mrb[0].mxu0
    %v2562 = vpop.f32.mrb[0].mxu0
    %v2563 = vpop.f32.mrb[0].mxu0
    %2564 = vdwg.mxu0
    %v2565 = vpack.c.bf16 %v2560, %v2560
    %s2566 = scalar_lea.vmem %s5, 1
    %2567 = vst [vmem:[%s2566] sm:$0x1] %v2565
    %v2568 = vlaneseq
    %v2569 = vshrl.u32 %v2568, 7
    %v2570 = vsub.s32 2, %v2569
    %v2571 = vrot.slane %v1946, %v2570
    %v2572 = vadd.f32 %v1945, %v2571
    %v2573 = vmax.f32 %v2572, 0.0
    %v2574 = vpack.c.bf16 %v2573, %v2573
    %v2575 = vld [vmem:[#allocation2 + $0x158] sm:$0xf]
    %v2576 = vld [vmem:[#allocation2 + $0x15c] sm:$0xf]
    %v2577 = vld [vmem:[#allocation2 + $0x160] sm:$0xf]
    %v2578 = vld [vmem:[#allocation2 + $0x164] sm:$0xf]
    %v2579 = vld [vmem:[#allocation2 + $0x168] sm:$0xf]
    %v2580 = vld [vmem:[#allocation2 + $0x16c] sm:$0xf]
    %v2581 = vld [vmem:[#allocation2 + $0x170] sm:$0xf]
    %v2582 = vld [vmem:[#allocation2 + $0x174] sm:$0xf]
    %v2583 = vld [vmem:[#allocation4 + $0x50] sm:$0x1]
    %v2584 = vlaneseq
    %v2585 = vshrl.u32 %v2584, 7
    %v2586 = vsub.s32 0, %v2585
    %v2587 = vrot.slane %v2583, %v2586
    %v2596 = vunpack.c.l.b16 %v2575
    %v2597 = vunpack.c.l.b16 %v2576
    %v2598 = vunpack.c.l.b16 %v2577
    %v2599 = vunpack.c.l.b16 %v2578
    %v2600 = vunpack.c.l.b16 %v2579
    %v2601 = vunpack.c.l.b16 %v2580
    %v2602 = vunpack.c.l.b16 %v2581
    %v2603 = vunpack.c.l.b16 %v2582
    %v2604 = vpack.c.b16 %v2597, %v2596
    %v2605 = vpack.c.b16 %v2599, %v2598
    %v2606 = vpack.c.b16 %v2601, %v2600
    %v2607 = vpack.c.b16 %v2603, %v2602
    %v2613 = vsel %vm155, %v2574, 0
    %2615 = vmatprep.subr.bf16.mxu0 0
    %2616 = vmatpush1.bf16.msra.mxu0 %v2604
    %2617 = vmatprep.subr.bf16.mxu0 0
    %2618 = vmatpush1.bf16.msra.mxu0 %v2605
    %2619 = vmatprep.subr.bf16.mxu0 0
    %2620 = vmatpush1.bf16.msra.mxu0 %v2606
    %2621 = vmatprep.subr.bf16.mxu0 0
    %2622 = vmatpush1.bf16.msra.mxu0 %v2607
    %2623 = vmatprep.subr.bf16.mxu0 0
    %2624 = vmatpush1.bf16.msra.mxu0 0
    %2625 = vmatprep.subr.bf16.mxu0 0
    %2626 = vmatpush1.bf16.msra.mxu0 0
    %2627 = vmatprep.subr.bf16.mxu0 0
    %2628 = vmatpush1.bf16.msra.mxu0 0
    %2629 = vmatprep.subr.bf16.mxu0 0
    %2630 = vmatpush1.bf16.msra.mxu0 0
    %2631 = vmatprep.subr.bf16.mxu0 0
    %2632 = vmatpush1.bf16.msra.mxu0 0
    %2633 = vmatprep.subr.bf16.mxu0 0
    %2634 = vmatpush1.bf16.msra.mxu0 0
    %2635 = vmatprep.subr.bf16.mxu0 0
    %2636 = vmatpush1.bf16.msra.mxu0 0
    %2637 = vmatprep.subr.bf16.mxu0 0
    %2638 = vmatpush1.bf16.msra.mxu0 0
    %2639 = vmatprep.subr.bf16.mxu0 0
    %2640 = vmatpush1.bf16.msra.mxu0 0
    %2641 = vmatprep.subr.bf16.mxu0 0
    %2642 = vmatpush1.bf16.msra.mxu0 0
    %2643 = vmatprep.subr.bf16.mxu0 0
    %2644 = vmatpush1.bf16.msra.mxu0 0
    %2645 = vmatprep.subr.bf16.mxu0 0
    %2646 = vmatpush1.bf16.msra.mxu0 0
    %2647 = vmatprep.mubr.bf16.mxu0 0
    %2648 = vmatmul.mubr.bf16.gmra.mrb[0].mxu0 %v2613
    %v2649 = vpop.f32.mrb[0].mxu0
    %v2650 = vadd.f32 %v2587, %v2649
    %v2651 = vpop.f32.mrb[0].mxu0
    %v2652 = vpop.f32.mrb[0].mxu0
    %v2653 = vpop.f32.mrb[0].mxu0
    %2654 = vdwg.mxu0
    %v2655 = vpack.c.bf16 %v2650, %v2650
    %v2656 = vld [vmem:[#allocation2 + $0x178] sm:$0xf]
    %v2657 = vld [vmem:[#allocation2 + $0x17c] sm:$0xf]
    %v2658 = vld [vmem:[#allocation2 + $0x180] sm:$0xf]
    %v2659 = vld [vmem:[#allocation2 + $0x184] sm:$0xf]
    %v2660 = vld [vmem:[#allocation2 + $0x188] sm:$0xf]
    %v2661 = vld [vmem:[#allocation2 + $0x18c] sm:$0xf]
    %v2662 = vld [vmem:[#allocation2 + $0x190] sm:$0xf]
    %v2663 = vld [vmem:[#allocation2 + $0x194] sm:$0xf]
    %v2664 = vld [vmem:[#allocation2 + $0x198] sm:$0xf]
    %v2665 = vld [vmem:[#allocation2 + $0x19c] sm:$0xf]
    %v2666 = vld [vmem:[#allocation2 + $0x1a0] sm:$0xf]
    %v2667 = vld [vmem:[#allocation2 + $0x1a4] sm:$0xf]
    %v2668 = vld [vmem:[#allocation2 + $0x1a8] sm:$0xf]
    %v2669 = vld [vmem:[#allocation2 + $0x1ac] sm:$0xf]
    %v2670 = vld [vmem:[#allocation2 + $0x1b0] sm:$0xf]
    %v2671 = vld [vmem:[#allocation2 + $0x1b4] sm:$0xf]
    %v2672 = vld [vmem:[#allocation4 + $0x58] sm:$0x1]
    %v2673 = vlaneseq
    %v2674 = vshrl.u32 %v2673, 7
    %v2675 = vsub.s32 0, %v2674
    %v2676 = vrot.slane %v2672, %v2675
    %v2693 = vunpack.c.l.b16 %v2656
    %v2694 = vunpack.c.l.b16 %v2657
    %v2695 = vunpack.c.l.b16 %v2658
    %v2696 = vunpack.c.l.b16 %v2659
    %v2697 = vunpack.c.l.b16 %v2660
    %v2698 = vunpack.c.l.b16 %v2661
    %v2699 = vunpack.c.l.b16 %v2662
    %v2700 = vunpack.c.l.b16 %v2663
    %v2701 = vunpack.c.l.b16 %v2664
    %v2702 = vunpack.c.l.b16 %v2665
    %v2703 = vunpack.c.l.b16 %v2666
    %v2704 = vunpack.c.l.b16 %v2667
    %v2705 = vunpack.c.l.b16 %v2668
    %v2706 = vunpack.c.l.b16 %v2669
    %v2707 = vunpack.c.l.b16 %v2670
    %v2708 = vunpack.c.l.b16 %v2671
    %v2709 = vpack.c.b16 %v2694, %v2693
    %v2710 = vpack.c.b16 %v2696, %v2695
    %v2711 = vpack.c.b16 %v2698, %v2697
    %v2712 = vpack.c.b16 %v2700, %v2699
    %v2713 = vpack.c.b16 %v2702, %v2701
    %v2714 = vpack.c.b16 %v2704, %v2703
    %v2715 = vpack.c.b16 %v2706, %v2705
    %v2716 = vpack.c.b16 %v2708, %v2707
    %2725 = vmatprep.subr.bf16.mxu0 0
    %2726 = vmatpush1.bf16.msra.mxu0 %v2709
    %2727 = vmatprep.subr.bf16.mxu0 0
    %2728 = vmatpush1.bf16.msra.mxu0 %v2710
    %2729 = vmatprep.subr.bf16.mxu0 0
    %2730 = vmatpush1.bf16.msra.mxu0 %v2711
    %2731 = vmatprep.subr.bf16.mxu0 0
    %2732 = vmatpush1.bf16.msra.mxu0 %v2712
    %2733 = vmatprep.subr.bf16.mxu0 0
    %2734 = vmatpush1.bf16.msra.mxu0 %v2713
    %2735 = vmatprep.subr.bf16.mxu0 0
    %2736 = vmatpush1.bf16.msra.mxu0 %v2714
    %2737 = vmatprep.subr.bf16.mxu0 0
    %2738 = vmatpush1.bf16.msra.mxu0 %v2715
    %2739 = vmatprep.subr.bf16.mxu0 0
    %2740 = vmatpush1.bf16.msra.mxu0 %v2716
    %2741 = vmatprep.subr.bf16.mxu0 0
    %2742 = vmatpush1.bf16.msra.mxu0 0
    %2743 = vmatprep.subr.bf16.mxu0 0
    %2744 = vmatpush1.bf16.msra.mxu0 0
    %2745 = vmatprep.subr.bf16.mxu0 0
    %2746 = vmatpush1.bf16.msra.mxu0 0
    %2747 = vmatprep.subr.bf16.mxu0 0
    %2748 = vmatpush1.bf16.msra.mxu0 0
    %2749 = vmatprep.subr.bf16.mxu0 0
    %2750 = vmatpush1.bf16.msra.mxu0 0
    %2751 = vmatprep.subr.bf16.mxu0 0
    %2752 = vmatpush1.bf16.msra.mxu0 0
    %2753 = vmatprep.subr.bf16.mxu0 0
    %2754 = vmatpush1.bf16.msra.mxu0 0
    %2755 = vmatprep.subr.bf16.mxu0 0
    %2756 = vmatpush1.bf16.msra.mxu0 0
    %2757 = vmatprep.mubr.bf16.mxu0 0
    %2758 = vmatmul.mubr.bf16.gmra.mrb[0].mxu0 %v2655
    %v2759 = vpop.f32.mrb[0].mxu0
    %v2760 = vadd.f32 %v2676, %v2759
    %v2761 = vpop.f32.mrb[0].mxu0
    %v2762 = vpop.f32.mrb[0].mxu0
    %v2763 = vpop.f32.mrb[0].mxu0
    %2764 = vdwg.mxu0
    %v2765 = vmax.f32 %v2760, 0.0
    %v2766 = vpack.c.bf16 %v2765, %v2765
    %v2767 = vld [vmem:[#allocation2 + $0x1b8] sm:$0xf]
    %v2768 = vld [vmem:[#allocation2 + $0x1bc] sm:$0xf]
    %v2769 = vld [vmem:[#allocation2 + $0x1c0] sm:$0xf]
    %v2770 = vld [vmem:[#allocation2 + $0x1c4] sm:$0xf]
    %v2771 = vld [vmem:[#allocation2 + $0x1c8] sm:$0xf]
    %v2772 = vld [vmem:[#allocation2 + $0x1cc] sm:$0xf]
    %v2773 = vld [vmem:[#allocation2 + $0x1d0] sm:$0xf]
    %v2774 = vld [vmem:[#allocation2 + $0x1d4] sm:$0xf]
    %v2775 = vld [vmem:[#allocation2 + $0x1d8] sm:$0xf]
    %v2776 = vld [vmem:[#allocation2 + $0x1dc] sm:$0xf]
    %v2777 = vld [vmem:[#allocation2 + $0x1e0] sm:$0xf]
    %v2778 = vld [vmem:[#allocation2 + $0x1e4] sm:$0xf]
    %v2779 = vld [vmem:[#allocation2 + $0x1e8] sm:$0xf]
    %v2780 = vld [vmem:[#allocation2 + $0x1ec] sm:$0xf]
    %v2781 = vld [vmem:[#allocation2 + $0x1f0] sm:$0xf]
    %v2782 = vld [vmem:[#allocation2 + $0x1f4] sm:$0xf]
    %v2783 = vld [vmem:[#allocation4 + $0x60] sm:$0x1]
    %v2784 = vlaneseq
    %v2785 = vshrl.u32 %v2784, 7
    %v2786 = vsub.s32 0, %v2785
    %v2787 = vrot.slane %v2783, %v2786
    %v2804 = vunpack.c.l.b16 %v2767
    %v2805 = vunpack.c.l.b16 %v2768
    %v2806 = vunpack.c.l.b16 %v2769
    %v2807 = vunpack.c.l.b16 %v2770
    %v2808 = vunpack.c.l.b16 %v2771
    %v2809 = vunpack.c.l.b16 %v2772
    %v2810 = vunpack.c.l.b16 %v2773
    %v2811 = vunpack.c.l.b16 %v2774
    %v2812 = vunpack.c.l.b16 %v2775
    %v2813 = vunpack.c.l.b16 %v2776
    %v2814 = vunpack.c.l.b16 %v2777
    %v2815 = vunpack.c.l.b16 %v2778
    %v2816 = vunpack.c.l.b16 %v2779
    %v2817 = vunpack.c.l.b16 %v2780
    %v2818 = vunpack.c.l.b16 %v2781
    %v2819 = vunpack.c.l.b16 %v2782
    %v2820 = vpack.c.b16 %v2805, %v2804
    %v2821 = vpack.c.b16 %v2807, %v2806
    %v2822 = vpack.c.b16 %v2809, %v2808
    %v2823 = vpack.c.b16 %v2811, %v2810
    %v2824 = vpack.c.b16 %v2813, %v2812
    %v2825 = vpack.c.b16 %v2815, %v2814
    %v2826 = vpack.c.b16 %v2817, %v2816
    %v2827 = vpack.c.b16 %v2819, %v2818
    %2836 = vmatprep.subr.bf16.mxu0 0
    %2837 = vmatpush1.bf16.msra.mxu0 %v2820
    %2838 = vmatprep.subr.bf16.mxu0 0
    %2839 = vmatpush1.bf16.msra.mxu0 %v2821
    %2840 = vmatprep.subr.bf16.mxu0 0
    %2841 = vmatpush1.bf16.msra.mxu0 %v2822
    %2842 = vmatprep.subr.bf16.mxu0 0
    %2843 = vmatpush1.bf16.msra.mxu0 %v2823
    %2844 = vmatprep.subr.bf16.mxu0 0
    %2845 = vmatpush1.bf16.msra.mxu0 %v2824
    %2846 = vmatprep.subr.bf16.mxu0 0
    %2847 = vmatpush1.bf16.msra.mxu0 %v2825
    %2848 = vmatprep.subr.bf16.mxu0 0
    %2849 = vmatpush1.bf16.msra.mxu0 %v2826
    %2850 = vmatprep.subr.bf16.mxu0 0
    %2851 = vmatpush1.bf16.msra.mxu0 %v2827
    %2852 = vmatprep.subr.bf16.mxu0 0
    %2853 = vmatpush1.bf16.msra.mxu0 0
    %2854 = vmatprep.subr.bf16.mxu0 0
    %2855 = vmatpush1.bf16.msra.mxu0 0
    %2856 = vmatprep.subr.bf16.mxu0 0
    %2857 = vmatpush1.bf16.msra.mxu0 0
    %2858 = vmatprep.subr.bf16.mxu0 0
    %2859 = vmatpush1.bf16.msra.mxu0 0
    %2860 = vmatprep.subr.bf16.mxu0 0
    %2861 = vmatpush1.bf16.msra.mxu0 0
    %2862 = vmatprep.subr.bf16.mxu0 0
    %2863 = vmatpush1.bf16.msra.mxu0 0
    %2864 = vmatprep.subr.bf16.mxu0 0
    %2865 = vmatpush1.bf16.msra.mxu0 0
    %2866 = vmatprep.subr.bf16.mxu0 0
    %2867 = vmatpush1.bf16.msra.mxu0 0
    %2868 = vmatprep.mubr.bf16.mxu0 0
    %2869 = vmatmul.mubr.bf16.gmra.mrb[0].mxu0 %v2766
    %v2870 = vpop.f32.mrb[0].mxu0
    %v2871 = vadd.f32 %v2787, %v2870
    %v2872 = vpop.f32.mrb[0].mxu0
    %v2873 = vpop.f32.mrb[0].mxu0
    %v2874 = vpop.f32.mrb[0].mxu0
    %2875 = vdwg.mxu0
    %v2876 = vpack.c.bf16 %v2871, %v2871
    %s2877 = scalar_lea.vmem %s5, 2
    %2878 = vst [vmem:[%s2877] sm:$0x1] %v2876
    %v2879 = vlaneseq
    %v2880 = vshrl.u32 %v2879, 7
    %v2881 = vsub.s32 3, %v2880
    %v2882 = vrot.slane %v1946, %v2881
    %v2883 = vadd.f32 %v1945, %v2882
    %v2884 = vmax.f32 %v2883, 0.0
    %v2885 = vpack.c.bf16 %v2884, %v2884
    %v2886 = vld [vmem:[#allocation2 + $0x158] sm:$0xf]
    %v2887 = vld [vmem:[#allocation2 + $0x15c] sm:$0xf]
    %v2888 = vld [vmem:[#allocation2 + $0x160] sm:$0xf]
    %v2889 = vld [vmem:[#allocation2 + $0x164] sm:$0xf]
    %v2890 = vld [vmem:[#allocation2 + $0x168] sm:$0xf]
    %v2891 = vld [vmem:[#allocation2 + $0x16c] sm:$0xf]
    %v2892 = vld [vmem:[#allocation2 + $0x170] sm:$0xf]
    %v2893 = vld [vmem:[#allocation2 + $0x174] sm:$0xf]
    %v2894 = vld [vmem:[#allocation4 + $0x50] sm:$0x1]
    %v2895 = vlaneseq
    %v2896 = vshrl.u32 %v2895, 7
    %v2897 = vsub.s32 0, %v2896
    %v2898 = vrot.slane %v2894, %v2897
    %v2907 = vunpack.c.l.b16 %v2886
    %v2908 = vunpack.c.l.b16 %v2887
    %v2909 = vunpack.c.l.b16 %v2888
    %v2910 = vunpack.c.l.b16 %v2889
    %v2911 = vunpack.c.l.b16 %v2890
    %v2912 = vunpack.c.l.b16 %v2891
    %v2913 = vunpack.c.l.b16 %v2892
    %v2914 = vunpack.c.l.b16 %v2893
    %v2915 = vpack.c.b16 %v2908, %v2907
    %v2916 = vpack.c.b16 %v2910, %v2909
    %v2917 = vpack.c.b16 %v2912, %v2911
    %v2918 = vpack.c.b16 %v2914, %v2913
    %v2924 = vsel %vm155, %v2885, 0
    %2926 = vmatprep.subr.bf16.mxu0 0
    %2927 = vmatpush1.bf16.msra.mxu0 %v2915
    %2928 = vmatprep.subr.bf16.mxu0 0
    %2929 = vmatpush1.bf16.msra.mxu0 %v2916
    %2930 = vmatprep.subr.bf16.mxu0 0
    %2931 = vmatpush1.bf16.msra.mxu0 %v2917
    %2932 = vmatprep.subr.bf16.mxu0 0
    %2933 = vmatpush1.bf16.msra.mxu0 %v2918
    %2934 = vmatprep.subr.bf16.mxu0 0
    %2935 = vmatpush1.bf16.msra.mxu0 0
    %2936 = vmatprep.subr.bf16.mxu0 0
    %2937 = vmatpush1.bf16.msra.mxu0 0
    %2938 = vmatprep.subr.bf16.mxu0 0
    %2939 = vmatpush1.bf16.msra.mxu0 0
    %2940 = vmatprep.subr.bf16.mxu0 0
    %2941 = vmatpush1.bf16.msra.mxu0 0
    %2942 = vmatprep.subr.bf16.mxu0 0
    %2943 = vmatpush1.bf16.msra.mxu0 0
    %2944 = vmatprep.subr.bf16.mxu0 0
    %2945 = vmatpush1.bf16.msra.mxu0 0
    %2946 = vmatprep.subr.bf16.mxu0 0
    %2947 = vmatpush1.bf16.msra.mxu0 0
    %2948 = vmatprep.subr.bf16.mxu0 0
    %2949 = vmatpush1.bf16.msra.mxu0 0
    %2950 = vmatprep.subr.bf16.mxu0 0
    %2951 = vmatpush1.bf16.msra.mxu0 0
    %2952 = vmatprep.subr.bf16.mxu0 0
    %2953 = vmatpush1.bf16.msra.mxu0 0
    %2954 = vmatprep.subr.bf16.mxu0 0
    %2955 = vmatpush1.bf16.msra.mxu0 0
    %2956 = vmatprep.subr.bf16.mxu0 0
    %2957 = vmatpush1.bf16.msra.mxu0 0
    %2958 = vmatprep.mubr.bf16.mxu0 0
    %2959 = vmatmul.mubr.bf16.gmra.mrb[0].mxu0 %v2924
    %v2960 = vpop.f32.mrb[0].mxu0
    %v2961 = vadd.f32 %v2898, %v2960
    %v2962 = vpop.f32.mrb[0].mxu0
    %v2963 = vpop.f32.mrb[0].mxu0
    %v2964 = vpop.f32.mrb[0].mxu0
    %2965 = vdwg.mxu0
    %v2966 = vpack.c.bf16 %v2961, %v2961
    %v2967 = vld [vmem:[#allocation2 + $0x178] sm:$0xf]
    %v2968 = vld [vmem:[#allocation2 + $0x17c] sm:$0xf]
    %v2969 = vld [vmem:[#allocation2 + $0x180] sm:$0xf]
    %v2970 = vld [vmem:[#allocation2 + $0x184] sm:$0xf]
    %v2971 = vld [vmem:[#allocation2 + $0x188] sm:$0xf]
    %v2972 = vld [vmem:[#allocation2 + $0x18c] sm:$0xf]
    %v2973 = vld [vmem:[#allocation2 + $0x190] sm:$0xf]
    %v2974 = vld [vmem:[#allocation2 + $0x194] sm:$0xf]
    %v2975 = vld [vmem:[#allocation2 + $0x198] sm:$0xf]
    %v2976 = vld [vmem:[#allocation2 + $0x19c] sm:$0xf]
    %v2977 = vld [vmem:[#allocation2 + $0x1a0] sm:$0xf]
    %v2978 = vld [vmem:[#allocation2 + $0x1a4] sm:$0xf]
    %v2979 = vld [vmem:[#allocation2 + $0x1a8] sm:$0xf]
    %v2980 = vld [vmem:[#allocation2 + $0x1ac] sm:$0xf]
    %v2981 = vld [vmem:[#allocation2 + $0x1b0] sm:$0xf]
    %v2982 = vld [vmem:[#allocation2 + $0x1b4] sm:$0xf]
    %v2983 = vld [vmem:[#allocation4 + $0x58] sm:$0x1]
    %v2984 = vlaneseq
    %v2985 = vshrl.u32 %v2984, 7
    %v2986 = vsub.s32 0, %v2985
    %v2987 = vrot.slane %v2983, %v2986
    %v3004 = vunpack.c.l.b16 %v2967
    %v3005 = vunpack.c.l.b16 %v2968
    %v3006 = vunpack.c.l.b16 %v2969
    %v3007 = vunpack.c.l.b16 %v2970
    %v3008 = vunpack.c.l.b16 %v2971
    %v3009 = vunpack.c.l.b16 %v2972
    %v3010 = vunpack.c.l.b16 %v2973
    %v3011 = vunpack.c.l.b16 %v2974
    %v3012 = vunpack.c.l.b16 %v2975
    %v3013 = vunpack.c.l.b16 %v2976
    %v3014 = vunpack.c.l.b16 %v2977
    %v3015 = vunpack.c.l.b16 %v2978
    %v3016 = vunpack.c.l.b16 %v2979
    %v3017 = vunpack.c.l.b16 %v2980
    %v3018 = vunpack.c.l.b16 %v2981
    %v3019 = vunpack.c.l.b16 %v2982
    %v3020 = vpack.c.b16 %v3005, %v3004
    %v3021 = vpack.c.b16 %v3007, %v3006
    %v3022 = vpack.c.b16 %v3009, %v3008
    %v3023 = vpack.c.b16 %v3011, %v3010
    %v3024 = vpack.c.b16 %v3013, %v3012
    %v3025 = vpack.c.b16 %v3015, %v3014
    %v3026 = vpack.c.b16 %v3017, %v3016
    %v3027 = vpack.c.b16 %v3019, %v3018
    %3036 = vmatprep.subr.bf16.mxu0 0
    %3037 = vmatpush1.bf16.msra.mxu0 %v3020
    %3038 = vmatprep.subr.bf16.mxu0 0
    %3039 = vmatpush1.bf16.msra.mxu0 %v3021
    %3040 = vmatprep.subr.bf16.mxu0 0
    %3041 = vmatpush1.bf16.msra.mxu0 %v3022
    %3042 = vmatprep.subr.bf16.mxu0 0
    %3043 = vmatpush1.bf16.msra.mxu0 %v3023
    %3044 = vmatprep.subr.bf16.mxu0 0
    %3045 = vmatpush1.bf16.msra.mxu0 %v3024
    %3046 = vmatprep.subr.bf16.mxu0 0
    %3047 = vmatpush1.bf16.msra.mxu0 %v3025
    %3048 = vmatprep.subr.bf16.mxu0 0
    %3049 = vmatpush1.bf16.msra.mxu0 %v3026
    %3050 = vmatprep.subr.bf16.mxu0 0
    %3051 = vmatpush1.bf16.msra.mxu0 %v3027
    %3052 = vmatprep.subr.bf16.mxu0 0
    %3053 = vmatpush1.bf16.msra.mxu0 0
    %3054 = vmatprep.subr.bf16.mxu0 0
    %3055 = vmatpush1.bf16.msra.mxu0 0
    %3056 = vmatprep.subr.bf16.mxu0 0
    %3057 = vmatpush1.bf16.msra.mxu0 0
    %3058 = vmatprep.subr.bf16.mxu0 0
    %3059 = vmatpush1.bf16.msra.mxu0 0
    %3060 = vmatprep.subr.bf16.mxu0 0
    %3061 = vmatpush1.bf16.msra.mxu0 0
    %3062 = vmatprep.subr.bf16.mxu0 0
    %3063 = vmatpush1.bf16.msra.mxu0 0
    %3064 = vmatprep.subr.bf16.mxu0 0
    %3065 = vmatpush1.bf16.msra.mxu0 0
    %3066 = vmatprep.subr.bf16.mxu0 0
    %3067 = vmatpush1.bf16.msra.mxu0 0
    %3068 = vmatprep.mubr.bf16.mxu0 0
    %3069 = vmatmul.mubr.bf16.gmra.mrb[0].mxu0 %v2966
    %v3070 = vpop.f32.mrb[0].mxu0
    %v3071 = vadd.f32 %v2987, %v3070
    %v3072 = vpop.f32.mrb[0].mxu0
    %v3073 = vpop.f32.mrb[0].mxu0
    %v3074 = vpop.f32.mrb[0].mxu0
    %3075 = vdwg.mxu0
    %v3076 = vmax.f32 %v3071, 0.0
    %v3077 = vpack.c.bf16 %v3076, %v3076
    %v3078 = vld [vmem:[#allocation2 + $0x1b8] sm:$0xf]
    %v3079 = vld [vmem:[#allocation2 + $0x1bc] sm:$0xf]
    %v3080 = vld [vmem:[#allocation2 + $0x1c0] sm:$0xf]
    %v3081 = vld [vmem:[#allocation2 + $0x1c4] sm:$0xf]
    %v3082 = vld [vmem:[#allocation2 + $0x1c8] sm:$0xf]
    %v3083 = vld [vmem:[#allocation2 + $0x1cc] sm:$0xf]
    %v3084 = vld [vmem:[#allocation2 + $0x1d0] sm:$0xf]
    %v3085 = vld [vmem:[#allocation2 + $0x1d4] sm:$0xf]
    %v3086 = vld [vmem:[#allocation2 + $0x1d8] sm:$0xf]
    %v3087 = vld [vmem:[#allocation2 + $0x1dc] sm:$0xf]
    %v3088 = vld [vmem:[#allocation2 + $0x1e0] sm:$0xf]
    %v3089 = vld [vmem:[#allocation2 + $0x1e4] sm:$0xf]
    %v3090 = vld [vmem:[#allocation2 + $0x1e8] sm:$0xf]
    %v3091 = vld [vmem:[#allocation2 + $0x1ec] sm:$0xf]
    %v3092 = vld [vmem:[#allocation2 + $0x1f0] sm:$0xf]
    %v3093 = vld [vmem:[#allocation2 + $0x1f4] sm:$0xf]
    %v3094 = vld [vmem:[#allocation4 + $0x60] sm:$0x1]
    %v3095 = vlaneseq
    %v3096 = vshrl.u32 %v3095, 7
    %v3097 = vsub.s32 0, %v3096
    %v3098 = vrot.slane %v3094, %v3097
    %v3115 = vunpack.c.l.b16 %v3078
    %v3116 = vunpack.c.l.b16 %v3079
    %v3117 = vunpack.c.l.b16 %v3080
    %v3118 = vunpack.c.l.b16 %v3081
    %v3119 = vunpack.c.l.b16 %v3082
    %v3120 = vunpack.c.l.b16 %v3083
    %v3121 = vunpack.c.l.b16 %v3084
    %v3122 = vunpack.c.l.b16 %v3085
    %v3123 = vunpack.c.l.b16 %v3086
    %v3124 = vunpack.c.l.b16 %v3087
    %v3125 = vunpack.c.l.b16 %v3088
    %v3126 = vunpack.c.l.b16 %v3089
    %v3127 = vunpack.c.l.b16 %v3090
    %v3128 = vunpack.c.l.b16 %v3091
    %v3129 = vunpack.c.l.b16 %v3092
    %v3130 = vunpack.c.l.b16 %v3093
    %v3131 = vpack.c.b16 %v3116, %v3115
    %v3132 = vpack.c.b16 %v3118, %v3117
    %v3133 = vpack.c.b16 %v3120, %v3119
    %v3134 = vpack.c.b16 %v3122, %v3121
    %v3135 = vpack.c.b16 %v3124, %v3123
    %v3136 = vpack.c.b16 %v3126, %v3125
    %v3137 = vpack.c.b16 %v3128, %v3127
    %v3138 = vpack.c.b16 %v3130, %v3129
    %3147 = vmatprep.subr.bf16.mxu0 0
    %3148 = vmatpush1.bf16.msra.mxu0 %v3131
    %3149 = vmatprep.subr.bf16.mxu0 0
    %3150 = vmatpush1.bf16.msra.mxu0 %v3132
    %3151 = vmatprep.subr.bf16.mxu0 0
    %3152 = vmatpush1.bf16.msra.mxu0 %v3133
    %3153 = vmatprep.subr.bf16.mxu0 0
    %3154 = vmatpush1.bf16.msra.mxu0 %v3134
    %3155 = vmatprep.subr.bf16.mxu0 0
    %3156 = vmatpush1.bf16.msra.mxu0 %v3135
    %3157 = vmatprep.subr.bf16.mxu0 0
    %3158 = vmatpush1.bf16.msra.mxu0 %v3136
    %3159 = vmatprep.subr.bf16.mxu0 0
    %3160 = vmatpush1.bf16.msra.mxu0 %v3137
    %3161 = vmatprep.subr.bf16.mxu0 0
    %3162 = vmatpush1.bf16.msra.mxu0 %v3138
    %3163 = vmatprep.subr.bf16.mxu0 0
    %3164 = vmatpush1.bf16.msra.mxu0 0
    %3165 = vmatprep.subr.bf16.mxu0 0
    %3166 = vmatpush1.bf16.msra.mxu0 0
    %3167 = vmatprep.subr.bf16.mxu0 0
    %3168 = vmatpush1.bf16.msra.mxu0 0
    %3169 = vmatprep.subr.bf16.mxu0 0
    %3170 = vmatpush1.bf16.msra.mxu0 0
    %3171 = vmatprep.subr.bf16.mxu0 0
    %3172 = vmatpush1.bf16.msra.mxu0 0
    %3173 = vmatprep.subr.bf16.mxu0 0
    %3174 = vmatpush1.bf16.msra.mxu0 0
    %3175 = vmatprep.subr.bf16.mxu0 0
    %3176 = vmatpush1.bf16.msra.mxu0 0
    %3177 = vmatprep.subr.bf16.mxu0 0
    %3178 = vmatpush1.bf16.msra.mxu0 0
    %3179 = vmatprep.mubr.bf16.mxu0 0
    %3180 = vmatmul.mubr.bf16.gmra.mrb[0].mxu0 %v3077
    %v3181 = vpop.f32.mrb[0].mxu0
    %v3182 = vadd.f32 %v3098, %v3181
    %v3183 = vpop.f32.mrb[0].mxu0
    %v3184 = vpop.f32.mrb[0].mxu0
    %v3185 = vpop.f32.mrb[0].mxu0
    %3186 = vdwg.mxu0
    %v3187 = vpack.c.bf16 %v3182, %v3182
    %s3188 = scalar_lea.vmem %s5, 3
    %3189 = vst [vmem:[%s3188] sm:$0x1] %v3187
    // Predicated region
    $region30: #{forward.1} parent=1 // pred_check
      _
    $region31: #{forward.1} parent=1 // pred_check_branch
      %3191 = sbr.rel (0) target = $region33
    $region32: #{forward.1} parent=1 // pred_region
      _
    $region33: #{forward.1} parent=1 // pred_fallthru
      _
    // Predicated region
    $region34: #{forward.1} parent=1 // pred_check
      _
    $region35: #{forward.1} parent=1 // pred_check_branch
      %3193 = sbr.rel (0) target = $region37
    $region36: #{forward.1} parent=1 // pred_region
      _
    $region37: #{forward.1} parent=1 // pred_fallthru
      _
    %3194 = vsyncpa [#allocation3], 1
    %3195 = vsyncpa [#allocation5], 1

</llo_original>
